<compile_context>
chip_gen: v6e
topology: v6e:2x2x1
jax: 0.10.0
libtpu: 0.0.40
codegen_flags: <defaults>
</compile_context>

<pallas_src>
import jax
import jax.numpy as jnp
import numpy as np
from jax.experimental import pallas as pl
from jax.experimental.pallas import tpu as pltpu


def _vq_kernel(z_ref, embm2_ref, embt_ref, esq_ref,
               zq_ref, idx_ref, dsum_ref, sqerr_ref, counts_ref):
    """One grid step: (C, tile_hw) pixels (channel-major) vs. the resident codebook.

    Accumulator outputs keep a constant block index across the whole grid, so
    they stay resident in VMEM and are written back once at the end.
    """
    first_step = jnp.logical_and(pl.program_id(0) == 0, pl.program_id(1) == 0)

    @pl.when(first_step)
    def _init():
        dsum_ref[...] = jnp.zeros_like(dsum_ref)
        sqerr_ref[...] = jnp.zeros_like(sqerr_ref)
        counts_ref[...] = jnp.zeros_like(counts_ref)

    K = embm2_ref.shape[0]

    z = z_ref[...]                                   # (C, T), native dtype
    zf = z.astype(jnp.float32)

    # d' = ||e||^2 - 2 e.z   (channel-major cross term on the MXU; the per-pixel
    # ||z||^2 constant is omitted from the argmin and re-added only in the
    # mean-distance accumulator below).
    cross_m2 = jnp.dot(embm2_ref[...], z,
                       preferred_element_type=jnp.float32)        # (K, T)
    d = cross_m2 + esq_ref[...]                                   # (K, T)

    # argmin over the codebook (sublane axis); first occurrence on ties,
    # matching torch.argmin.
    min_val = jnp.min(d, axis=0, keepdims=True)                   # (1, T)
    k_iota = jax.lax.broadcasted_iota(jnp.int32, d.shape, 0)      # (K, T)
    idx = jnp.min(jnp.where(d <= min_val, k_iota, K),
                  axis=0, keepdims=True)                          # (1, T) int32

    sel = (k_iota == idx)                                         # (K, T) bool
    onehot = sel.astype(embt_ref.dtype)
    # z_q = E^T @ onehot : row gather as an MXU matmul, already channel-major.
    z_q = jnp.dot(embt_ref[...], onehot,
                  preferred_element_type=jnp.float32)             # (C, T)

    zq_ref[...] = z_q.astype(zq_ref.dtype)
    idx_ref[...] = idx                                            # lane-dense row

    # Partial statistics (sublane reductions; one small lane reduce for counts).
    z_sq = jnp.sum(zf * zf, axis=0, keepdims=True)                # (1, T)
    diff = z_q - zf
    # true sum_k d = sum_k (||e||^2 - 2 e.z) + K * ||z||^2
    dsum_ref[...] += jnp.sum(d, axis=0, keepdims=True) + K * z_sq
    sqerr_ref[...] += jnp.sum(diff * diff, axis=0, keepdims=True)
    counts_ref[...] += jnp.sum(sel.astype(jnp.float32), axis=1, keepdims=True)


def vector_quantizer_forward(z_nchw, embedding, beta, tile_hw=2048,
                             return_min_encodings=True, vmem_limit_bytes=None):
    """Forward of VectorQuantizer. z_nchw: (B, C, H, W), embedding: (K, C).

    VMEM budget per step (guides tile_hw): ~2*2*C*tile_hw*4 (double-buffered
    z, z_q) + ~2*K*tile_hw*4 (d / onehot live values) + resident codebook.
    On v7x (64 MiB physical) cap tile_hw accordingly for large codebooks.
    """
    B, C, H, W = z_nchw.shape
    K, Cd = embedding.shape
    assert C == Cd, "input channel dim must equal emb_dim"
    HW = H * W
    N = B * HW

    tile_hw = min(tile_hw, HW)
    assert HW % tile_hw == 0, "H*W must be a multiple of tile_hw"
    assert tile_hw % 128 == 0 or tile_hw == HW, "tile_hw should be lane-aligned"
    T = HW // tile_hw

    # Channel-major views / codebook constants hoisted out of the grid loop.
    z3 = z_nchw.reshape(B, C, HW)                     # free view (no transpose)
    emb32 = embedding.astype(jnp.float32)
    emb_m2 = -2.0 * embedding                         # fold -2 into the resident operand
    emb_t = jnp.transpose(embedding)                  # (C, K) for the gather matmul
    emb_sq = jnp.sum(emb32 * emb32, axis=1, keepdims=True)   # (K, 1) f32

    out_shapes = (
        jax.ShapeDtypeStruct((B, C, HW), z_nchw.dtype),   # z_q, channel-major
        jax.ShapeDtypeStruct((B, 1, HW), jnp.int32),      # indices, lane-dense
        jax.ShapeDtypeStruct((1, tile_hw), jnp.float32),  # per-lane sum_k d partials
        jax.ShapeDtypeStruct((1, tile_hw), jnp.float32),  # per-lane sum_c (zq-z)^2
        jax.ShapeDtypeStruct((K, 1), jnp.float32),        # per-code counts
    )

    row_map = lambda b, t: (b, 0, t)     # streamed channel-major tiles
    resident = lambda b, t: (0, 0)       # codebook constants / accumulators

    grid_spec = pltpu.PrefetchScalarGridSpec(
        num_scalar_prefetch=0,
        grid=(B, T),
        in_specs=[
            pl.BlockSpec((None, C, tile_hw), row_map),   # z (C, tile_hw) per step
            pl.BlockSpec((K, C), resident),              # -2 * codebook
            pl.BlockSpec((C, K), resident),              # codebook^T
            pl.BlockSpec((K, 1), resident),              # ||e||^2
        ],
        out_specs=[
            pl.BlockSpec((None, C, tile_hw), row_map),   # z_q
            pl.BlockSpec((None, 1, tile_hw), row_map),   # indices
            pl.BlockSpec((1, tile_hw), resident),        # sum_k d accumulator
            pl.BlockSpec((1, tile_hw), resident),        # squared-error accumulator
            pl.BlockSpec((K, 1), resident),              # counts accumulator
        ],
    )

    # Accumulators have a constant output block across both grid axes, so both
    # axes must stay sequential ("arbitrary"); measured parallel vs arbitrary is
    # near-neutral anyway.  TODO(synk): CORE_PARALLEL + per-core accumulator
    # slots to use both v7x TensorCores.
    compiler_params = pltpu.CompilerParams(
        dimension_semantics=("arbitrary", "arbitrary"),
        vmem_limit_bytes=vmem_limit_bytes)

    zq3, idx3, dsum, sqerr, counts = pl.pallas_call(
        _vq_kernel,
        out_shape=out_shapes,
        grid_spec=grid_spec,
        compiler_params=compiler_params,
    )(z3, emb_m2, emb_t, emb_sq)

    # --- tiny final reductions done by XLA outside the kernel ---
    z_q = zq3.reshape(B, C, H, W)                     # free view (no transpose)
    idx_flat = idx3.reshape(N, 1)                     # (N, 1), pixel order (b, h, w)

    mean_distance = jnp.sum(dsum) / (N * K)
    mse = jnp.sum(sqerr) / (N * C)
    # forward value of mean((zq.detach()-z)^2) + beta*mean((zq-z.detach())^2)
    loss = (1.0 + beta) * mse

    e_mean = counts[:, 0] / N
    perplexity = jnp.exp(-jnp.sum(e_mean * jnp.log(e_mean + 1e-10)))

    stats = {
        'perplexity': perplexity,
        'min_encoding_indices': idx_flat,
        'mean_distance': mean_distance,
    }
    if return_min_encodings:
        # Dense (N, K) one-hot only materialized on request (matches the PyTorch
        # forward contract, but it is the dominant HBM write for realistic N, K).
        stats['min_encodings'] = jax.nn.one_hot(idx_flat[:, 0], K,
                                                dtype=z_nchw.dtype)
    # straight-through: forward value of z + (z_q - z).detach() is z_q itself.
    # TODO(synk): gradient-side detach/straight-through semantics are training-only
    # and not represented in this forward kernel.
    return z_q, loss, stats


def _reference_forward(z_nchw, embedding, beta):
    """Pure-JAX reference mirroring the PyTorch forward (for validation)."""
    B, C, H, W = z_nchw.shape
    z = jnp.transpose(z_nchw, (0, 2, 3, 1))
    zf = z.reshape(-1, C)
    d = ((zf ** 2).sum(1, keepdims=True) + (embedding ** 2).sum(1)
         - 2.0 * zf @ embedding.T)
    mean_distance = jnp.mean(d)
    idx = jnp.argmin(d, axis=1)
    enc = jax.nn.one_hot(idx, embedding.shape[0], dtype=zf.dtype)
    zq = (enc @ embedding).reshape(z.shape)
    loss = (1.0 + beta) * jnp.mean((zq - z) ** 2)
    e_mean = jnp.mean(enc, axis=0)
    perplexity = jnp.exp(-jnp.sum(e_mean * jnp.log(e_mean + 1e-10)))
    zq_out = jnp.transpose(zq, (0, 3, 1, 2))
    return zq_out, loss, perplexity, idx, mean_distance, d


if __name__ == "__main__":
    codebook_size = 128
    emb_dim = 64
    beta = 0.25
    B, H, W = 2, 32, 32   # HW = 1024 pixels per image -> one lane-dense tile each

    key = jax.random.PRNGKey(0)
    k_z, k_e = jax.random.split(key)
    z = jax.random.normal(k_z, (B, emb_dim, H, W), dtype=jnp.float32)
    # nn.Embedding weight init: uniform(-1/codebook_size, 1/codebook_size)
    embedding = jax.random.uniform(
        k_e, (codebook_size, emb_dim), dtype=jnp.float32,
        minval=-1.0 / codebook_size, maxval=1.0 / codebook_size)

    z_q, loss, stats = vector_quantizer_forward(z, embedding, beta)
    jax.block_until_ready((z_q, loss, stats))

    # validate against pure-JAX reference
    zq_ref, loss_ref, perp_ref, idx_ref, md_ref, d_ref = _reference_forward(
        z, embedding, beta)

    N = B * H * W
    K = codebook_size
    idx_ker = np.asarray(stats['min_encoding_indices'][:, 0])
    idx_ref_np = np.asarray(idx_ref)
    d_ref_np = np.asarray(d_ref)

    # Kernel picks must be optimal up to f32 rounding (near-ties may legally
    # resolve to a different, equally-good code) and agree with the reference
    # argmin except at those rare near-ties.
    gaps = d_ref_np[np.arange(N), idx_ker] - d_ref_np.min(axis=1)
    assert np.all(gaps <= 1e-3), float(gaps.max())
    assert np.mean(idx_ker == idx_ref_np) >= 0.995

    # z_q must be exactly the codebook rows the kernel selected (up to MXU
    # matmul precision), laid out back in NCHW.
    emb_np = np.asarray(embedding)
    zq_from_idx = emb_np[idx_ker].reshape(B, H, W, emb_dim).transpose(0, 3, 1, 2)
    assert np.allclose(np.asarray(z_q), zq_from_idx, atol=1e-4)

    # Scalar statistics.
    assert np.allclose(float(loss), float(loss_ref), rtol=5e-4, atol=1e-5)
    assert np.allclose(float(stats['mean_distance']), float(md_ref),
                       rtol=1e-3, atol=1e-3)
    counts_np = np.bincount(idx_ker, minlength=K).astype(np.float64)
    perp_from_idx = np.exp(-np.sum((counts_np / N) * np.log(counts_np / N + 1e-10)))
    assert np.allclose(float(stats['perplexity']), perp_from_idx, rtol=1e-4)
    assert np.allclose(float(stats['perplexity']), float(perp_ref), rtol=2e-2)

    # Dense one-hot consistent with the indices.
    assert stats['min_encodings'].shape == (N, K)
    assert np.array_equal(
        np.asarray(jnp.argmax(stats['min_encodings'], axis=1)), idx_ker)

    print("KERNEL_OK")
</pallas_src>

<mosaic_0001>
module attributes {stable_mosaic.version = 11 : i64} {
  func.func @_vq_kernel(%arg0: i32, %arg1: i32, %arg2: memref<1x64x1024xf32, #tpu.memory_space<vmem>>, %arg3: memref<128x64xf32, #tpu.memory_space<vmem>>, %arg4: memref<64x128xf32, #tpu.memory_space<vmem>>, %arg5: memref<128x1xf32, #tpu.memory_space<vmem>>, %arg6: memref<1x64x1024xf32, #tpu.memory_space<vmem>>, %arg7: memref<1x1x1024xi32, #tpu.memory_space<vmem>>, %arg8: memref<1x1024xf32, #tpu.memory_space<vmem>>, %arg9: memref<1x1024xf32, #tpu.memory_space<vmem>>, %arg10: memref<128x1xf32, #tpu.memory_space<vmem>>) attributes {dimension_semantics = [#tpu.dimension_semantics<arbitrary>, #tpu.dimension_semantics<arbitrary>], iteration_bounds = array<i64: 2, 1>, scalar_prefetch = 0 : i64, scratch_operands = 0 : i64, tpu.core_type = #tpu.core_type<tc>, window_params = [{transform_indices = @transform_0, window_bounds = array<i64: 1, 64, 1024>}, {pipeline_mode = #tpu.pipeline_mode<synchronous>, transform_indices = @transform_1, window_bounds = array<i64: 128, 64>}, {pipeline_mode = #tpu.pipeline_mode<synchronous>, transform_indices = @transform_2, window_bounds = array<i64: 64, 128>}, {pipeline_mode = #tpu.pipeline_mode<synchronous>, transform_indices = @transform_3, window_bounds = array<i64: 128, 1>}, {transform_indices = @transform_4, window_bounds = array<i64: 1, 64, 1024>}, {transform_indices = @transform_5, window_bounds = array<i64: 1, 1, 1024>}, {pipeline_mode = #tpu.pipeline_mode<synchronous>, transform_indices = @transform_6, window_bounds = array<i64: 1, 1024>}, {pipeline_mode = #tpu.pipeline_mode<synchronous>, transform_indices = @transform_7, window_bounds = array<i64: 1, 1024>}, {pipeline_mode = #tpu.pipeline_mode<synchronous>, transform_indices = @transform_8, window_bounds = array<i64: 128, 1>}]} {
    %c0_i32 = arith.constant 0 : i32
    %0 = arith.cmpi eq, %arg0, %c0_i32 : i32
    %c0_i32_0 = arith.constant 0 : i32
    %1 = arith.cmpi eq, %arg1, %c0_i32_0 : i32
    %2 = arith.andi %0, %1 : i1
    %3 = arith.extui %2 : i1 to i32
    %c0_i32_1 = arith.constant 0 : i32
    %4 = arith.cmpi ne, %3, %c0_i32_1 : i32
    scf.if %4 {
      %cst_36 = arith.constant 0.000000e+00 : f32
      %58 = vector.broadcast %cst_36 : f32 to vector<1x1024xf32>
      %c0_37 = arith.constant 0 : index
      %c0_38 = arith.constant 0 : index
      %59 = vector.load %arg8[%c0_37, %c0_38] : memref<1x1024xf32, #tpu.memory_space<vmem>>, vector<1x1024xf32>
      tpu.vector_store %arg8[%c0_37, %c0_38], %58 {strides = array<i32>} : memref<1x1024xf32, #tpu.memory_space<vmem>>, vector<1x1024xf32>,
      %cst_39 = arith.constant 0.000000e+00 : f32
      %60 = vector.broadcast %cst_39 : f32 to vector<1x1024xf32>
      %c0_40 = arith.constant 0 : index
      %c0_41 = arith.constant 0 : index
      %61 = vector.load %arg9[%c0_40, %c0_41] : memref<1x1024xf32, #tpu.memory_space<vmem>>, vector<1x1024xf32>
      tpu.vector_store %arg9[%c0_40, %c0_41], %60 {strides = array<i32>} : memref<1x1024xf32, #tpu.memory_space<vmem>>, vector<1x1024xf32>,
      %cst_42 = arith.constant 0.000000e+00 : f32
      %62 = vector.broadcast %cst_42 : f32 to vector<128x1xf32>
      %c0_43 = arith.constant 0 : index
      %c0_44 = arith.constant 0 : index
      %63 = vector.load %arg10[%c0_43, %c0_44] : memref<128x1xf32, #tpu.memory_space<vmem>>, vector<128x1xf32>
      tpu.vector_store %arg10[%c0_43, %c0_44], %62 {strides = array<i32>} : memref<128x1xf32, #tpu.memory_space<vmem>>, vector<128x1xf32>,
    } else {
    }
    %c0 = arith.constant 0 : index
    %c0_2 = arith.constant 0 : index
    %c0_3 = arith.constant 0 : index
    %5 = vector.load %arg2[%c0, %c0_2, %c0_3] : memref<1x64x1024xf32, #tpu.memory_space<vmem>>, vector<1x64x1024xf32>
    %6 = vector.shape_cast %5 : vector<1x64x1024xf32> to vector<64x1024xf32>
    %c0_4 = arith.constant 0 : index
    %c0_5 = arith.constant 0 : index
    %7 = vector.load %arg3[%c0_4, %c0_5] : memref<128x64xf32, #tpu.memory_space<vmem>>, vector<128x64xf32>
    %cst = arith.constant dense<0.000000e+00> : vector<128x1024xf32>
    %8 = tpu.matmul %7, %6, %cst {dimension_numbers = #tpu.dot_dimension_numbers<[1], [0], [0], [1], [0, 0, 1, 1], [], []>} : vector<128x64xf32>, vector<64x1024xf32>, vector<128x1024xf32> -> vector<128x1024xf32>
    %c0_6 = arith.constant 0 : index
    %c0_7 = arith.constant 0 : index
    %9 = vector.load %arg5[%c0_6, %c0_7] : memref<128x1xf32, #tpu.memory_space<vmem>>, vector<128x1xf32>
    %10 = vector.broadcast %9 : vector<128x1xf32> to vector<128x1024xf32>
    %11 = arith.addf %8, %10 : vector<128x1024xf32>
    %cst_8 = arith.constant dense<0x7F800000> : vector<1024xf32>
    %12 = vector.multi_reduction <minimumf>, %11, %cst_8 [0] : vector<128x1024xf32> to vector<1024xf32>
    %13 = vector.shape_cast %12 : vector<1024xf32> to vector<1x1024xf32>
    %14 = tpu.iota {dimensions = array<i32: 0>} : vector<128x1024xi32>
    %15 = vector.broadcast %13 : vector<1x1024xf32> to vector<128x1024xf32>
    %16 = arith.cmpf ole, %11, %15 : vector<128x1024xf32>
    %c128_i32 = arith.constant 128 : i32
    %17 = vector.broadcast %c128_i32 : i32 to vector<128x1024xi32>
    %18 = arith.select %16, %14, %17 : vector<128x1024xi1>, vector<128x1024xi32>
    %cst_9 = arith.constant dense<2147483647> : vector<1024xi32>
    %19 = vector.multi_reduction <minsi>, %18, %cst_9 [0] : vector<128x1024xi32> to vector<1024xi32>
    %20 = vector.shape_cast %19 : vector<1024xi32> to vector<1x1024xi32>
    %21 = vector.broadcast %20 : vector<1x1024xi32> to vector<128x1024xi32>
    %22 = arith.cmpi eq, %14, %21 : vector<128x1024xi32>
    %23 = arith.extui %22 : vector<128x1024xi1> to vector<128x1024xi32>
    %24 = arith.sitofp %23 : vector<128x1024xi32> to vector<128x1024xf32>
    %c0_10 = arith.constant 0 : index
    %c0_11 = arith.constant 0 : index
    %25 = vector.load %arg4[%c0_10, %c0_11] : memref<64x128xf32, #tpu.memory_space<vmem>>, vector<64x128xf32>
    %cst_12 = arith.constant dense<0.000000e+00> : vector<64x1024xf32>
    %26 = tpu.matmul %25, %24, %cst_12 {dimension_numbers = #tpu.dot_dimension_numbers<[1], [0], [0], [1], [0, 0, 1, 1], [], []>} : vector<64x128xf32>, vector<128x1024xf32>, vector<64x1024xf32> -> vector<64x1024xf32>
    %c0_13 = arith.constant 0 : index
    %c0_14 = arith.constant 0 : index
    %c0_15 = arith.constant 0 : index
    %27 = vector.load %arg6[%c0_13, %c0_14, %c0_15] : memref<1x64x1024xf32, #tpu.memory_space<vmem>>, vector<1x64x1024xf32>
    %28 = vector.shape_cast %27 : vector<1x64x1024xf32> to vector<64x1024xf32>
    %29 = vector.shape_cast %26 : vector<64x1024xf32> to vector<1x64x1024xf32>
    tpu.vector_store %arg6[%c0_13, %c0_14, %c0_15], %29 {strides = array<i32>} : memref<1x64x1024xf32, #tpu.memory_space<vmem>>, vector<1x64x1024xf32>,
    %c0_16 = arith.constant 0 : index
    %c0_17 = arith.constant 0 : index
    %c0_18 = arith.constant 0 : index
    %30 = vector.load %arg7[%c0_16, %c0_17, %c0_18] : memref<1x1x1024xi32, #tpu.memory_space<vmem>>, vector<1x1x1024xi32>
    %31 = vector.shape_cast %30 : vector<1x1x1024xi32> to vector<1x1024xi32>
    %32 = vector.shape_cast %20 : vector<1x1024xi32> to vector<1x1x1024xi32>
    tpu.vector_store %arg7[%c0_16, %c0_17, %c0_18], %32 {strides = array<i32>} : memref<1x1x1024xi32, #tpu.memory_space<vmem>>, vector<1x1x1024xi32>,
    %33 = arith.mulf %6, %6 : vector<64x1024xf32>
    %cst_19 = arith.constant dense<0.000000e+00> : vector<1024xf32>
    %34 = vector.multi_reduction <add>, %33, %cst_19 [0] : vector<64x1024xf32> to vector<1024xf32>
    %35 = vector.shape_cast %34 : vector<1024xf32> to vector<1x1024xf32>
    %36 = arith.subf %26, %6 : vector<64x1024xf32>
    %c0_20 = arith.constant 0 : index
    %c0_21 = arith.constant 0 : index
    %37 = vector.load %arg8[%c0_20, %c0_21] : memref<1x1024xf32, #tpu.memory_space<vmem>>, vector<1x1024xf32>
    %cst_22 = arith.constant dense<0.000000e+00> : vector<1024xf32>
    %38 = vector.multi_reduction <add>, %11, %cst_22 [0] : vector<128x1024xf32> to vector<1024xf32>
    %39 = vector.shape_cast %38 : vector<1024xf32> to vector<1x1024xf32>
    %cst_23 = arith.constant 1.280000e+02 : f32
    %40 = vector.broadcast %cst_23 : f32 to vector<1x1024xf32>
    %41 = arith.mulf %40, %35 : vector<1x1024xf32>
    %42 = arith.addf %39, %41 : vector<1x1024xf32>
    %43 = arith.addf %37, %42 : vector<1x1024xf32>
    %c0_24 = arith.constant 0 : index
    %c0_25 = arith.constant 0 : index
    %44 = vector.load %arg8[%c0_24, %c0_25] : memref<1x1024xf32, #tpu.memory_space<vmem>>, vector<1x1024xf32>
    tpu.vector_store %arg8[%c0_24, %c0_25], %43 {strides = array<i32>} : memref<1x1024xf32, #tpu.memory_space<vmem>>, vector<1x1024xf32>,
    %c0_26 = arith.constant 0 : index
    %c0_27 = arith.constant 0 : index
    %45 = vector.load %arg9[%c0_26, %c0_27] : memref<1x1024xf32, #tpu.memory_space<vmem>>, vector<1x1024xf32>
    %46 = arith.mulf %36, %36 : vector<64x1024xf32>
    %cst_28 = arith.constant dense<0.000000e+00> : vector<1024xf32>
    %47 = vector.multi_reduction <add>, %46, %cst_28 [0] : vector<64x1024xf32> to vector<1024xf32>
    %48 = vector.shape_cast %47 : vector<1024xf32> to vector<1x1024xf32>
    %49 = arith.addf %45, %48 : vector<1x1024xf32>
    %c0_29 = arith.constant 0 : index
    %c0_30 = arith.constant 0 : index
    %50 = vector.load %arg9[%c0_29, %c0_30] : memref<1x1024xf32, #tpu.memory_space<vmem>>, vector<1x1024xf32>
    tpu.vector_store %arg9[%c0_29, %c0_30], %49 {strides = array<i32>} : memref<1x1024xf32, #tpu.memory_space<vmem>>, vector<1x1024xf32>,
    %c0_31 = arith.constant 0 : index
    %c0_32 = arith.constant 0 : index
    %51 = vector.load %arg10[%c0_31, %c0_32] : memref<128x1xf32, #tpu.memory_space<vmem>>, vector<128x1xf32>
    %52 = arith.extui %22 : vector<128x1024xi1> to vector<128x1024xi32>
    %53 = arith.sitofp %52 : vector<128x1024xi32> to vector<128x1024xf32>
    %cst_33 = arith.constant dense<0.000000e+00> : vector<128xf32>
    %54 = vector.multi_reduction <add>, %53, %cst_33 [1] : vector<128x1024xf32> to vector<128xf32>
    %55 = vector.shape_cast %54 : vector<128xf32> to vector<128x1xf32>
    %56 = arith.addf %51, %55 : vector<128x1xf32>
    %c0_34 = arith.constant 0 : index
    %c0_35 = arith.constant 0 : index
    %57 = vector.load %arg10[%c0_34, %c0_35] : memref<128x1xf32, #tpu.memory_space<vmem>>, vector<128x1xf32>
    tpu.vector_store %arg10[%c0_34, %c0_35], %56 {strides = array<i32>} : memref<128x1xf32, #tpu.memory_space<vmem>>, vector<128x1xf32>,
    return
  }
  func.func @transform_0(%arg0: i32, %arg1: i32) -> (i32, i32, i32) {
    %c0_i32 = arith.constant 0 : i32
    %c0_i32_0 = arith.constant 0 : i32
    return %arg0, %c0_i32, %arg1 : i32, i32, i32
  }
  func.func @transform_1(%arg0: i32, %arg1: i32) -> (i32, i32) {
    %c0_i32 = arith.constant 0 : i32
    %c0_i32_0 = arith.constant 0 : i32
    %c0_i32_1 = arith.constant 0 : i32
    return %c0_i32, %c0_i32_0 : i32, i32
  }
  func.func @transform_2(%arg0: i32, %arg1: i32) -> (i32, i32) {
    %c0_i32 = arith.constant 0 : i32
    %c0_i32_0 = arith.constant 0 : i32
    %c0_i32_1 = arith.constant 0 : i32
    return %c0_i32, %c0_i32_0 : i32, i32
  }
  func.func @transform_3(%arg0: i32, %arg1: i32) -> (i32, i32) {
    %c0_i32 = arith.constant 0 : i32
    %c0_i32_0 = arith.constant 0 : i32
    %c0_i32_1 = arith.constant 0 : i32
    return %c0_i32, %c0_i32_0 : i32, i32
  }
  func.func @transform_4(%arg0: i32, %arg1: i32) -> (i32, i32, i32) {
    %c0_i32 = arith.constant 0 : i32
    %c0_i32_0 = arith.constant 0 : i32
    return %arg0, %c0_i32, %arg1 : i32, i32, i32
  }
  func.func @transform_5(%arg0: i32, %arg1: i32) -> (i32, i32, i32) {
    %c0_i32 = arith.constant 0 : i32
    %c0_i32_0 = arith.constant 0 : i32
    return %arg0, %c0_i32, %arg1 : i32, i32, i32
  }
  func.func @transform_6(%arg0: i32, %arg1: i32) -> (i32, i32) {
    %c0_i32 = arith.constant 0 : i32
    %c0_i32_0 = arith.constant 0 : i32
    %c0_i32_1 = arith.constant 0 : i32
    return %c0_i32, %c0_i32_0 : i32, i32
  }
  func.func @transform_7(%arg0: i32, %arg1: i32) -> (i32, i32) {
    %c0_i32 = arith.constant 0 : i32
    %c0_i32_0 = arith.constant 0 : i32
    %c0_i32_1 = arith.constant 0 : i32
    return %c0_i32, %c0_i32_0 : i32, i32
  }
  func.func @transform_8(%arg0: i32, %arg1: i32) -> (i32, i32) {
    %c0_i32 = arith.constant 0 : i32
    %c0_i32_0 = arith.constant 0 : i32
    %c0_i32_1 = arith.constant 0 : i32
    return %c0_i32, %c0_i32_0 : i32, i32
  }
}

</mosaic_0001>

<llo_original>
// kernel: tpu_custom_call.1
$region0: #{tpu_custom_call.1}
  #allocation0 [shape = 'u32[]', space=smem, size = 0x4, offset = 0x4, fixed_abs, tag = 'smem constant byte address 0x4 - core index']
  #allocation1 [shape = 'u32[144,128]{1,0:T(1,128)}', space=vmem, size = 0x12000, scoped, tag = 'internal scratch']
  %s0 = inlined_call_operand.hbm [shape: f32[2,64,1024], index: 0, kind: input, shape index: {}]
  %s1 = inlined_call_operand.vmem [shape: f32[128,64], index: 1, kind: input, shape index: {}]
  %s2 = inlined_call_operand.vmem [shape: f32[64,128], index: 2, kind: input, shape index: {}]
  %s3 = inlined_call_operand.vmem [shape: f32[128,1], index: 3, kind: input, shape index: {}]
  %s4 = inlined_call_operand.hbm [shape: f32[2,64,1024], index: 4, kind: output, shape index: {0}]
  %s5 = inlined_call_operand.hbm [shape: s32[2,1,1024], index: 5, kind: output, shape index: {1}]
  %s6 = inlined_call_operand.hbm [shape: f32[1,1024], index: 6, kind: output, shape index: {2}]
  %s7 = inlined_call_operand.hbm [shape: f32[1,1024], index: 7, kind: output, shape index: {3}]
  %s8 = inlined_call_operand.vmem [shape: f32[128,1], index: 8, kind: output, shape index: {4}]
  %9 = xla_tuple %s4, %s5, %s6, %s7, %s8
  %s10 = sld [smem:[#allocation0]]
  $region89: #{tpu_custom_call.1} parent=0
    _
  %s12 = ssub.s32 1, %s10
  %s13 = scalar_select 0, %s12, %s10
  $region1: #{tpu_custom_call.1} parent=0
    #allocation2 [shape = 'u8[524288]{0}', space=vmem, size = 0x80000, scoped, tag = 'input window, operand 0']
    #allocation3 [shape = 's32[2]{0}', space=sflag, size = 0x8, scoped, tag = 'scoped memory for tpu_custom_call.1']
    #allocation4 [shape = 's32[2]{0}', space=sflag, size = 0x8, scoped, tag = 'scoped memory for tpu_custom_call.1']
    #allocation5 [shape = 'u8[524288]{0}', space=vmem, size = 0x80000, scoped, tag = 'output window, operand 0']
    #allocation6 [shape = 'u8[8192]{0}', space=vmem, size = 0x2000, scoped, tag = 'output window, operand 1']
    #allocation7 [shape = 's32[2]{0}', space=sflag, size = 0x8, scoped, tag = 'scoped memory for tpu_custom_call.1']
    #allocation8 [shape = 'u8[4096]{0}', space=vmem, size = 0x1000, scoped, tag = 'output window, operand 2, single buffered']
    #allocation9 [shape = 'u8[4096]{0}', space=vmem, size = 0x1000, scoped, tag = 'output window, operand 3, single buffered']
    #allocation10 [shape = 's32[1]{0}', space=sflag, size = 0x4, scoped, tag = 'scoped memory for tpu_custom_call.1']
    %14 = vsyncpa [#allocation3], 0
    %s15 = scalar_lea.sflag [#allocation3], 1
    %16 = vsyncpa %s15, 0
    %17 = vsyncpa [#allocation4], 0
    %s18 = scalar_lea.sflag [#allocation4], 1
    %19 = vsyncpa %s18, 0
    %20 = vsyncpa [#allocation7], 0
    %s21 = scalar_lea.sflag [#allocation7], 1
    %22 = vsyncpa %s21, 0
    %23 = vsyncpa [#allocation10], 0
    loop: start=0, step=1, limit=4
    $region2: #{tpu_custom_call.1} parent=1 // loop_pre_header
      _
    $region3: #{tpu_custom_call.1} parent=1 // loop_header
      %s25 = sphi 0, %s29
      %p26 = scmp.ge.s32.totalorder %s25, 4
      %s32 = sphi 0, %s44
      %s33 = sphi 0, %s40
      %s34 = sphi 0, %s32
      %s35 = sphi 0, %s33
      %s36 = sphi 0, %s34
      %s37 = sphi 0, %s35
      %s49 = sphi 0, %s51
      %s52 = sphi 0, %s49
      %s53 = sphi 0, %s52
      %s69 = sphi 0, %s53
      %s73 = sphi 0, %s73
      %s75 = sphi 0, %s73
      %s76 = sphi 0, %s75
      %s90 = sphi 0, %s76
      %s94 = sphi 0, %s94
      %s96 = sphi 0, %s94
      %s97 = sphi 0, %s96
      %s111 = sphi 0, %s97
      %s115 = sphi 0, %s115
      %s117 = sphi 0, %s115
      %s118 = sphi 0, %s117
      %s132 = sphi 0, %s118
      %s140 = sphi 0, %s142
      %s143 = sphi 0, %s140
      %s144 = sphi 0, %s143
      %s160 = sphi 0, %s144
      %s168 = sphi 0, %s170
      %s171 = sphi 0, %s168
      %s172 = sphi 0, %s171
      %s188 = sphi 0, %s172
      %s192 = sphi 0, %s192
      %s194 = sphi 0, %s192
      %s195 = sphi 0, %s194
      %s209 = sphi 0, %s195
      %s213 = sphi 0, %s213
      %s215 = sphi 0, %s213
      %s216 = sphi 0, %s215
      %s230 = sphi 0, %s216
      %s234 = sphi 0, %s234
      %s236 = sphi 0, %s234
      %s237 = sphi 0, %s236
      %s251 = sphi 0, %s237
    $region4: #{tpu_custom_call.1} parent=1 // loop_header_branch
      %28 = sbr.rel (%p26) target = $region8
    $region5: #{tpu_custom_call.1} parent=1 // loop_body
      %s30 = ssub.s32 %s25, 1
      %s31 = ssub.s32 %s25, 2
      %s38 = sadd.s32 1, %s33
      %p39 = scmp.ge.s32.totalorder %s38, 1
      %s40 = scalar_select %p39, 0, %s38
      %s41 = sadd.s32 1, %s32
      %s42 = scalar_select %p39, %s41, %s32
      %p43 = scmp.ge.s32.totalorder %s42, 2
      %s44 = scalar_select %p43, 0, %s42
      %s45 = ssub.s32 %s32, %s44
      %s46 = ssub.s32 %s33, %s40
      %s47 = sor.u32 %s45, %s46
      %p48 = scmp.eq.s32.totalorder %s47, 0
      %s50 = sadd.s32 %s49, 1
      %s51 = scalar_select %p48, %s49, %s50
      %p54 = pneg %p48
      %p55 = scmp.eq.s32.totalorder %s25, 1
      %p56 = por %p54, %p55
      %p57 = scmp.ne.s32.totalorder %s49, %s52
      %p58 = scmp.eq.s32.totalorder %s25, 0
      %p59 = por %p57, %p58
      %p60 = scmp.ne.s32.totalorder %s49, %s52
      %p61 = scmp.eq.s32.totalorder %s30, 1
      %p62 = por %p60, %p61
      %p63 = scmp.ne.s32.totalorder %s52, %s53
      %p64 = scmp.eq.s32.totalorder %s30, 0
      %p65 = por %p63, %p64
      %p66 = scmp.ne.s32.totalorder %s52, %s53
      %p67 = scmp.eq.s32.totalorder %s31, 1
      %p68 = por %p66, %p67
      %p70 = scmp.ne.s32.totalorder %s53, %s69
      %p71 = scmp.eq.s32.totalorder %s31, 0
      %p72 = por %p70, %p71
      %s74 = sadd.s32 %s73, 1
      %p77 = scmp.eq.s32.totalorder %s25, 1
      %p78 = scmp.ne.s32.totalorder %s73, %s75
      %p79 = scmp.eq.s32.totalorder %s25, 0
      %p80 = por %p78, %p79
      %p81 = scmp.ne.s32.totalorder %s73, %s75
      %p82 = scmp.eq.s32.totalorder %s30, 1
      %p83 = por %p81, %p82
      %p84 = scmp.ne.s32.totalorder %s75, %s76
      %p85 = scmp.eq.s32.totalorder %s30, 0
      %p86 = por %p84, %p85
      %p87 = scmp.ne.s32.totalorder %s75, %s76
      %p88 = scmp.eq.s32.totalorder %s31, 1
      %p89 = por %p87, %p88
      %p91 = scmp.ne.s32.totalorder %s76, %s90
      %p92 = scmp.eq.s32.totalorder %s31, 0
      %p93 = por %p91, %p92
      %s95 = sadd.s32 %s94, 1
      %p98 = scmp.eq.s32.totalorder %s25, 1
      %p99 = scmp.ne.s32.totalorder %s94, %s96
      %p100 = scmp.eq.s32.totalorder %s25, 0
      %p101 = por %p99, %p100
      %p102 = scmp.ne.s32.totalorder %s94, %s96
      %p103 = scmp.eq.s32.totalorder %s30, 1
      %p104 = por %p102, %p103
      %p105 = scmp.ne.s32.totalorder %s96, %s97
      %p106 = scmp.eq.s32.totalorder %s30, 0
      %p107 = por %p105, %p106
      %p108 = scmp.ne.s32.totalorder %s96, %s97
      %p109 = scmp.eq.s32.totalorder %s31, 1
      %p110 = por %p108, %p109
      %p112 = scmp.ne.s32.totalorder %s97, %s111
      %p113 = scmp.eq.s32.totalorder %s31, 0
      %p114 = por %p112, %p113
      %s116 = sadd.s32 %s115, 1
      %p119 = scmp.eq.s32.totalorder %s25, 1
      %p120 = scmp.ne.s32.totalorder %s115, %s117
      %p121 = scmp.eq.s32.totalorder %s25, 0
      %p122 = por %p120, %p121
      %p123 = scmp.ne.s32.totalorder %s115, %s117
      %p124 = scmp.eq.s32.totalorder %s30, 1
      %p125 = por %p123, %p124
      %p126 = scmp.ne.s32.totalorder %s117, %s118
      %p127 = scmp.eq.s32.totalorder %s30, 0
      %p128 = por %p126, %p127
      %p129 = scmp.ne.s32.totalorder %s117, %s118
      %p130 = scmp.eq.s32.totalorder %s31, 1
      %p131 = por %p129, %p130
      %p133 = scmp.ne.s32.totalorder %s118, %s132
      %p134 = scmp.eq.s32.totalorder %s31, 0
      %p135 = por %p133, %p134
      %s136 = ssub.s32 %s32, %s44
      %s137 = ssub.s32 %s33, %s40
      %s138 = sor.u32 %s136, %s137
      %p139 = scmp.eq.s32.totalorder %s138, 0
      %s141 = sadd.s32 %s140, 1
      %s142 = scalar_select %p139, %s140, %s141
      %p145 = pneg %p139
      %p146 = scmp.eq.s32.totalorder %s25, 1
      %p147 = por %p145, %p146
      %p148 = scmp.ne.s32.totalorder %s140, %s143
      %p149 = scmp.eq.s32.totalorder %s25, 0
      %p150 = por %p148, %p149
      %p151 = scmp.ne.s32.totalorder %s140, %s143
      %p152 = scmp.eq.s32.totalorder %s30, 1
      %p153 = por %p151, %p152
      %p154 = scmp.ne.s32.totalorder %s143, %s144
      %p155 = scmp.eq.s32.totalorder %s30, 0
      %p156 = por %p154, %p155
      %p157 = scmp.ne.s32.totalorder %s143, %s144
      %p158 = scmp.eq.s32.totalorder %s31, 1
      %p159 = por %p157, %p158
      %p161 = scmp.ne.s32.totalorder %s144, %s160
      %p162 = scmp.eq.s32.totalorder %s31, 0
      %p163 = por %p161, %p162
      %s164 = ssub.s32 %s32, %s44
      %s165 = ssub.s32 %s33, %s40
      %s166 = sor.u32 %s164, %s165
      %p167 = scmp.eq.s32.totalorder %s166, 0
      %s169 = sadd.s32 %s168, 1
      %s170 = scalar_select %p167, %s168, %s169
      %p173 = pneg %p167
      %p174 = scmp.eq.s32.totalorder %s25, 1
      %p175 = por %p173, %p174
      %p176 = scmp.ne.s32.totalorder %s168, %s171
      %p177 = scmp.eq.s32.totalorder %s25, 0
      %p178 = por %p176, %p177
      %p179 = scmp.ne.s32.totalorder %s168, %s171
      %p180 = scmp.eq.s32.totalorder %s30, 1
      %p181 = por %p179, %p180
      %p182 = scmp.ne.s32.totalorder %s171, %s172
      %p183 = scmp.eq.s32.totalorder %s30, 0
      %p184 = por %p182, %p183
      %p185 = scmp.ne.s32.totalorder %s171, %s172
      %p186 = scmp.eq.s32.totalorder %s31, 1
      %p187 = por %p185, %p186
      %p189 = scmp.ne.s32.totalorder %s172, %s188
      %p190 = scmp.eq.s32.totalorder %s31, 0
      %p191 = por %p189, %p190
      %s193 = sadd.s32 %s192, 1
      %p196 = scmp.eq.s32.totalorder %s25, 1
      %p197 = scmp.ne.s32.totalorder %s192, %s194
      %p198 = scmp.eq.s32.totalorder %s25, 0
      %p199 = por %p197, %p198
      %p200 = scmp.ne.s32.totalorder %s192, %s194
      %p201 = scmp.eq.s32.totalorder %s30, 1
      %p202 = por %p200, %p201
      %p203 = scmp.ne.s32.totalorder %s194, %s195
      %p204 = scmp.eq.s32.totalorder %s30, 0
      %p205 = por %p203, %p204
      %p206 = scmp.ne.s32.totalorder %s194, %s195
      %p207 = scmp.eq.s32.totalorder %s31, 1
      %p208 = por %p206, %p207
      %p210 = scmp.ne.s32.totalorder %s195, %s209
      %p211 = scmp.eq.s32.totalorder %s31, 0
      %p212 = por %p210, %p211
      %s214 = sadd.s32 %s213, 1
      %p217 = scmp.eq.s32.totalorder %s25, 1
      %p218 = scmp.ne.s32.totalorder %s213, %s215
      %p219 = scmp.eq.s32.totalorder %s25, 0
      %p220 = por %p218, %p219
      %p221 = scmp.ne.s32.totalorder %s213, %s215
      %p222 = scmp.eq.s32.totalorder %s30, 1
      %p223 = por %p221, %p222
      %p224 = scmp.ne.s32.totalorder %s215, %s216
      %p225 = scmp.eq.s32.totalorder %s30, 0
      %p226 = por %p224, %p225
      %p227 = scmp.ne.s32.totalorder %s215, %s216
      %p228 = scmp.eq.s32.totalorder %s31, 1
      %p229 = por %p227, %p228
      %p231 = scmp.ne.s32.totalorder %s216, %s230
      %p232 = scmp.eq.s32.totalorder %s31, 0
      %p233 = por %p231, %p232
      %s235 = sadd.s32 %s234, 1
      %p238 = scmp.eq.s32.totalorder %s25, 1
      %p239 = scmp.ne.s32.totalorder %s234, %s236
      %p240 = scmp.eq.s32.totalorder %s25, 0
      %p241 = por %p239, %p240
      %p242 = scmp.ne.s32.totalorder %s234, %s236
      %p243 = scmp.eq.s32.totalorder %s30, 1
      %p244 = por %p242, %p243
      %p245 = scmp.ne.s32.totalorder %s236, %s237
      %p246 = scmp.eq.s32.totalorder %s30, 0
      %p247 = por %p245, %p246
      %p248 = scmp.ne.s32.totalorder %s236, %s237
      %p249 = scmp.eq.s32.totalorder %s31, 1
      %p250 = por %p248, %p249
      %p252 = scmp.ne.s32.totalorder %s237, %s251
      %p253 = scmp.eq.s32.totalorder %s31, 0
      %p254 = por %p252, %p253
      %p255 = scmp.le.s32.totalorder 1, %s25
      %p256 = scmp.lt.s32.totalorder %s25, 3
      %p257 = pnand %p255, %p256
      %p258 = pneg %p257
      // Predicated region
      $region9: #{tpu_custom_call.1} parent=5 // pred_check
        _
      $region10: #{tpu_custom_call.1} parent=5 // pred_check_branch
        %260 = sbr.rel (%p257) target = $region12
      $region11: #{tpu_custom_call.1} parent=5 // pred_region
        %s261 = ssub.s32 %s25, 1
        // Predicated region
        $region13: #{tpu_custom_call.1} parent=11 // pred_check
          %p262 = pneg %p86
        $region14: #{tpu_custom_call.1} parent=11 // pred_check_branch
          %264 = sbr.rel (%p262) target = $region16
        $region15: #{tpu_custom_call.1} parent=11 // pred_region
          _
        $region16: #{tpu_custom_call.1} parent=11 // pred_fallthru
          _
        // Predicated region
        $region17: #{tpu_custom_call.1} parent=11 // pred_check
          %p265 = pneg %p107
        $region18: #{tpu_custom_call.1} parent=11 // pred_check_branch
          %267 = sbr.rel (%p265) target = $region20
        $region19: #{tpu_custom_call.1} parent=11 // pred_region
          _
        $region20: #{tpu_custom_call.1} parent=11 // pred_fallthru
          _
        // Predicated region
        $region21: #{tpu_custom_call.1} parent=11 // pred_check
          %p268 = pneg %p128
        $region22: #{tpu_custom_call.1} parent=11 // pred_check_branch
          %270 = sbr.rel (%p268) target = $region24
        $region23: #{tpu_custom_call.1} parent=11 // pred_region
          _
        $region24: #{tpu_custom_call.1} parent=11 // pred_fallthru
          _
      $region12: #{tpu_custom_call.1} parent=5 // pred_fallthru
        _
      %p271 = scmp.lt.s32.totalorder %s25, 2
      // Predicated region
      $region25: #{tpu_custom_call.1} parent=5 // pred_check
        %p272 = pneg %p271
      $region26: #{tpu_custom_call.1} parent=5 // pred_check_branch
        %274 = sbr.rel (%p272) target = $region28
      $region27: #{tpu_custom_call.1} parent=5 // pred_region
        // Predicated region
        $region29: #{tpu_custom_call.1} parent=27 // pred_check
          %p275 = pneg %p59
        $region30: #{tpu_custom_call.1} parent=27 // pred_check_branch
          %277 = sbr.rel (%p275) target = $region32
        $region31: #{tpu_custom_call.1} parent=27 // pred_region
          %s278 = sand.u32 %s49, 1
          %s279 = scalar_lea.sflag [#allocation3], %s278
          %s280 = sand.u32 %s49, 1
          %s281 = smul.addr %s280, 512
          %s282 = scalar_lea.vmem [#allocation2], %s281
          %s283 = smul.u32 8, %s33
          %s285 = ssub.s32 8192, 8192
          %286 = vsyncadd %s279, %s285
          %s287 = smul.addr %s32, 64
          %s288 = sadd.s32 %s283, %s287
          %s289 = smul.addr %s288, 128
          %s290 = scalar_lea.hbm %s0, %s289
          %s291 = sshll.u32 %s282, 4
          %s292 = int_to_ptr.vmem [resolvable:$true] %s291
          %297 = dma.hbm_to_vmem [thread:$0]  %s290, 8192, %s292, %s279, 1024, 1024, 64
        $region32: #{tpu_custom_call.1} parent=27 // pred_fallthru
          _
      $region28: #{tpu_custom_call.1} parent=5 // pred_fallthru
        _
      %p298 = scmp.le.s32.totalorder 1, %s25
      %p299 = scmp.lt.s32.totalorder %s25, 3
      %p300 = pnand %p298, %p299
      %p301 = pneg %p300
      // Predicated region
      $region33: #{tpu_custom_call.1} parent=5 // pred_check
        _
      $region34: #{tpu_custom_call.1} parent=5 // pred_check_branch
        %303 = sbr.rel (%p300) target = $region36
      $region35: #{tpu_custom_call.1} parent=5 // pred_region
        %s304 = ssub.s32 %s25, 1
        %s305 = sand.u32 %s52, 1
        %s306 = scalar_lea.sflag [#allocation3], %s305
        %s307 = sand.u32 %s52, 1
        %s308 = smul.addr %s307, 512
        %s309 = scalar_lea.vmem [#allocation2], %s308
        // Predicated region
        $region37: #{tpu_custom_call.1} parent=35 // pred_check
          %p310 = pneg %p65
        $region38: #{tpu_custom_call.1} parent=35 // pred_check_branch
          %312 = sbr.rel (%p310) target = $region40
        $region39: #{tpu_custom_call.1} parent=35 // pred_region
          %313 = dma.done %s306, 8192
        $region40: #{tpu_custom_call.1} parent=35 // pred_fallthru
          _
        %s314 = sand.u32 %s52, 1
        %s315 = scalar_lea.sflag [#allocation3], %s314
        %s316 = sand.u32 %s52, 1
        %s317 = smul.addr %s316, 512
        %s318 = scalar_lea.vmem [#allocation2], %s317
        %p319 = pneg %p65
        %p320 = pneg %p62
        %p321 = pneg %p86
        %p322 = pneg %p83
        %p323 = pneg %p107
        %p324 = pneg %p104
        %p325 = pneg %p128
        %p326 = pneg %p125
        %p327 = pneg %p156
        %p328 = pneg %p153
        %s329 = sand.u32 %s143, 1
        %s330 = scalar_lea.sflag [#allocation4], %s329
        %s331 = sand.u32 %s143, 1
        %s332 = smul.addr %s331, 512
        %s333 = scalar_lea.vmem [#allocation5], %s332
        %p334 = pneg %p184
        %p335 = pneg %p181
        %s336 = sand.u32 %s30, 1
        %s337 = scalar_lea.sflag [#allocation7], %s336
        %s338 = sand.u32 %s171, 1
        %s339 = smul.addr %s338, 8
        %s340 = scalar_lea.vmem [#allocation6], %s339
        %p341 = pneg %p205
        %p342 = pneg %p202
        %p343 = pneg %p226
        %p344 = pneg %p223
        %p345 = pneg %p247
        %p346 = pneg %p244
        %s347 = smul.u32 8, %s35
        %s348 = smul.u32 8, %s35
        %s349 = smul.u32 8, %s35
        %p350 = scmp.eq.s32.totalorder %s34, 0
        %p351 = scmp.eq.s32.totalorder %s35, 0
        %p352 = pnand %p350, %p351
        %p353 = pneg %p352
        // Predicated region
        $region41: #{tpu_custom_call.1} parent=35 // pred_check
          _
        $region42: #{tpu_custom_call.1} parent=35 // pred_check_branch
          %355 = sbr.rel (%p352) target = $region44
        $region43: #{tpu_custom_call.1} parent=35 // pred_region
          %356 = vst [vmem:[#allocation8] sm:$0xff] 0.0
          %357 = vst [vmem:[#allocation9] sm:$0xff] 0.0
          %vm358 = vcmask 7168
          %359 = vst.msk [vmem:[%s8] sm:$0xff] %vm358, 0.0
          %360 = vst.msk [vmem:[%s8 + $0x8] sm:$0xff] %vm358, 0.0
          %361 = vst.msk [vmem:[%s8 + $0x10] sm:$0xff] %vm358, 0.0
          %362 = vst.msk [vmem:[%s8 + $0x18] sm:$0xff] %vm358, 0.0
          %363 = vst.msk [vmem:[%s8 + $0x20] sm:$0xff] %vm358, 0.0
          %364 = vst.msk [vmem:[%s8 + $0x28] sm:$0xff] %vm358, 0.0
          %365 = vst.msk [vmem:[%s8 + $0x30] sm:$0xff] %vm358, 0.0
          %366 = vst.msk [vmem:[%s8 + $0x38] sm:$0xff] %vm358, 0.0
          %367 = vst.msk [vmem:[%s8 + $0x40] sm:$0xff] %vm358, 0.0
          %368 = vst.msk [vmem:[%s8 + $0x48] sm:$0xff] %vm358, 0.0
          %369 = vst.msk [vmem:[%s8 + $0x50] sm:$0xff] %vm358, 0.0
          %370 = vst.msk [vmem:[%s8 + $0x58] sm:$0xff] %vm358, 0.0
          %371 = vst.msk [vmem:[%s8 + $0x60] sm:$0xff] %vm358, 0.0
          %372 = vst.msk [vmem:[%s8 + $0x68] sm:$0xff] %vm358, 0.0
          %373 = vst.msk [vmem:[%s8 + $0x70] sm:$0xff] %vm358, 0.0
          %374 = vst.msk [vmem:[%s8 + $0x78] sm:$0xff] %vm358, 0.0
        $region44: #{tpu_custom_call.1} parent=35 // pred_fallthru
          _
        %v375 = vld [vmem:[%s309] sm:$0xff]
        %v376 = vld [vmem:[%s309 + $0x8] sm:$0xff]
        %v377 = vld [vmem:[%s309 + $0x10] sm:$0xff]
        %v378 = vld [vmem:[%s309 + $0x18] sm:$0xff]
        %v379 = vld [vmem:[%s309 + $0x20] sm:$0xff]
        %v380 = vld [vmem:[%s309 + $0x28] sm:$0xff]
        %v381 = vld [vmem:[%s309 + $0x30] sm:$0xff]
        %v382 = vld [vmem:[%s309 + $0x38] sm:$0xff]
        %v383 = vld [vmem:[%s309 + $0x40] sm:$0xff]
        %v384 = vld [vmem:[%s309 + $0x48] sm:$0xff]
        %v385 = vld [vmem:[%s309 + $0x50] sm:$0xff]
        %v386 = vld [vmem:[%s309 + $0x58] sm:$0xff]
        %v387 = vld [vmem:[%s309 + $0x60] sm:$0xff]
        %v388 = vld [vmem:[%s309 + $0x68] sm:$0xff]
        %v389 = vld [vmem:[%s309 + $0x70] sm:$0xff]
        %v390 = vld [vmem:[%s309 + $0x78] sm:$0xff]
        %v391 = vld [vmem:[%s309 + $0x80] sm:$0xff]
        %v392 = vld [vmem:[%s309 + $0x88] sm:$0xff]
        %v393 = vld [vmem:[%s309 + $0x90] sm:$0xff]
        %v394 = vld [vmem:[%s309 + $0x98] sm:$0xff]
        %v395 = vld [vmem:[%s309 + $0xa0] sm:$0xff]
        %v396 = vld [vmem:[%s309 + $0xa8] sm:$0xff]
        %v397 = vld [vmem:[%s309 + $0xb0] sm:$0xff]
        %v398 = vld [vmem:[%s309 + $0xb8] sm:$0xff]
        %v399 = vld [vmem:[%s309 + $0xc0] sm:$0xff]
        %v400 = vld [vmem:[%s309 + $0xc8] sm:$0xff]
        %v401 = vld [vmem:[%s309 + $0xd0] sm:$0xff]
        %v402 = vld [vmem:[%s309 + $0xd8] sm:$0xff]
        %v403 = vld [vmem:[%s309 + $0xe0] sm:$0xff]
        %v404 = vld [vmem:[%s309 + $0xe8] sm:$0xff]
        %v405 = vld [vmem:[%s309 + $0xf0] sm:$0xff]
        %v406 = vld [vmem:[%s309 + $0xf8] sm:$0xff]
        %v407 = vld [vmem:[%s309 + $0x100] sm:$0xff]
        %v408 = vld [vmem:[%s309 + $0x108] sm:$0xff]
        %v409 = vld [vmem:[%s309 + $0x110] sm:$0xff]
        %v410 = vld [vmem:[%s309 + $0x118] sm:$0xff]
        %v411 = vld [vmem:[%s309 + $0x120] sm:$0xff]
        %v412 = vld [vmem:[%s309 + $0x128] sm:$0xff]
        %v413 = vld [vmem:[%s309 + $0x130] sm:$0xff]
        %v414 = vld [vmem:[%s309 + $0x138] sm:$0xff]
        %v415 = vld [vmem:[%s309 + $0x140] sm:$0xff]
        %v416 = vld [vmem:[%s309 + $0x148] sm:$0xff]
        %v417 = vld [vmem:[%s309 + $0x150] sm:$0xff]
        %v418 = vld [vmem:[%s309 + $0x158] sm:$0xff]
        %v419 = vld [vmem:[%s309 + $0x160] sm:$0xff]
        %v420 = vld [vmem:[%s309 + $0x168] sm:$0xff]
        %v421 = vld [vmem:[%s309 + $0x170] sm:$0xff]
        %v422 = vld [vmem:[%s309 + $0x178] sm:$0xff]
        %v423 = vld [vmem:[%s309 + $0x180] sm:$0xff]
        %v424 = vld [vmem:[%s309 + $0x188] sm:$0xff]
        %v425 = vld [vmem:[%s309 + $0x190] sm:$0xff]
        %v426 = vld [vmem:[%s309 + $0x198] sm:$0xff]
        %v427 = vld [vmem:[%s309 + $0x1a0] sm:$0xff]
        %v428 = vld [vmem:[%s309 + $0x1a8] sm:$0xff]
        %v429 = vld [vmem:[%s309 + $0x1b0] sm:$0xff]
        %v430 = vld [vmem:[%s309 + $0x1b8] sm:$0xff]
        %v431 = vld [vmem:[%s309 + $0x1c0] sm:$0xff]
        %v432 = vld [vmem:[%s309 + $0x1c8] sm:$0xff]
        %v433 = vld [vmem:[%s309 + $0x1d0] sm:$0xff]
        %v434 = vld [vmem:[%s309 + $0x1d8] sm:$0xff]
        %v435 = vld [vmem:[%s309 + $0x1e0] sm:$0xff]
        %v436 = vld [vmem:[%s309 + $0x1e8] sm:$0xff]
        %v437 = vld [vmem:[%s309 + $0x1f0] sm:$0xff]
        %v438 = vld [vmem:[%s309 + $0x1f8] sm:$0xff]
        %v439 = vld [vmem:[%s1] sm:$0xff]
        %v440 = vld [vmem:[%s1 + $0x8] sm:$0xff]
        %v441 = vld [vmem:[%s1 + $0x10] sm:$0xff]
        %v442 = vld [vmem:[%s1 + $0x18] sm:$0xff]
        %v443 = vld [vmem:[%s1 + $0x20] sm:$0xff]
        %v444 = vld [vmem:[%s1 + $0x28] sm:$0xff]
        %v445 = vld [vmem:[%s1 + $0x30] sm:$0xff]
        %v446 = vld [vmem:[%s1 + $0x38] sm:$0xff]
        %v447 = vld [vmem:[%s1 + $0x40] sm:$0xff]
        %v448 = vld [vmem:[%s1 + $0x48] sm:$0xff]
        %v449 = vld [vmem:[%s1 + $0x50] sm:$0xff]
        %v450 = vld [vmem:[%s1 + $0x58] sm:$0xff]
        %v451 = vld [vmem:[%s1 + $0x60] sm:$0xff]
        %v452 = vld [vmem:[%s1 + $0x68] sm:$0xff]
        %v453 = vld [vmem:[%s1 + $0x70] sm:$0xff]
        %v454 = vld [vmem:[%s1 + $0x78] sm:$0xff]
        %v455 = vld [vmem:[%s3] sm:$0xff]
        %v456 = vld [vmem:[%s3 + $0x8] sm:$0xff]
        %v457 = vld [vmem:[%s3 + $0x10] sm:$0xff]
        %v458 = vld [vmem:[%s3 + $0x18] sm:$0xff]
        %v459 = vld [vmem:[%s3 + $0x20] sm:$0xff]
        %v460 = vld [vmem:[%s3 + $0x28] sm:$0xff]
        %v461 = vld [vmem:[%s3 + $0x30] sm:$0xff]
        %v462 = vld [vmem:[%s3 + $0x38] sm:$0xff]
        %v463 = vld [vmem:[%s3 + $0x40] sm:$0xff]
        %v464 = vld [vmem:[%s3 + $0x48] sm:$0xff]
        %v465 = vld [vmem:[%s3 + $0x50] sm:$0xff]
        %v466 = vld [vmem:[%s3 + $0x58] sm:$0xff]
        %v467 = vld [vmem:[%s3 + $0x60] sm:$0xff]
        %v468 = vld [vmem:[%s3 + $0x68] sm:$0xff]
        %v469 = vld [vmem:[%s3 + $0x70] sm:$0xff]
        %v470 = vld [vmem:[%s3 + $0x78] sm:$0xff]
        %472 = vset.pattern.permute.xlu0 0
        %473 = vperm.xlu0 %472, %v455
        %v474 = vpop.permute.xlu0 %473
        %477 = vset.pattern.permute.xlu0 0
        %478 = vperm.xlu0 %477, %v456
        %v479 = vpop.permute.xlu0 %478
        %482 = vset.pattern.permute.xlu0 0
        %483 = vperm.xlu0 %482, %v457
        %v484 = vpop.permute.xlu0 %483
        %487 = vset.pattern.permute.xlu0 0
        %488 = vperm.xlu0 %487, %v458
        %v489 = vpop.permute.xlu0 %488
        %492 = vset.pattern.permute.xlu0 0
        %493 = vperm.xlu0 %492, %v459
        %v494 = vpop.permute.xlu0 %493
        %497 = vset.pattern.permute.xlu0 0
        %498 = vperm.xlu0 %497, %v460
        %v499 = vpop.permute.xlu0 %498
        %502 = vset.pattern.permute.xlu0 0
        %503 = vperm.xlu0 %502, %v461
        %v504 = vpop.permute.xlu0 %503
        %507 = vset.pattern.permute.xlu0 0
        %508 = vperm.xlu0 %507, %v462
        %v509 = vpop.permute.xlu0 %508
        %512 = vset.pattern.permute.xlu0 0
        %513 = vperm.xlu0 %512, %v463
        %v514 = vpop.permute.xlu0 %513
        %517 = vset.pattern.permute.xlu0 0
        %518 = vperm.xlu0 %517, %v464
        %v519 = vpop.permute.xlu0 %518
        %522 = vset.pattern.permute.xlu0 0
        %523 = vperm.xlu0 %522, %v465
        %v524 = vpop.permute.xlu0 %523
        %527 = vset.pattern.permute.xlu0 0
        %528 = vperm.xlu0 %527, %v466
        %v529 = vpop.permute.xlu0 %528
        %532 = vset.pattern.permute.xlu0 0
        %533 = vperm.xlu0 %532, %v467
        %v534 = vpop.permute.xlu0 %533
        %537 = vset.pattern.permute.xlu0 0
        %538 = vperm.xlu0 %537, %v468
        %v539 = vpop.permute.xlu0 %538
        %542 = vset.pattern.permute.xlu0 0
        %543 = vperm.xlu0 %542, %v469
        %v544 = vpop.permute.xlu0 %543
        %547 = vset.pattern.permute.xlu0 0
        %548 = vperm.xlu0 %547, %v470
        %v549 = vpop.permute.xlu0 %548
        %vm551 = vcmask 523264
        %v553 = vsel %vm551, %v439, 0
        %v556 = vsel %vm551, %v440, 0
        %v559 = vsel %vm551, %v441, 0
        %v562 = vsel %vm551, %v442, 0
        %v565 = vsel %vm551, %v443, 0
        %v568 = vsel %vm551, %v444, 0
        %v571 = vsel %vm551, %v445, 0
        %v574 = vsel %vm551, %v446, 0
        %v577 = vsel %vm551, %v447, 0
        %v580 = vsel %vm551, %v448, 0
        %v583 = vsel %vm551, %v449, 0
        %v586 = vsel %vm551, %v450, 0
        %v589 = vsel %vm551, %v451, 0
        %v592 = vsel %vm551, %v452, 0
        %v595 = vsel %vm551, %v453, 0
        %v598 = vsel %vm551, %v454, 0
        %600 = vmatprep.subr.mxu0 0.0
        %601 = vmatpush1.msra.mxu0 0.0
        %602 = vmatprep.subr.mxu0 0.0
        %603 = vmatpush1.msra.mxu0 0.0
        %604 = vmatprep.subr.mxu0 0.0
        %605 = vmatpush1.msra.mxu0 0.0
        %606 = vmatprep.subr.mxu0 0.0
        %607 = vmatpush1.msra.mxu0 0.0
        %608 = vmatprep.subr.mxu0 0.0
        %609 = vmatpush1.msra.mxu0 0.0
        %610 = vmatprep.subr.mxu0 0.0
        %611 = vmatpush1.msra.mxu0 0.0
        %612 = vmatprep.subr.mxu0 0.0
        %613 = vmatpush1.msra.mxu0 0.0
        %614 = vmatprep.subr.mxu0 0.0
        %615 = vmatpush1.msra.mxu0 0.0
        %616 = vmatprep.subr.mxu0 %v432
        %617 = vmatpush1.msra.mxu0 %v431
        %618 = vmatprep.subr.mxu0 %v424
        %619 = vmatpush1.msra.mxu0 %v423
        %620 = vmatprep.subr.mxu0 %v416
        %621 = vmatpush1.msra.mxu0 %v415
        %622 = vmatprep.subr.mxu0 %v408
        %623 = vmatpush1.msra.mxu0 %v407
        %624 = vmatprep.subr.mxu0 %v400
        %625 = vmatpush1.msra.mxu0 %v399
        %626 = vmatprep.subr.mxu0 %v392
        %627 = vmatpush1.msra.mxu0 %v391
        %628 = vmatprep.subr.mxu0 %v384
        %629 = vmatpush1.msra.mxu0 %v383
        %630 = vmatprep.subr.mxu0 %v376
        %631 = vmatpush1.msra.mxu0 %v375
        %632 = vmatprep.subr.mxu0 0.0
        %633 = vmatpush2.msra.mxu0 0.0
        %634 = vmatprep.subr.mxu0 0.0
        %635 = vmatpush2.msra.mxu0 0.0
        %636 = vmatprep.subr.mxu0 0.0
        %637 = vmatpush2.msra.mxu0 0.0
        %638 = vmatprep.subr.mxu0 0.0
        %639 = vmatpush2.msra.mxu0 0.0
        %640 = vmatprep.subr.mxu0 0.0
        %641 = vmatpush2.msra.mxu0 0.0
        %642 = vmatprep.subr.mxu0 0.0
        %643 = vmatpush2.msra.mxu0 0.0
        %644 = vmatprep.subr.mxu0 0.0
        %645 = vmatpush2.msra.mxu0 0.0
        %646 = vmatprep.subr.mxu0 0.0
        %647 = vmatpush2.msra.mxu0 0.0
        %648 = vmatprep.subr.mxu0 0.0
        %649 = vmatpush2.msra.mxu0 0.0
        %650 = vmatprep.subr.mxu0 0.0
        %651 = vmatpush2.msra.mxu0 0.0
        %652 = vmatprep.subr.mxu0 0.0
        %653 = vmatpush2.msra.mxu0 0.0
        %654 = vmatprep.subr.mxu0 0.0
        %655 = vmatpush2.msra.mxu0 0.0
        %656 = vmatprep.subr.mxu0 0.0
        %657 = vmatpush2.msra.mxu0 0.0
        %658 = vmatprep.subr.mxu0 0.0
        %659 = vmatpush2.msra.mxu0 0.0
        %660 = vmatprep.subr.mxu0 0.0
        %661 = vmatpush2.msra.mxu0 0.0
        %662 = vmatprep.subr.mxu0 0.0
        %663 = vmatpush2.msra.mxu0 0.0
        %664 = vmatprep.mubr.f32.mxu0 0.0
        %665 = vmatmul.mubr.f32.gmra.mxu0 %v553
        %v666 = vpop.f32.mrf.mxu0
        %v667 = vadd.f32 %v474, %v666
        %v668 = vpop.f32.mrf.mxu0
        %v669 = vadd.f32 %v474, %v668
        %670 = vmatprep.mubr.f32.mxu0 0.0
        %671 = vmatmul.mubr.f32.gmra.mxu0 %v556
        %v672 = vpop.f32.mrf.mxu0
        %v673 = vadd.f32 %v479, %v672
        %v674 = vpop.f32.mrf.mxu0
        %v675 = vadd.f32 %v479, %v674
        %676 = vmatprep.mubr.f32.mxu0 0.0
        %677 = vmatmul.mubr.f32.gmra.mxu0 %v559
        %v678 = vpop.f32.mrf.mxu0
        %v679 = vadd.f32 %v484, %v678
        %v680 = vpop.f32.mrf.mxu0
        %v681 = vadd.f32 %v484, %v680
        %682 = vmatprep.mubr.f32.mxu0 0.0
        %683 = vmatmul.mubr.f32.gmra.mxu0 %v562
        %v684 = vpop.f32.mrf.mxu0
        %v685 = vadd.f32 %v489, %v684
        %v686 = vpop.f32.mrf.mxu0
        %v687 = vadd.f32 %v489, %v686
        %688 = vmatprep.mubr.f32.mxu0 0.0
        %689 = vmatmul.mubr.f32.gmra.mxu0 %v565
        %v690 = vpop.f32.mrf.mxu0
        %v691 = vadd.f32 %v494, %v690
        %v692 = vpop.f32.mrf.mxu0
        %v693 = vadd.f32 %v494, %v692
        %694 = vmatprep.mubr.f32.mxu0 0.0
        %695 = vmatmul.mubr.f32.gmra.mxu0 %v568
        %v696 = vpop.f32.mrf.mxu0
        %v697 = vadd.f32 %v499, %v696
        %v698 = vpop.f32.mrf.mxu0
        %v699 = vadd.f32 %v499, %v698
        %700 = vmatprep.mubr.f32.mxu0 0.0
        %701 = vmatmul.mubr.f32.gmra.mxu0 %v571
        %v702 = vpop.f32.mrf.mxu0
        %v703 = vadd.f32 %v504, %v702
        %v704 = vpop.f32.mrf.mxu0
        %v705 = vadd.f32 %v504, %v704
        %706 = vmatprep.mubr.f32.mxu0 0.0
        %707 = vmatmul.mubr.f32.gmra.mxu0 %v574
        %v708 = vpop.f32.mrf.mxu0
        %v709 = vadd.f32 %v509, %v708
        %v710 = vpop.f32.mrf.mxu0
        %v711 = vadd.f32 %v509, %v710
        %712 = vmatprep.mubr.f32.mxu0 0.0
        %713 = vmatmul.mubr.f32.gmra.mxu0 %v577
        %v714 = vpop.f32.mrf.mxu0
        %v715 = vadd.f32 %v514, %v714
        %v716 = vpop.f32.mrf.mxu0
        %v717 = vadd.f32 %v514, %v716
        %718 = vmatprep.mubr.f32.mxu0 0.0
        %719 = vmatmul.mubr.f32.gmra.mxu0 %v580
        %v720 = vpop.f32.mrf.mxu0
        %v721 = vadd.f32 %v519, %v720
        %v722 = vpop.f32.mrf.mxu0
        %v723 = vadd.f32 %v519, %v722
        %724 = vmatprep.mubr.f32.mxu0 0.0
        %725 = vmatmul.mubr.f32.gmra.mxu0 %v583
        %v726 = vpop.f32.mrf.mxu0
        %v727 = vadd.f32 %v524, %v726
        %v728 = vpop.f32.mrf.mxu0
        %v729 = vadd.f32 %v524, %v728
        %730 = vmatprep.mubr.f32.mxu0 0.0
        %731 = vmatmul.mubr.f32.gmra.mxu0 %v586
        %v732 = vpop.f32.mrf.mxu0
        %v733 = vadd.f32 %v529, %v732
        %v734 = vpop.f32.mrf.mxu0
        %v735 = vadd.f32 %v529, %v734
        %736 = vmatprep.mubr.f32.mxu0 0.0
        %737 = vmatmul.mubr.f32.gmra.mxu0 %v589
        %v738 = vpop.f32.mrf.mxu0
        %v739 = vadd.f32 %v534, %v738
        %v740 = vpop.f32.mrf.mxu0
        %v741 = vadd.f32 %v534, %v740
        %742 = vmatprep.mubr.f32.mxu0 0.0
        %743 = vmatmul.mubr.f32.gmra.mxu0 %v592
        %v744 = vpop.f32.mrf.mxu0
        %v745 = vadd.f32 %v539, %v744
        %v746 = vpop.f32.mrf.mxu0
        %v747 = vadd.f32 %v539, %v746
        %748 = vmatprep.mubr.f32.mxu0 0.0
        %749 = vmatmul.mubr.f32.gmra.mxu0 %v595
        %v750 = vpop.f32.mrf.mxu0
        %v751 = vadd.f32 %v544, %v750
        %v752 = vpop.f32.mrf.mxu0
        %v753 = vadd.f32 %v544, %v752
        %754 = vmatprep.mubr.f32.mxu0 0.0
        %755 = vmatmul.mubr.f32.gmra.mxu0 %v598
        %v756 = vpop.f32.mrf.mxu0
        %v757 = vadd.f32 %v549, %v756
        %v758 = vpop.f32.mrf.mxu0
        %v759 = vadd.f32 %v549, %v758
        %760 = vdwg.mxu0
        %761 = vmatprep.subr.mxu0 0.0
        %762 = vmatpush1.msra.mxu0 0.0
        %763 = vmatprep.subr.mxu0 0.0
        %764 = vmatpush1.msra.mxu0 0.0
        %765 = vmatprep.subr.mxu0 0.0
        %766 = vmatpush1.msra.mxu0 0.0
        %767 = vmatprep.subr.mxu0 0.0
        %768 = vmatpush1.msra.mxu0 0.0
        %769 = vmatprep.subr.mxu0 0.0
        %770 = vmatpush1.msra.mxu0 0.0
        %771 = vmatprep.subr.mxu0 0.0
        %772 = vmatpush1.msra.mxu0 0.0
        %773 = vmatprep.subr.mxu0 0.0
        %774 = vmatpush1.msra.mxu0 0.0
        %775 = vmatprep.subr.mxu0 0.0
        %776 = vmatpush1.msra.mxu0 0.0
        %777 = vmatprep.subr.mxu0 %v434
        %778 = vmatpush1.msra.mxu0 %v433
        %779 = vmatprep.subr.mxu0 %v426
        %780 = vmatpush1.msra.mxu0 %v425
        %781 = vmatprep.subr.mxu0 %v418
        %782 = vmatpush1.msra.mxu0 %v417
        %783 = vmatprep.subr.mxu0 %v410
        %784 = vmatpush1.msra.mxu0 %v409
        %785 = vmatprep.subr.mxu0 %v402
        %786 = vmatpush1.msra.mxu0 %v401
        %787 = vmatprep.subr.mxu0 %v394
        %788 = vmatpush1.msra.mxu0 %v393
        %789 = vmatprep.subr.mxu0 %v386
        %790 = vmatpush1.msra.mxu0 %v385
        %791 = vmatprep.subr.mxu0 %v378
        %792 = vmatpush1.msra.mxu0 %v377
        %793 = vmatprep.subr.mxu0 0.0
        %794 = vmatpush2.msra.mxu0 0.0
        %795 = vmatprep.subr.mxu0 0.0
        %796 = vmatpush2.msra.mxu0 0.0
        %797 = vmatprep.subr.mxu0 0.0
        %798 = vmatpush2.msra.mxu0 0.0
        %799 = vmatprep.subr.mxu0 0.0
        %800 = vmatpush2.msra.mxu0 0.0
        %801 = vmatprep.subr.mxu0 0.0
        %802 = vmatpush2.msra.mxu0 0.0
        %803 = vmatprep.subr.mxu0 0.0
        %804 = vmatpush2.msra.mxu0 0.0
        %805 = vmatprep.subr.mxu0 0.0
        %806 = vmatpush2.msra.mxu0 0.0
        %807 = vmatprep.subr.mxu0 0.0
        %808 = vmatpush2.msra.mxu0 0.0
        %809 = vmatprep.subr.mxu0 0.0
        %810 = vmatpush2.msra.mxu0 0.0
        %811 = vmatprep.subr.mxu0 0.0
        %812 = vmatpush2.msra.mxu0 0.0
        %813 = vmatprep.subr.mxu0 0.0
        %814 = vmatpush2.msra.mxu0 0.0
        %815 = vmatprep.subr.mxu0 0.0
        %816 = vmatpush2.msra.mxu0 0.0
        %817 = vmatprep.subr.mxu0 0.0
        %818 = vmatpush2.msra.mxu0 0.0
        %819 = vmatprep.subr.mxu0 0.0
        %820 = vmatpush2.msra.mxu0 0.0
        %821 = vmatprep.subr.mxu0 0.0
        %822 = vmatpush2.msra.mxu0 0.0
        %823 = vmatprep.subr.mxu0 0.0
        %824 = vmatpush2.msra.mxu0 0.0
        %825 = vmatprep.mubr.f32.mxu0 0.0
        %826 = vmatmul.mubr.f32.gmra.mxu0 %v553
        %v827 = vpop.f32.mrf.mxu0
        %v828 = vadd.f32 %v474, %v827
        %v829 = vpop.f32.mrf.mxu0
        %v830 = vadd.f32 %v474, %v829
        %831 = vmatprep.mubr.f32.mxu0 0.0
        %832 = vmatmul.mubr.f32.gmra.mxu0 %v556
        %v833 = vpop.f32.mrf.mxu0
        %v834 = vadd.f32 %v479, %v833
        %v835 = vpop.f32.mrf.mxu0
        %v836 = vadd.f32 %v479, %v835
        %837 = vmatprep.mubr.f32.mxu0 0.0
        %838 = vmatmul.mubr.f32.gmra.mxu0 %v559
        %v839 = vpop.f32.mrf.mxu0
        %v840 = vadd.f32 %v484, %v839
        %v841 = vpop.f32.mrf.mxu0
        %v842 = vadd.f32 %v484, %v841
        %843 = vmatprep.mubr.f32.mxu0 0.0
        %844 = vmatmul.mubr.f32.gmra.mxu0 %v562
        %v845 = vpop.f32.mrf.mxu0
        %v846 = vadd.f32 %v489, %v845
        %v847 = vpop.f32.mrf.mxu0
        %v848 = vadd.f32 %v489, %v847
        %849 = vmatprep.mubr.f32.mxu0 0.0
        %850 = vmatmul.mubr.f32.gmra.mxu0 %v565
        %v851 = vpop.f32.mrf.mxu0
        %v852 = vadd.f32 %v494, %v851
        %v853 = vpop.f32.mrf.mxu0
        %v854 = vadd.f32 %v494, %v853
        %855 = vmatprep.mubr.f32.mxu0 0.0
        %856 = vmatmul.mubr.f32.gmra.mxu0 %v568
        %v857 = vpop.f32.mrf.mxu0
        %v858 = vadd.f32 %v499, %v857
        %v859 = vpop.f32.mrf.mxu0
        %v860 = vadd.f32 %v499, %v859
        %861 = vmatprep.mubr.f32.mxu0 0.0
        %862 = vmatmul.mubr.f32.gmra.mxu0 %v571
        %v863 = vpop.f32.mrf.mxu0
        %v864 = vadd.f32 %v504, %v863
        %v865 = vpop.f32.mrf.mxu0
        %v866 = vadd.f32 %v504, %v865
        %867 = vmatprep.mubr.f32.mxu0 0.0
        %868 = vmatmul.mubr.f32.gmra.mxu0 %v574
        %v869 = vpop.f32.mrf.mxu0
        %v870 = vadd.f32 %v509, %v869
        %v871 = vpop.f32.mrf.mxu0
        %v872 = vadd.f32 %v509, %v871
        %873 = vmatprep.mubr.f32.mxu0 0.0
        %874 = vmatmul.mubr.f32.gmra.mxu0 %v577
        %v875 = vpop.f32.mrf.mxu0
        %v876 = vadd.f32 %v514, %v875
        %v877 = vpop.f32.mrf.mxu0
        %v878 = vadd.f32 %v514, %v877
        %879 = vmatprep.mubr.f32.mxu0 0.0
        %880 = vmatmul.mubr.f32.gmra.mxu0 %v580
        %v881 = vpop.f32.mrf.mxu0
        %v882 = vadd.f32 %v519, %v881
        %v883 = vpop.f32.mrf.mxu0
        %v884 = vadd.f32 %v519, %v883
        %885 = vmatprep.mubr.f32.mxu0 0.0
        %886 = vmatmul.mubr.f32.gmra.mxu0 %v583
        %v887 = vpop.f32.mrf.mxu0
        %v888 = vadd.f32 %v524, %v887
        %v889 = vpop.f32.mrf.mxu0
        %v890 = vadd.f32 %v524, %v889
        %891 = vmatprep.mubr.f32.mxu0 0.0
        %892 = vmatmul.mubr.f32.gmra.mxu0 %v586
        %v893 = vpop.f32.mrf.mxu0
        %v894 = vadd.f32 %v529, %v893
        %v895 = vpop.f32.mrf.mxu0
        %v896 = vadd.f32 %v529, %v895
        %897 = vmatprep.mubr.f32.mxu0 0.0
        %898 = vmatmul.mubr.f32.gmra.mxu0 %v589
        %v899 = vpop.f32.mrf.mxu0
        %v900 = vadd.f32 %v534, %v899
        %v901 = vpop.f32.mrf.mxu0
        %v902 = vadd.f32 %v534, %v901
        %903 = vmatprep.mubr.f32.mxu0 0.0
        %904 = vmatmul.mubr.f32.gmra.mxu0 %v592
        %v905 = vpop.f32.mrf.mxu0
        %v906 = vadd.f32 %v539, %v905
        %v907 = vpop.f32.mrf.mxu0
        %v908 = vadd.f32 %v539, %v907
        %909 = vmatprep.mubr.f32.mxu0 0.0
        %910 = vmatmul.mubr.f32.gmra.mxu0 %v595
        %v911 = vpop.f32.mrf.mxu0
        %v912 = vadd.f32 %v544, %v911
        %v913 = vpop.f32.mrf.mxu0
        %v914 = vadd.f32 %v544, %v913
        %915 = vmatprep.mubr.f32.mxu0 0.0
        %916 = vmatmul.mubr.f32.gmra.mxu0 %v598
        %v917 = vpop.f32.mrf.mxu0
        %v918 = vadd.f32 %v549, %v917
        %v919 = vpop.f32.mrf.mxu0
        %v920 = vadd.f32 %v549, %v919
        %921 = vdwg.mxu0
        %922 = vmatprep.subr.mxu0 0.0
        %923 = vmatpush1.msra.mxu0 0.0
        %924 = vmatprep.subr.mxu0 0.0
        %925 = vmatpush1.msra.mxu0 0.0
        %926 = vmatprep.subr.mxu0 0.0
        %927 = vmatpush1.msra.mxu0 0.0
        %928 = vmatprep.subr.mxu0 0.0
        %929 = vmatpush1.msra.mxu0 0.0
        %930 = vmatprep.subr.mxu0 0.0
        %931 = vmatpush1.msra.mxu0 0.0
        %932 = vmatprep.subr.mxu0 0.0
        %933 = vmatpush1.msra.mxu0 0.0
        %934 = vmatprep.subr.mxu0 0.0
        %935 = vmatpush1.msra.mxu0 0.0
        %936 = vmatprep.subr.mxu0 0.0
        %937 = vmatpush1.msra.mxu0 0.0
        %938 = vmatprep.subr.mxu0 %v436
        %939 = vmatpush1.msra.mxu0 %v435
        %940 = vmatprep.subr.mxu0 %v428
        %941 = vmatpush1.msra.mxu0 %v427
        %942 = vmatprep.subr.mxu0 %v420
        %943 = vmatpush1.msra.mxu0 %v419
        %944 = vmatprep.subr.mxu0 %v412
        %945 = vmatpush1.msra.mxu0 %v411
        %946 = vmatprep.subr.mxu0 %v404
        %947 = vmatpush1.msra.mxu0 %v403
        %948 = vmatprep.subr.mxu0 %v396
        %949 = vmatpush1.msra.mxu0 %v395
        %950 = vmatprep.subr.mxu0 %v388
        %951 = vmatpush1.msra.mxu0 %v387
        %952 = vmatprep.subr.mxu0 %v380
        %953 = vmatpush1.msra.mxu0 %v379
        %954 = vmatprep.subr.mxu0 0.0
        %955 = vmatpush2.msra.mxu0 0.0
        %956 = vmatprep.subr.mxu0 0.0
        %957 = vmatpush2.msra.mxu0 0.0
        %958 = vmatprep.subr.mxu0 0.0
        %959 = vmatpush2.msra.mxu0 0.0
        %960 = vmatprep.subr.mxu0 0.0
        %961 = vmatpush2.msra.mxu0 0.0
        %962 = vmatprep.subr.mxu0 0.0
        %963 = vmatpush2.msra.mxu0 0.0
        %964 = vmatprep.subr.mxu0 0.0
        %965 = vmatpush2.msra.mxu0 0.0
        %966 = vmatprep.subr.mxu0 0.0
        %967 = vmatpush2.msra.mxu0 0.0
        %968 = vmatprep.subr.mxu0 0.0
        %969 = vmatpush2.msra.mxu0 0.0
        %970 = vmatprep.subr.mxu0 0.0
        %971 = vmatpush2.msra.mxu0 0.0
        %972 = vmatprep.subr.mxu0 0.0
        %973 = vmatpush2.msra.mxu0 0.0
        %974 = vmatprep.subr.mxu0 0.0
        %975 = vmatpush2.msra.mxu0 0.0
        %976 = vmatprep.subr.mxu0 0.0
        %977 = vmatpush2.msra.mxu0 0.0
        %978 = vmatprep.subr.mxu0 0.0
        %979 = vmatpush2.msra.mxu0 0.0
        %980 = vmatprep.subr.mxu0 0.0
        %981 = vmatpush2.msra.mxu0 0.0
        %982 = vmatprep.subr.mxu0 0.0
        %983 = vmatpush2.msra.mxu0 0.0
        %984 = vmatprep.subr.mxu0 0.0
        %985 = vmatpush2.msra.mxu0 0.0
        %986 = vmatprep.mubr.f32.mxu0 0.0
        %987 = vmatmul.mubr.f32.gmra.mxu0 %v553
        %v988 = vpop.f32.mrf.mxu0
        %v989 = vadd.f32 %v474, %v988
        %v990 = vpop.f32.mrf.mxu0
        %v991 = vadd.f32 %v474, %v990
        %992 = vmatprep.mubr.f32.mxu0 0.0
        %993 = vmatmul.mubr.f32.gmra.mxu0 %v556
        %v994 = vpop.f32.mrf.mxu0
        %v995 = vadd.f32 %v479, %v994
        %v996 = vpop.f32.mrf.mxu0
        %v997 = vadd.f32 %v479, %v996
        %998 = vmatprep.mubr.f32.mxu0 0.0
        %999 = vmatmul.mubr.f32.gmra.mxu0 %v559
        %v1000 = vpop.f32.mrf.mxu0
        %v1001 = vadd.f32 %v484, %v1000
        %v1002 = vpop.f32.mrf.mxu0
        %v1003 = vadd.f32 %v484, %v1002
        %1004 = vmatprep.mubr.f32.mxu0 0.0
        %1005 = vmatmul.mubr.f32.gmra.mxu0 %v562
        %v1006 = vpop.f32.mrf.mxu0
        %v1007 = vadd.f32 %v489, %v1006
        %v1008 = vpop.f32.mrf.mxu0
        %v1009 = vadd.f32 %v489, %v1008
        %1010 = vmatprep.mubr.f32.mxu0 0.0
        %1011 = vmatmul.mubr.f32.gmra.mxu0 %v565
        %v1012 = vpop.f32.mrf.mxu0
        %v1013 = vadd.f32 %v494, %v1012
        %v1014 = vpop.f32.mrf.mxu0
        %v1015 = vadd.f32 %v494, %v1014
        %1016 = vmatprep.mubr.f32.mxu0 0.0
        %1017 = vmatmul.mubr.f32.gmra.mxu0 %v568
        %v1018 = vpop.f32.mrf.mxu0
        %v1019 = vadd.f32 %v499, %v1018
        %v1020 = vpop.f32.mrf.mxu0
        %v1021 = vadd.f32 %v499, %v1020
        %1022 = vmatprep.mubr.f32.mxu0 0.0
        %1023 = vmatmul.mubr.f32.gmra.mxu0 %v571
        %v1024 = vpop.f32.mrf.mxu0
        %v1025 = vadd.f32 %v504, %v1024
        %v1026 = vpop.f32.mrf.mxu0
        %v1027 = vadd.f32 %v504, %v1026
        %1028 = vmatprep.mubr.f32.mxu0 0.0
        %1029 = vmatmul.mubr.f32.gmra.mxu0 %v574
        %v1030 = vpop.f32.mrf.mxu0
        %v1031 = vadd.f32 %v509, %v1030
        %v1032 = vpop.f32.mrf.mxu0
        %v1033 = vadd.f32 %v509, %v1032
        %1034 = vmatprep.mubr.f32.mxu0 0.0
        %1035 = vmatmul.mubr.f32.gmra.mxu0 %v577
        %v1036 = vpop.f32.mrf.mxu0
        %v1037 = vadd.f32 %v514, %v1036
        %v1038 = vpop.f32.mrf.mxu0
        %v1039 = vadd.f32 %v514, %v1038
        %1040 = vmatprep.mubr.f32.mxu0 0.0
        %1041 = vmatmul.mubr.f32.gmra.mxu0 %v580
        %v1042 = vpop.f32.mrf.mxu0
        %v1043 = vadd.f32 %v519, %v1042
        %v1044 = vpop.f32.mrf.mxu0
        %v1045 = vadd.f32 %v519, %v1044
        %1046 = vmatprep.mubr.f32.mxu0 0.0
        %1047 = vmatmul.mubr.f32.gmra.mxu0 %v583
        %v1048 = vpop.f32.mrf.mxu0
        %v1049 = vadd.f32 %v524, %v1048
        %v1050 = vpop.f32.mrf.mxu0
        %v1051 = vadd.f32 %v524, %v1050
        %1052 = vmatprep.mubr.f32.mxu0 0.0
        %1053 = vmatmul.mubr.f32.gmra.mxu0 %v586
        %v1054 = vpop.f32.mrf.mxu0
        %v1055 = vadd.f32 %v529, %v1054
        %v1056 = vpop.f32.mrf.mxu0
        %v1057 = vadd.f32 %v529, %v1056
        %1058 = vmatprep.mubr.f32.mxu0 0.0
        %1059 = vmatmul.mubr.f32.gmra.mxu0 %v589
        %v1060 = vpop.f32.mrf.mxu0
        %v1061 = vadd.f32 %v534, %v1060
        %v1062 = vpop.f32.mrf.mxu0
        %v1063 = vadd.f32 %v534, %v1062
        %1064 = vmatprep.mubr.f32.mxu0 0.0
        %1065 = vmatmul.mubr.f32.gmra.mxu0 %v592
        %v1066 = vpop.f32.mrf.mxu0
        %v1067 = vadd.f32 %v539, %v1066
        %v1068 = vpop.f32.mrf.mxu0
        %v1069 = vadd.f32 %v539, %v1068
        %1070 = vmatprep.mubr.f32.mxu0 0.0
        %1071 = vmatmul.mubr.f32.gmra.mxu0 %v595
        %v1072 = vpop.f32.mrf.mxu0
        %v1073 = vadd.f32 %v544, %v1072
        %v1074 = vpop.f32.mrf.mxu0
        %v1075 = vadd.f32 %v544, %v1074
        %1076 = vmatprep.mubr.f32.mxu0 0.0
        %1077 = vmatmul.mubr.f32.gmra.mxu0 %v598
        %v1078 = vpop.f32.mrf.mxu0
        %v1079 = vadd.f32 %v549, %v1078
        %v1080 = vpop.f32.mrf.mxu0
        %v1081 = vadd.f32 %v549, %v1080
        %1082 = vdwg.mxu0
        %1083 = vmatprep.subr.mxu0 0.0
        %1084 = vmatpush1.msra.mxu0 0.0
        %1085 = vmatprep.subr.mxu0 0.0
        %1086 = vmatpush1.msra.mxu0 0.0
        %1087 = vmatprep.subr.mxu0 0.0
        %1088 = vmatpush1.msra.mxu0 0.0
        %1089 = vmatprep.subr.mxu0 0.0
        %1090 = vmatpush1.msra.mxu0 0.0
        %1091 = vmatprep.subr.mxu0 0.0
        %1092 = vmatpush1.msra.mxu0 0.0
        %1093 = vmatprep.subr.mxu0 0.0
        %1094 = vmatpush1.msra.mxu0 0.0
        %1095 = vmatprep.subr.mxu0 0.0
        %1096 = vmatpush1.msra.mxu0 0.0
        %1097 = vmatprep.subr.mxu0 0.0
        %1098 = vmatpush1.msra.mxu0 0.0
        %1099 = vmatprep.subr.mxu0 %v438
        %1100 = vmatpush1.msra.mxu0 %v437
        %1101 = vmatprep.subr.mxu0 %v430
        %1102 = vmatpush1.msra.mxu0 %v429
        %1103 = vmatprep.subr.mxu0 %v422
        %1104 = vmatpush1.msra.mxu0 %v421
        %1105 = vmatprep.subr.mxu0 %v414
        %1106 = vmatpush1.msra.mxu0 %v413
        %1107 = vmatprep.subr.mxu0 %v406
        %1108 = vmatpush1.msra.mxu0 %v405
        %1109 = vmatprep.subr.mxu0 %v398
        %1110 = vmatpush1.msra.mxu0 %v397
        %1111 = vmatprep.subr.mxu0 %v390
        %1112 = vmatpush1.msra.mxu0 %v389
        %1113 = vmatprep.subr.mxu0 %v382
        %1114 = vmatpush1.msra.mxu0 %v381
        %1115 = vmatprep.subr.mxu0 0.0
        %1116 = vmatpush2.msra.mxu0 0.0
        %1117 = vmatprep.subr.mxu0 0.0
        %1118 = vmatpush2.msra.mxu0 0.0
        %1119 = vmatprep.subr.mxu0 0.0
        %1120 = vmatpush2.msra.mxu0 0.0
        %1121 = vmatprep.subr.mxu0 0.0
        %1122 = vmatpush2.msra.mxu0 0.0
        %1123 = vmatprep.subr.mxu0 0.0
        %1124 = vmatpush2.msra.mxu0 0.0
        %1125 = vmatprep.subr.mxu0 0.0
        %1126 = vmatpush2.msra.mxu0 0.0
        %1127 = vmatprep.subr.mxu0 0.0
        %1128 = vmatpush2.msra.mxu0 0.0
        %1129 = vmatprep.subr.mxu0 0.0
        %1130 = vmatpush2.msra.mxu0 0.0
        %1131 = vmatprep.subr.mxu0 0.0
        %1132 = vmatpush2.msra.mxu0 0.0
        %1133 = vmatprep.subr.mxu0 0.0
        %1134 = vmatpush2.msra.mxu0 0.0
        %1135 = vmatprep.subr.mxu0 0.0
        %1136 = vmatpush2.msra.mxu0 0.0
        %1137 = vmatprep.subr.mxu0 0.0
        %1138 = vmatpush2.msra.mxu0 0.0
        %1139 = vmatprep.subr.mxu0 0.0
        %1140 = vmatpush2.msra.mxu0 0.0
        %1141 = vmatprep.subr.mxu0 0.0
        %1142 = vmatpush2.msra.mxu0 0.0
        %1143 = vmatprep.subr.mxu0 0.0
        %1144 = vmatpush2.msra.mxu0 0.0
        %1145 = vmatprep.subr.mxu0 0.0
        %1146 = vmatpush2.msra.mxu0 0.0
        %1147 = vmatprep.mubr.f32.mxu0 0.0
        %1148 = vmatmul.mubr.f32.gmra.mxu0 %v553
        %v1149 = vpop.f32.mrf.mxu0
        %v1150 = vadd.f32 %v474, %v1149
        %v1151 = vpop.f32.mrf.mxu0
        %v1152 = vadd.f32 %v474, %v1151
        %1153 = vmatprep.mubr.f32.mxu0 0.0
        %1154 = vmatmul.mubr.f32.gmra.mxu0 %v556
        %v1155 = vpop.f32.mrf.mxu0
        %v1156 = vadd.f32 %v479, %v1155
        %v1157 = vpop.f32.mrf.mxu0
        %v1158 = vadd.f32 %v479, %v1157
        %1159 = vmatprep.mubr.f32.mxu0 0.0
        %1160 = vmatmul.mubr.f32.gmra.mxu0 %v559
        %v1161 = vpop.f32.mrf.mxu0
        %v1162 = vadd.f32 %v484, %v1161
        %v1163 = vpop.f32.mrf.mxu0
        %v1164 = vadd.f32 %v484, %v1163
        %1165 = vmatprep.mubr.f32.mxu0 0.0
        %1166 = vmatmul.mubr.f32.gmra.mxu0 %v562
        %v1167 = vpop.f32.mrf.mxu0
        %v1168 = vadd.f32 %v489, %v1167
        %v1169 = vpop.f32.mrf.mxu0
        %v1170 = vadd.f32 %v489, %v1169
        %1171 = vmatprep.mubr.f32.mxu0 0.0
        %1172 = vmatmul.mubr.f32.gmra.mxu0 %v565
        %v1173 = vpop.f32.mrf.mxu0
        %v1174 = vadd.f32 %v494, %v1173
        %v1175 = vpop.f32.mrf.mxu0
        %v1176 = vadd.f32 %v494, %v1175
        %1177 = vmatprep.mubr.f32.mxu0 0.0
        %1178 = vmatmul.mubr.f32.gmra.mxu0 %v568
        %v1179 = vpop.f32.mrf.mxu0
        %v1180 = vadd.f32 %v499, %v1179
        %v1181 = vpop.f32.mrf.mxu0
        %v1182 = vadd.f32 %v499, %v1181
        %1183 = vmatprep.mubr.f32.mxu0 0.0
        %1184 = vmatmul.mubr.f32.gmra.mxu0 %v571
        %v1185 = vpop.f32.mrf.mxu0
        %v1186 = vadd.f32 %v504, %v1185
        %v1187 = vpop.f32.mrf.mxu0
        %v1188 = vadd.f32 %v504, %v1187
        %1189 = vmatprep.mubr.f32.mxu0 0.0
        %1190 = vmatmul.mubr.f32.gmra.mxu0 %v574
        %v1191 = vpop.f32.mrf.mxu0
        %v1192 = vadd.f32 %v509, %v1191
        %v1193 = vpop.f32.mrf.mxu0
        %v1194 = vadd.f32 %v509, %v1193
        %1195 = vmatprep.mubr.f32.mxu0 0.0
        %1196 = vmatmul.mubr.f32.gmra.mxu0 %v577
        %v1197 = vpop.f32.mrf.mxu0
        %v1198 = vadd.f32 %v514, %v1197
        %v1199 = vpop.f32.mrf.mxu0
        %v1200 = vadd.f32 %v514, %v1199
        %1201 = vmatprep.mubr.f32.mxu0 0.0
        %1202 = vmatmul.mubr.f32.gmra.mxu0 %v580
        %v1203 = vpop.f32.mrf.mxu0
        %v1204 = vadd.f32 %v519, %v1203
        %v1205 = vpop.f32.mrf.mxu0
        %v1206 = vadd.f32 %v519, %v1205
        %1207 = vmatprep.mubr.f32.mxu0 0.0
        %1208 = vmatmul.mubr.f32.gmra.mxu0 %v583
        %v1209 = vpop.f32.mrf.mxu0
        %v1210 = vadd.f32 %v524, %v1209
        %v1211 = vpop.f32.mrf.mxu0
        %v1212 = vadd.f32 %v524, %v1211
        %1213 = vmatprep.mubr.f32.mxu0 0.0
        %1214 = vmatmul.mubr.f32.gmra.mxu0 %v586
        %v1215 = vpop.f32.mrf.mxu0
        %v1216 = vadd.f32 %v529, %v1215
        %v1217 = vpop.f32.mrf.mxu0
        %v1218 = vadd.f32 %v529, %v1217
        %1219 = vmatprep.mubr.f32.mxu0 0.0
        %1220 = vmatmul.mubr.f32.gmra.mxu0 %v589
        %v1221 = vpop.f32.mrf.mxu0
        %v1222 = vadd.f32 %v534, %v1221
        %v1223 = vpop.f32.mrf.mxu0
        %v1224 = vadd.f32 %v534, %v1223
        %1225 = vmatprep.mubr.f32.mxu0 0.0
        %1226 = vmatmul.mubr.f32.gmra.mxu0 %v592
        %v1227 = vpop.f32.mrf.mxu0
        %v1228 = vadd.f32 %v539, %v1227
        %v1229 = vpop.f32.mrf.mxu0
        %v1230 = vadd.f32 %v539, %v1229
        %1231 = vmatprep.mubr.f32.mxu0 0.0
        %1232 = vmatmul.mubr.f32.gmra.mxu0 %v595
        %v1233 = vpop.f32.mrf.mxu0
        %v1234 = vadd.f32 %v544, %v1233
        %v1235 = vpop.f32.mrf.mxu0
        %v1236 = vadd.f32 %v544, %v1235
        %1237 = vmatprep.mubr.f32.mxu0 0.0
        %1238 = vmatmul.mubr.f32.gmra.mxu0 %v598
        %v1239 = vpop.f32.mrf.mxu0
        %v1240 = vadd.f32 %v549, %v1239
        %v1241 = vpop.f32.mrf.mxu0
        %v1242 = vadd.f32 %v549, %v1241
        %1243 = vdwg.mxu0
        %v1244 = vmin.f32 %v667, %v673
        %v1245 = vmin.f32 %v1244, %v679
        %v1246 = vmin.f32 %v1245, %v685
        %v1247 = vmin.f32 %v1246, %v691
        %v1248 = vmin.f32 %v1247, %v697
        %v1249 = vmin.f32 %v1248, %v703
        %v1250 = vmin.f32 %v1249, %v709
        %v1251 = vmin.f32 %v1250, %v715
        %v1252 = vmin.f32 %v1251, %v721
        %v1253 = vmin.f32 %v1252, %v727
        %v1254 = vmin.f32 %v1253, %v733
        %v1255 = vmin.f32 %v1254, %v739
        %v1256 = vmin.f32 %v1255, %v745
        %v1257 = vmin.f32 %v1256, %v751
        %v1258 = vmin.f32 %v1257, %v757
        %v1259 = vrot.slane %v1258, 4
        %v1260 = vmin.f32 %v1258, %v1259
        %v1261 = vrot.slane %v1260, 2
        %v1262 = vmin.f32 %v1260, %v1261
        %v1263 = vrot.slane %v1262, 1
        %v1264 = vmin.f32 %v1262, %v1263
        %v1265 = vmin.f32 %v669, %v675
        %v1266 = vmin.f32 %v1265, %v681
        %v1267 = vmin.f32 %v1266, %v687
        %v1268 = vmin.f32 %v1267, %v693
        %v1269 = vmin.f32 %v1268, %v699
        %v1270 = vmin.f32 %v1269, %v705
        %v1271 = vmin.f32 %v1270, %v711
        %v1272 = vmin.f32 %v1271, %v717
        %v1273 = vmin.f32 %v1272, %v723
        %v1274 = vmin.f32 %v1273, %v729
        %v1275 = vmin.f32 %v1274, %v735
        %v1276 = vmin.f32 %v1275, %v741
        %v1277 = vmin.f32 %v1276, %v747
        %v1278 = vmin.f32 %v1277, %v753
        %v1279 = vmin.f32 %v1278, %v759
        %v1280 = vrot.slane %v1279, 4
        %v1281 = vmin.f32 %v1279, %v1280
        %v1282 = vrot.slane %v1281, 2
        %v1283 = vmin.f32 %v1281, %v1282
        %v1284 = vrot.slane %v1283, 1
        %v1285 = vmin.f32 %v1283, %v1284
        %v1286 = vmin.f32 %v828, %v834
        %v1287 = vmin.f32 %v1286, %v840
        %v1288 = vmin.f32 %v1287, %v846
        %v1289 = vmin.f32 %v1288, %v852
        %v1290 = vmin.f32 %v1289, %v858
        %v1291 = vmin.f32 %v1290, %v864
        %v1292 = vmin.f32 %v1291, %v870
        %v1293 = vmin.f32 %v1292, %v876
        %v1294 = vmin.f32 %v1293, %v882
        %v1295 = vmin.f32 %v1294, %v888
        %v1296 = vmin.f32 %v1295, %v894
        %v1297 = vmin.f32 %v1296, %v900
        %v1298 = vmin.f32 %v1297, %v906
        %v1299 = vmin.f32 %v1298, %v912
        %v1300 = vmin.f32 %v1299, %v918
        %v1301 = vrot.slane %v1300, 4
        %v1302 = vmin.f32 %v1300, %v1301
        %v1303 = vrot.slane %v1302, 2
        %v1304 = vmin.f32 %v1302, %v1303
        %v1305 = vrot.slane %v1304, 1
        %v1306 = vmin.f32 %v1304, %v1305
        %v1307 = vmin.f32 %v830, %v836
        %v1308 = vmin.f32 %v1307, %v842
        %v1309 = vmin.f32 %v1308, %v848
        %v1310 = vmin.f32 %v1309, %v854
        %v1311 = vmin.f32 %v1310, %v860
        %v1312 = vmin.f32 %v1311, %v866
        %v1313 = vmin.f32 %v1312, %v872
        %v1314 = vmin.f32 %v1313, %v878
        %v1315 = vmin.f32 %v1314, %v884
        %v1316 = vmin.f32 %v1315, %v890
        %v1317 = vmin.f32 %v1316, %v896
        %v1318 = vmin.f32 %v1317, %v902
        %v1319 = vmin.f32 %v1318, %v908
        %v1320 = vmin.f32 %v1319, %v914
        %v1321 = vmin.f32 %v1320, %v920
        %v1322 = vrot.slane %v1321, 4
        %v1323 = vmin.f32 %v1321, %v1322
        %v1324 = vrot.slane %v1323, 2
        %v1325 = vmin.f32 %v1323, %v1324
        %v1326 = vrot.slane %v1325, 1
        %v1327 = vmin.f32 %v1325, %v1326
        %v1328 = vmin.f32 %v989, %v995
        %v1329 = vmin.f32 %v1328, %v1001
        %v1330 = vmin.f32 %v1329, %v1007
        %v1331 = vmin.f32 %v1330, %v1013
        %v1332 = vmin.f32 %v1331, %v1019
        %v1333 = vmin.f32 %v1332, %v1025
        %v1334 = vmin.f32 %v1333, %v1031
        %v1335 = vmin.f32 %v1334, %v1037
        %v1336 = vmin.f32 %v1335, %v1043
        %v1337 = vmin.f32 %v1336, %v1049
        %v1338 = vmin.f32 %v1337, %v1055
        %v1339 = vmin.f32 %v1338, %v1061
        %v1340 = vmin.f32 %v1339, %v1067
        %v1341 = vmin.f32 %v1340, %v1073
        %v1342 = vmin.f32 %v1341, %v1079
        %v1343 = vrot.slane %v1342, 4
        %v1344 = vmin.f32 %v1342, %v1343
        %v1345 = vrot.slane %v1344, 2
        %v1346 = vmin.f32 %v1344, %v1345
        %v1347 = vrot.slane %v1346, 1
        %v1348 = vmin.f32 %v1346, %v1347
        %v1349 = vmin.f32 %v991, %v997
        %v1350 = vmin.f32 %v1349, %v1003
        %v1351 = vmin.f32 %v1350, %v1009
        %v1352 = vmin.f32 %v1351, %v1015
        %v1353 = vmin.f32 %v1352, %v1021
        %v1354 = vmin.f32 %v1353, %v1027
        %v1355 = vmin.f32 %v1354, %v1033
        %v1356 = vmin.f32 %v1355, %v1039
        %v1357 = vmin.f32 %v1356, %v1045
        %v1358 = vmin.f32 %v1357, %v1051
        %v1359 = vmin.f32 %v1358, %v1057
        %v1360 = vmin.f32 %v1359, %v1063
        %v1361 = vmin.f32 %v1360, %v1069
        %v1362 = vmin.f32 %v1361, %v1075
        %v1363 = vmin.f32 %v1362, %v1081
        %v1364 = vrot.slane %v1363, 4
        %v1365 = vmin.f32 %v1363, %v1364
        %v1366 = vrot.slane %v1365, 2
        %v1367 = vmin.f32 %v1365, %v1366
        %v1368 = vrot.slane %v1367, 1
        %v1369 = vmin.f32 %v1367, %v1368
        %v1370 = vmin.f32 %v1150, %v1156
        %v1371 = vmin.f32 %v1370, %v1162
        %v1372 = vmin.f32 %v1371, %v1168
        %v1373 = vmin.f32 %v1372, %v1174
        %v1374 = vmin.f32 %v1373, %v1180
        %v1375 = vmin.f32 %v1374, %v1186
        %v1376 = vmin.f32 %v1375, %v1192
        %v1377 = vmin.f32 %v1376, %v1198
        %v1378 = vmin.f32 %v1377, %v1204
        %v1379 = vmin.f32 %v1378, %v1210
        %v1380 = vmin.f32 %v1379, %v1216
        %v1381 = vmin.f32 %v1380, %v1222
        %v1382 = vmin.f32 %v1381, %v1228
        %v1383 = vmin.f32 %v1382, %v1234
        %v1384 = vmin.f32 %v1383, %v1240
        %v1385 = vrot.slane %v1384, 4
        %v1386 = vmin.f32 %v1384, %v1385
        %v1387 = vrot.slane %v1386, 2
        %v1388 = vmin.f32 %v1386, %v1387
        %v1389 = vrot.slane %v1388, 1
        %v1390 = vmin.f32 %v1388, %v1389
        %v1391 = vmin.f32 %v1152, %v1158
        %v1392 = vmin.f32 %v1391, %v1164
        %v1393 = vmin.f32 %v1392, %v1170
        %v1394 = vmin.f32 %v1393, %v1176
        %v1395 = vmin.f32 %v1394, %v1182
        %v1396 = vmin.f32 %v1395, %v1188
        %v1397 = vmin.f32 %v1396, %v1194
        %v1398 = vmin.f32 %v1397, %v1200
        %v1399 = vmin.f32 %v1398, %v1206
        %v1400 = vmin.f32 %v1399, %v1212
        %v1401 = vmin.f32 %v1400, %v1218
        %v1402 = vmin.f32 %v1401, %v1224
        %v1403 = vmin.f32 %v1402, %v1230
        %v1404 = vmin.f32 %v1403, %v1236
        %v1405 = vmin.f32 %v1404, %v1242
        %v1406 = vrot.slane %v1405, 4
        %v1407 = vmin.f32 %v1405, %v1406
        %v1408 = vrot.slane %v1407, 2
        %v1409 = vmin.f32 %v1407, %v1408
        %v1410 = vrot.slane %v1409, 1
        %v1411 = vmin.f32 %v1409, %v1410
        %v1412 = vlaneseq
        %v1413 = vshrl.u32 %v1412, 7
        %v1414 = vadd.s32 %v1413, 8
        %v1415 = vadd.s32 %v1413, 16
        %v1416 = vadd.s32 %v1413, 24
        %v1417 = vadd.s32 %v1413, 32
        %v1418 = vadd.s32 %v1413, 40
        %v1419 = vadd.s32 %v1413, 48
        %v1420 = vadd.s32 %v1413, 56
        %v1421 = vadd.s32 %v1413, 64
        %v1422 = vadd.s32 %v1413, 72
        %v1423 = vadd.s32 %v1413, 80
        %v1424 = vadd.s32 %v1413, 88
        %v1425 = vadd.s32 %v1413, 96
        %v1426 = vadd.s32 %v1413, 104
        %v1427 = vadd.s32 %v1413, 112
        %v1428 = vadd.s32 %v1413, 120
        %vm1429 = vcmp.le.f32.partialorder %v667, %v1264
        %vm1430 = vcmp.le.f32.partialorder %v669, %v1285
        %vm1431 = vcmp.le.f32.partialorder %v828, %v1306
        %vm1432 = vcmp.le.f32.partialorder %v830, %v1327
        %vm1433 = vcmp.le.f32.partialorder %v989, %v1348
        %vm1434 = vcmp.le.f32.partialorder %v991, %v1369
        %vm1435 = vcmp.le.f32.partialorder %v1150, %v1390
        %vm1436 = vcmp.le.f32.partialorder %v1152, %v1411
        %vm1437 = vcmp.le.f32.partialorder %v673, %v1264
        %vm1438 = vcmp.le.f32.partialorder %v675, %v1285
        %vm1439 = vcmp.le.f32.partialorder %v834, %v1306
        %vm1440 = vcmp.le.f32.partialorder %v836, %v1327
        %vm1441 = vcmp.le.f32.partialorder %v995, %v1348
        %vm1442 = vcmp.le.f32.partialorder %v997, %v1369
        %vm1443 = vcmp.le.f32.partialorder %v1156, %v1390
        %vm1444 = vcmp.le.f32.partialorder %v1158, %v1411
        %vm1445 = vcmp.le.f32.partialorder %v679, %v1264
        %vm1446 = vcmp.le.f32.partialorder %v681, %v1285
        %vm1447 = vcmp.le.f32.partialorder %v840, %v1306
        %vm1448 = vcmp.le.f32.partialorder %v842, %v1327
        %vm1449 = vcmp.le.f32.partialorder %v1001, %v1348
        %vm1450 = vcmp.le.f32.partialorder %v1003, %v1369
        %vm1451 = vcmp.le.f32.partialorder %v1162, %v1390
        %vm1452 = vcmp.le.f32.partialorder %v1164, %v1411
        %vm1453 = vcmp.le.f32.partialorder %v685, %v1264
        %vm1454 = vcmp.le.f32.partialorder %v687, %v1285
        %vm1455 = vcmp.le.f32.partialorder %v846, %v1306
        %vm1456 = vcmp.le.f32.partialorder %v848, %v1327
        %vm1457 = vcmp.le.f32.partialorder %v1007, %v1348
        %vm1458 = vcmp.le.f32.partialorder %v1009, %v1369
        %vm1459 = vcmp.le.f32.partialorder %v1168, %v1390
        %vm1460 = vcmp.le.f32.partialorder %v1170, %v1411
        %vm1461 = vcmp.le.f32.partialorder %v691, %v1264
        %vm1462 = vcmp.le.f32.partialorder %v693, %v1285
        %vm1463 = vcmp.le.f32.partialorder %v852, %v1306
        %vm1464 = vcmp.le.f32.partialorder %v854, %v1327
        %vm1465 = vcmp.le.f32.partialorder %v1013, %v1348
        %vm1466 = vcmp.le.f32.partialorder %v1015, %v1369
        %vm1467 = vcmp.le.f32.partialorder %v1174, %v1390
        %vm1468 = vcmp.le.f32.partialorder %v1176, %v1411
        %vm1469 = vcmp.le.f32.partialorder %v697, %v1264
        %vm1470 = vcmp.le.f32.partialorder %v699, %v1285
        %vm1471 = vcmp.le.f32.partialorder %v858, %v1306
        %vm1472 = vcmp.le.f32.partialorder %v860, %v1327
        %vm1473 = vcmp.le.f32.partialorder %v1019, %v1348
        %vm1474 = vcmp.le.f32.partialorder %v1021, %v1369
        %vm1475 = vcmp.le.f32.partialorder %v1180, %v1390
        %vm1476 = vcmp.le.f32.partialorder %v1182, %v1411
        %vm1477 = vcmp.le.f32.partialorder %v703, %v1264
        %vm1478 = vcmp.le.f32.partialorder %v705, %v1285
        %vm1479 = vcmp.le.f32.partialorder %v864, %v1306
        %vm1480 = vcmp.le.f32.partialorder %v866, %v1327
        %vm1481 = vcmp.le.f32.partialorder %v1025, %v1348
        %vm1482 = vcmp.le.f32.partialorder %v1027, %v1369
        %vm1483 = vcmp.le.f32.partialorder %v1186, %v1390
        %vm1484 = vcmp.le.f32.partialorder %v1188, %v1411
        %vm1485 = vcmp.le.f32.partialorder %v709, %v1264
        %vm1486 = vcmp.le.f32.partialorder %v711, %v1285
        %vm1487 = vcmp.le.f32.partialorder %v870, %v1306
        %vm1488 = vcmp.le.f32.partialorder %v872, %v1327
        %vm1489 = vcmp.le.f32.partialorder %v1031, %v1348
        %vm1490 = vcmp.le.f32.partialorder %v1033, %v1369
        %vm1491 = vcmp.le.f32.partialorder %v1192, %v1390
        %vm1492 = vcmp.le.f32.partialorder %v1194, %v1411
        %vm1493 = vcmp.le.f32.partialorder %v715, %v1264
        %vm1494 = vcmp.le.f32.partialorder %v717, %v1285
        %vm1495 = vcmp.le.f32.partialorder %v876, %v1306
        %vm1496 = vcmp.le.f32.partialorder %v878, %v1327
        %vm1497 = vcmp.le.f32.partialorder %v1037, %v1348
        %vm1498 = vcmp.le.f32.partialorder %v1039, %v1369
        %vm1499 = vcmp.le.f32.partialorder %v1198, %v1390
        %vm1500 = vcmp.le.f32.partialorder %v1200, %v1411
        %vm1501 = vcmp.le.f32.partialorder %v721, %v1264
        %vm1502 = vcmp.le.f32.partialorder %v723, %v1285
        %vm1503 = vcmp.le.f32.partialorder %v882, %v1306
        %vm1504 = vcmp.le.f32.partialorder %v884, %v1327
        %vm1505 = vcmp.le.f32.partialorder %v1043, %v1348
        %vm1506 = vcmp.le.f32.partialorder %v1045, %v1369
        %vm1507 = vcmp.le.f32.partialorder %v1204, %v1390
        %vm1508 = vcmp.le.f32.partialorder %v1206, %v1411
        %vm1509 = vcmp.le.f32.partialorder %v727, %v1264
        %vm1510 = vcmp.le.f32.partialorder %v729, %v1285
        %vm1511 = vcmp.le.f32.partialorder %v888, %v1306
        %vm1512 = vcmp.le.f32.partialorder %v890, %v1327
        %vm1513 = vcmp.le.f32.partialorder %v1049, %v1348
        %vm1514 = vcmp.le.f32.partialorder %v1051, %v1369
        %vm1515 = vcmp.le.f32.partialorder %v1210, %v1390
        %vm1516 = vcmp.le.f32.partialorder %v1212, %v1411
        %vm1517 = vcmp.le.f32.partialorder %v733, %v1264
        %vm1518 = vcmp.le.f32.partialorder %v735, %v1285
        %vm1519 = vcmp.le.f32.partialorder %v894, %v1306
        %vm1520 = vcmp.le.f32.partialorder %v896, %v1327
        %vm1521 = vcmp.le.f32.partialorder %v1055, %v1348
        %vm1522 = vcmp.le.f32.partialorder %v1057, %v1369
        %vm1523 = vcmp.le.f32.partialorder %v1216, %v1390
        %vm1524 = vcmp.le.f32.partialorder %v1218, %v1411
        %vm1525 = vcmp.le.f32.partialorder %v739, %v1264
        %vm1526 = vcmp.le.f32.partialorder %v741, %v1285
        %vm1527 = vcmp.le.f32.partialorder %v900, %v1306
        %vm1528 = vcmp.le.f32.partialorder %v902, %v1327
        %vm1529 = vcmp.le.f32.partialorder %v1061, %v1348
        %vm1530 = vcmp.le.f32.partialorder %v1063, %v1369
        %vm1531 = vcmp.le.f32.partialorder %v1222, %v1390
        %vm1532 = vcmp.le.f32.partialorder %v1224, %v1411
        %vm1533 = vcmp.le.f32.partialorder %v745, %v1264
        %vm1534 = vcmp.le.f32.partialorder %v747, %v1285
        %vm1535 = vcmp.le.f32.partialorder %v906, %v1306
        %vm1536 = vcmp.le.f32.partialorder %v908, %v1327
        %vm1537 = vcmp.le.f32.partialorder %v1067, %v1348
        %vm1538 = vcmp.le.f32.partialorder %v1069, %v1369
        %vm1539 = vcmp.le.f32.partialorder %v1228, %v1390
        %vm1540 = vcmp.le.f32.partialorder %v1230, %v1411
        %vm1541 = vcmp.le.f32.partialorder %v751, %v1264
        %vm1542 = vcmp.le.f32.partialorder %v753, %v1285
        %vm1543 = vcmp.le.f32.partialorder %v912, %v1306
        %vm1544 = vcmp.le.f32.partialorder %v914, %v1327
        %vm1545 = vcmp.le.f32.partialorder %v1073, %v1348
        %vm1546 = vcmp.le.f32.partialorder %v1075, %v1369
        %vm1547 = vcmp.le.f32.partialorder %v1234, %v1390
        %vm1548 = vcmp.le.f32.partialorder %v1236, %v1411
        %vm1549 = vcmp.le.f32.partialorder %v757, %v1264
        %vm1550 = vcmp.le.f32.partialorder %v759, %v1285
        %vm1551 = vcmp.le.f32.partialorder %v918, %v1306
        %vm1552 = vcmp.le.f32.partialorder %v920, %v1327
        %vm1553 = vcmp.le.f32.partialorder %v1079, %v1348
        %vm1554 = vcmp.le.f32.partialorder %v1081, %v1369
        %vm1555 = vcmp.le.f32.partialorder %v1240, %v1390
        %vm1556 = vcmp.le.f32.partialorder %v1242, %v1411
        %v1557 = vsel %vm1429, %v1413, 128
        %v1558 = vsel %vm1430, %v1413, 128
        %v1559 = vsel %vm1431, %v1413, 128
        %v1560 = vsel %vm1432, %v1413, 128
        %v1561 = vsel %vm1433, %v1413, 128
        %v1562 = vsel %vm1434, %v1413, 128
        %v1563 = vsel %vm1435, %v1413, 128
        %v1564 = vsel %vm1436, %v1413, 128
        %v1565 = vsel %vm1437, %v1414, 128
        %v1566 = vsel %vm1438, %v1414, 128
        %v1567 = vsel %vm1439, %v1414, 128
        %v1568 = vsel %vm1440, %v1414, 128
        %v1569 = vsel %vm1441, %v1414, 128
        %v1570 = vsel %vm1442, %v1414, 128
        %v1571 = vsel %vm1443, %v1414, 128
        %v1572 = vsel %vm1444, %v1414, 128
        %v1573 = vsel %vm1445, %v1415, 128
        %v1574 = vsel %vm1446, %v1415, 128
        %v1575 = vsel %vm1447, %v1415, 128
        %v1576 = vsel %vm1448, %v1415, 128
        %v1577 = vsel %vm1449, %v1415, 128
        %v1578 = vsel %vm1450, %v1415, 128
        %v1579 = vsel %vm1451, %v1415, 128
        %v1580 = vsel %vm1452, %v1415, 128
        %v1581 = vsel %vm1453, %v1416, 128
        %v1582 = vsel %vm1454, %v1416, 128
        %v1583 = vsel %vm1455, %v1416, 128
        %v1584 = vsel %vm1456, %v1416, 128
        %v1585 = vsel %vm1457, %v1416, 128
        %v1586 = vsel %vm1458, %v1416, 128
        %v1587 = vsel %vm1459, %v1416, 128
        %v1588 = vsel %vm1460, %v1416, 128
        %v1589 = vsel %vm1461, %v1417, 128
        %v1590 = vsel %vm1462, %v1417, 128
        %v1591 = vsel %vm1463, %v1417, 128
        %v1592 = vsel %vm1464, %v1417, 128
        %v1593 = vsel %vm1465, %v1417, 128
        %v1594 = vsel %vm1466, %v1417, 128
        %v1595 = vsel %vm1467, %v1417, 128
        %v1596 = vsel %vm1468, %v1417, 128
        %v1597 = vsel %vm1469, %v1418, 128
        %v1598 = vsel %vm1470, %v1418, 128
        %v1599 = vsel %vm1471, %v1418, 128
        %v1600 = vsel %vm1472, %v1418, 128
        %v1601 = vsel %vm1473, %v1418, 128
        %v1602 = vsel %vm1474, %v1418, 128
        %v1603 = vsel %vm1475, %v1418, 128
        %v1604 = vsel %vm1476, %v1418, 128
        %v1605 = vsel %vm1477, %v1419, 128
        %v1606 = vsel %vm1478, %v1419, 128
        %v1607 = vsel %vm1479, %v1419, 128
        %v1608 = vsel %vm1480, %v1419, 128
        %v1609 = vsel %vm1481, %v1419, 128
        %v1610 = vsel %vm1482, %v1419, 128
        %v1611 = vsel %vm1483, %v1419, 128
        %v1612 = vsel %vm1484, %v1419, 128
        %v1613 = vsel %vm1485, %v1420, 128
        %v1614 = vsel %vm1486, %v1420, 128
        %v1615 = vsel %vm1487, %v1420, 128
        %v1616 = vsel %vm1488, %v1420, 128
        %v1617 = vsel %vm1489, %v1420, 128
        %v1618 = vsel %vm1490, %v1420, 128
        %v1619 = vsel %vm1491, %v1420, 128
        %v1620 = vsel %vm1492, %v1420, 128
        %v1621 = vsel %vm1493, %v1421, 128
        %v1622 = vsel %vm1494, %v1421, 128
        %v1623 = vsel %vm1495, %v1421, 128
        %v1624 = vsel %vm1496, %v1421, 128
        %v1625 = vsel %vm1497, %v1421, 128
        %v1626 = vsel %vm1498, %v1421, 128
        %v1627 = vsel %vm1499, %v1421, 128
        %v1628 = vsel %vm1500, %v1421, 128
        %v1629 = vsel %vm1501, %v1422, 128
        %v1630 = vsel %vm1502, %v1422, 128
        %v1631 = vsel %vm1503, %v1422, 128
        %v1632 = vsel %vm1504, %v1422, 128
        %v1633 = vsel %vm1505, %v1422, 128
        %v1634 = vsel %vm1506, %v1422, 128
        %v1635 = vsel %vm1507, %v1422, 128
        %v1636 = vsel %vm1508, %v1422, 128
        %v1637 = vsel %vm1509, %v1423, 128
        %v1638 = vsel %vm1510, %v1423, 128
        %v1639 = vsel %vm1511, %v1423, 128
        %v1640 = vsel %vm1512, %v1423, 128
        %v1641 = vsel %vm1513, %v1423, 128
        %v1642 = vsel %vm1514, %v1423, 128
        %v1643 = vsel %vm1515, %v1423, 128
        %v1644 = vsel %vm1516, %v1423, 128
        %v1645 = vsel %vm1517, %v1424, 128
        %v1646 = vsel %vm1518, %v1424, 128
        %v1647 = vsel %vm1519, %v1424, 128
        %v1648 = vsel %vm1520, %v1424, 128
        %v1649 = vsel %vm1521, %v1424, 128
        %v1650 = vsel %vm1522, %v1424, 128
        %v1651 = vsel %vm1523, %v1424, 128
        %v1652 = vsel %vm1524, %v1424, 128
        %v1653 = vsel %vm1525, %v1425, 128
        %v1654 = vsel %vm1526, %v1425, 128
        %v1655 = vsel %vm1527, %v1425, 128
        %v1656 = vsel %vm1528, %v1425, 128
        %v1657 = vsel %vm1529, %v1425, 128
        %v1658 = vsel %vm1530, %v1425, 128
        %v1659 = vsel %vm1531, %v1425, 128
        %v1660 = vsel %vm1532, %v1425, 128
        %v1661 = vsel %vm1533, %v1426, 128
        %v1662 = vsel %vm1534, %v1426, 128
        %v1663 = vsel %vm1535, %v1426, 128
        %v1664 = vsel %vm1536, %v1426, 128
        %v1665 = vsel %vm1537, %v1426, 128
        %v1666 = vsel %vm1538, %v1426, 128
        %v1667 = vsel %vm1539, %v1426, 128
        %v1668 = vsel %vm1540, %v1426, 128
        %v1669 = vsel %vm1541, %v1427, 128
        %v1670 = vsel %vm1542, %v1427, 128
        %v1671 = vsel %vm1543, %v1427, 128
        %v1672 = vsel %vm1544, %v1427, 128
        %v1673 = vsel %vm1545, %v1427, 128
        %v1674 = vsel %vm1546, %v1427, 128
        %v1675 = vsel %vm1547, %v1427, 128
        %v1676 = vsel %vm1548, %v1427, 128
        %v1677 = vsel %vm1549, %v1428, 128
        %v1678 = vsel %vm1550, %v1428, 128
        %v1679 = vsel %vm1551, %v1428, 128
        %v1680 = vsel %vm1552, %v1428, 128
        %v1681 = vsel %vm1553, %v1428, 128
        %v1682 = vsel %vm1554, %v1428, 128
        %v1683 = vsel %vm1555, %v1428, 128
        %v1684 = vsel %vm1556, %v1428, 128
        %vm1685 = vcmp.lt.s32.totalorder %v1557, %v1565
        %v1686 = vsel %vm1685, %v1557, %v1565
        %vm1687 = vcmp.lt.s32.totalorder %v1686, %v1573
        %v1688 = vsel %vm1687, %v1686, %v1573
        %vm1689 = vcmp.lt.s32.totalorder %v1688, %v1581
        %v1690 = vsel %vm1689, %v1688, %v1581
        %vm1691 = vcmp.lt.s32.totalorder %v1690, %v1589
        %v1692 = vsel %vm1691, %v1690, %v1589
        %vm1693 = vcmp.lt.s32.totalorder %v1692, %v1597
        %v1694 = vsel %vm1693, %v1692, %v1597
        %vm1695 = vcmp.lt.s32.totalorder %v1694, %v1605
        %v1696 = vsel %vm1695, %v1694, %v1605
        %vm1697 = vcmp.lt.s32.totalorder %v1696, %v1613
        %v1698 = vsel %vm1697, %v1696, %v1613
        %vm1699 = vcmp.lt.s32.totalorder %v1698, %v1621
        %v1700 = vsel %vm1699, %v1698, %v1621
        %vm1701 = vcmp.lt.s32.totalorder %v1700, %v1629
        %v1702 = vsel %vm1701, %v1700, %v1629
        %vm1703 = vcmp.lt.s32.totalorder %v1702, %v1637
        %v1704 = vsel %vm1703, %v1702, %v1637
        %vm1705 = vcmp.lt.s32.totalorder %v1704, %v1645
        %v1706 = vsel %vm1705, %v1704, %v1645
        %vm1707 = vcmp.lt.s32.totalorder %v1706, %v1653
        %v1708 = vsel %vm1707, %v1706, %v1653
        %vm1709 = vcmp.lt.s32.totalorder %v1708, %v1661
        %v1710 = vsel %vm1709, %v1708, %v1661
        %vm1711 = vcmp.lt.s32.totalorder %v1710, %v1669
        %v1712 = vsel %vm1711, %v1710, %v1669
        %vm1713 = vcmp.lt.s32.totalorder %v1712, %v1677
        %v1714 = vsel %vm1713, %v1712, %v1677
        %v1715 = vrot.slane %v1714, 4
        %vm1716 = vcmp.lt.s32.totalorder %v1714, %v1715
        %v1717 = vsel %vm1716, %v1714, %v1715
        %v1718 = vrot.slane %v1717, 2
        %vm1719 = vcmp.lt.s32.totalorder %v1717, %v1718
        %v1720 = vsel %vm1719, %v1717, %v1718
        %v1721 = vrot.slane %v1720, 1
        %vm1722 = vcmp.lt.s32.totalorder %v1720, %v1721
        %v1723 = vsel %vm1722, %v1720, %v1721
        %vm1724 = vcmp.lt.s32.totalorder %v1558, %v1566
        %v1725 = vsel %vm1724, %v1558, %v1566
        %vm1726 = vcmp.lt.s32.totalorder %v1725, %v1574
        %v1727 = vsel %vm1726, %v1725, %v1574
        %vm1728 = vcmp.lt.s32.totalorder %v1727, %v1582
        %v1729 = vsel %vm1728, %v1727, %v1582
        %vm1730 = vcmp.lt.s32.totalorder %v1729, %v1590
        %v1731 = vsel %vm1730, %v1729, %v1590
        %vm1732 = vcmp.lt.s32.totalorder %v1731, %v1598
        %v1733 = vsel %vm1732, %v1731, %v1598
        %vm1734 = vcmp.lt.s32.totalorder %v1733, %v1606
        %v1735 = vsel %vm1734, %v1733, %v1606
        %vm1736 = vcmp.lt.s32.totalorder %v1735, %v1614
        %v1737 = vsel %vm1736, %v1735, %v1614
        %vm1738 = vcmp.lt.s32.totalorder %v1737, %v1622
        %v1739 = vsel %vm1738, %v1737, %v1622
        %vm1740 = vcmp.lt.s32.totalorder %v1739, %v1630
        %v1741 = vsel %vm1740, %v1739, %v1630
        %vm1742 = vcmp.lt.s32.totalorder %v1741, %v1638
        %v1743 = vsel %vm1742, %v1741, %v1638
        %vm1744 = vcmp.lt.s32.totalorder %v1743, %v1646
        %v1745 = vsel %vm1744, %v1743, %v1646
        %vm1746 = vcmp.lt.s32.totalorder %v1745, %v1654
        %v1747 = vsel %vm1746, %v1745, %v1654
        %vm1748 = vcmp.lt.s32.totalorder %v1747, %v1662
        %v1749 = vsel %vm1748, %v1747, %v1662
        %vm1750 = vcmp.lt.s32.totalorder %v1749, %v1670
        %v1751 = vsel %vm1750, %v1749, %v1670
        %vm1752 = vcmp.lt.s32.totalorder %v1751, %v1678
        %v1753 = vsel %vm1752, %v1751, %v1678
        %v1754 = vrot.slane %v1753, 4
        %vm1755 = vcmp.lt.s32.totalorder %v1753, %v1754
        %v1756 = vsel %vm1755, %v1753, %v1754
        %v1757 = vrot.slane %v1756, 2
        %vm1758 = vcmp.lt.s32.totalorder %v1756, %v1757
        %v1759 = vsel %vm1758, %v1756, %v1757
        %v1760 = vrot.slane %v1759, 1
        %vm1761 = vcmp.lt.s32.totalorder %v1759, %v1760
        %v1762 = vsel %vm1761, %v1759, %v1760
        %vm1763 = vcmp.lt.s32.totalorder %v1559, %v1567
        %v1764 = vsel %vm1763, %v1559, %v1567
        %vm1765 = vcmp.lt.s32.totalorder %v1764, %v1575
        %v1766 = vsel %vm1765, %v1764, %v1575
        %vm1767 = vcmp.lt.s32.totalorder %v1766, %v1583
        %v1768 = vsel %vm1767, %v1766, %v1583
        %vm1769 = vcmp.lt.s32.totalorder %v1768, %v1591
        %v1770 = vsel %vm1769, %v1768, %v1591
        %vm1771 = vcmp.lt.s32.totalorder %v1770, %v1599
        %v1772 = vsel %vm1771, %v1770, %v1599
        %vm1773 = vcmp.lt.s32.totalorder %v1772, %v1607
        %v1774 = vsel %vm1773, %v1772, %v1607
        %vm1775 = vcmp.lt.s32.totalorder %v1774, %v1615
        %v1776 = vsel %vm1775, %v1774, %v1615
        %vm1777 = vcmp.lt.s32.totalorder %v1776, %v1623
        %v1778 = vsel %vm1777, %v1776, %v1623
        %vm1779 = vcmp.lt.s32.totalorder %v1778, %v1631
        %v1780 = vsel %vm1779, %v1778, %v1631
        %vm1781 = vcmp.lt.s32.totalorder %v1780, %v1639
        %v1782 = vsel %vm1781, %v1780, %v1639
        %vm1783 = vcmp.lt.s32.totalorder %v1782, %v1647
        %v1784 = vsel %vm1783, %v1782, %v1647
        %vm1785 = vcmp.lt.s32.totalorder %v1784, %v1655
        %v1786 = vsel %vm1785, %v1784, %v1655
        %vm1787 = vcmp.lt.s32.totalorder %v1786, %v1663
        %v1788 = vsel %vm1787, %v1786, %v1663
        %vm1789 = vcmp.lt.s32.totalorder %v1788, %v1671
        %v1790 = vsel %vm1789, %v1788, %v1671
        %vm1791 = vcmp.lt.s32.totalorder %v1790, %v1679
        %v1792 = vsel %vm1791, %v1790, %v1679
        %v1793 = vrot.slane %v1792, 4
        %vm1794 = vcmp.lt.s32.totalorder %v1792, %v1793
        %v1795 = vsel %vm1794, %v1792, %v1793
        %v1796 = vrot.slane %v1795, 2
        %vm1797 = vcmp.lt.s32.totalorder %v1795, %v1796
        %v1798 = vsel %vm1797, %v1795, %v1796
        %v1799 = vrot.slane %v1798, 1
        %vm1800 = vcmp.lt.s32.totalorder %v1798, %v1799
        %v1801 = vsel %vm1800, %v1798, %v1799
        %vm1802 = vcmp.lt.s32.totalorder %v1560, %v1568
        %v1803 = vsel %vm1802, %v1560, %v1568
        %vm1804 = vcmp.lt.s32.totalorder %v1803, %v1576
        %v1805 = vsel %vm1804, %v1803, %v1576
        %vm1806 = vcmp.lt.s32.totalorder %v1805, %v1584
        %v1807 = vsel %vm1806, %v1805, %v1584
        %vm1808 = vcmp.lt.s32.totalorder %v1807, %v1592
        %v1809 = vsel %vm1808, %v1807, %v1592
        %vm1810 = vcmp.lt.s32.totalorder %v1809, %v1600
        %v1811 = vsel %vm1810, %v1809, %v1600
        %vm1812 = vcmp.lt.s32.totalorder %v1811, %v1608
        %v1813 = vsel %vm1812, %v1811, %v1608
        %vm1814 = vcmp.lt.s32.totalorder %v1813, %v1616
        %v1815 = vsel %vm1814, %v1813, %v1616
        %vm1816 = vcmp.lt.s32.totalorder %v1815, %v1624
        %v1817 = vsel %vm1816, %v1815, %v1624
        %vm1818 = vcmp.lt.s32.totalorder %v1817, %v1632
        %v1819 = vsel %vm1818, %v1817, %v1632
        %vm1820 = vcmp.lt.s32.totalorder %v1819, %v1640
        %v1821 = vsel %vm1820, %v1819, %v1640
        %vm1822 = vcmp.lt.s32.totalorder %v1821, %v1648
        %v1823 = vsel %vm1822, %v1821, %v1648
        %vm1824 = vcmp.lt.s32.totalorder %v1823, %v1656
        %v1825 = vsel %vm1824, %v1823, %v1656
        %vm1826 = vcmp.lt.s32.totalorder %v1825, %v1664
        %v1827 = vsel %vm1826, %v1825, %v1664
        %vm1828 = vcmp.lt.s32.totalorder %v1827, %v1672
        %v1829 = vsel %vm1828, %v1827, %v1672
        %vm1830 = vcmp.lt.s32.totalorder %v1829, %v1680
        %v1831 = vsel %vm1830, %v1829, %v1680
        %v1832 = vrot.slane %v1831, 4
        %vm1833 = vcmp.lt.s32.totalorder %v1831, %v1832
        %v1834 = vsel %vm1833, %v1831, %v1832
        %v1835 = vrot.slane %v1834, 2
        %vm1836 = vcmp.lt.s32.totalorder %v1834, %v1835
        %v1837 = vsel %vm1836, %v1834, %v1835
        %v1838 = vrot.slane %v1837, 1
        %vm1839 = vcmp.lt.s32.totalorder %v1837, %v1838
        %v1840 = vsel %vm1839, %v1837, %v1838
        %vm1841 = vcmp.lt.s32.totalorder %v1561, %v1569
        %v1842 = vsel %vm1841, %v1561, %v1569
        %vm1843 = vcmp.lt.s32.totalorder %v1842, %v1577
        %v1844 = vsel %vm1843, %v1842, %v1577
        %vm1845 = vcmp.lt.s32.totalorder %v1844, %v1585
        %v1846 = vsel %vm1845, %v1844, %v1585
        %vm1847 = vcmp.lt.s32.totalorder %v1846, %v1593
        %v1848 = vsel %vm1847, %v1846, %v1593
        %vm1849 = vcmp.lt.s32.totalorder %v1848, %v1601
        %v1850 = vsel %vm1849, %v1848, %v1601
        %vm1851 = vcmp.lt.s32.totalorder %v1850, %v1609
        %v1852 = vsel %vm1851, %v1850, %v1609
        %vm1853 = vcmp.lt.s32.totalorder %v1852, %v1617
        %v1854 = vsel %vm1853, %v1852, %v1617
        %vm1855 = vcmp.lt.s32.totalorder %v1854, %v1625
        %v1856 = vsel %vm1855, %v1854, %v1625
        %vm1857 = vcmp.lt.s32.totalorder %v1856, %v1633
        %v1858 = vsel %vm1857, %v1856, %v1633
        %vm1859 = vcmp.lt.s32.totalorder %v1858, %v1641
        %v1860 = vsel %vm1859, %v1858, %v1641
        %vm1861 = vcmp.lt.s32.totalorder %v1860, %v1649
        %v1862 = vsel %vm1861, %v1860, %v1649
        %vm1863 = vcmp.lt.s32.totalorder %v1862, %v1657
        %v1864 = vsel %vm1863, %v1862, %v1657
        %vm1865 = vcmp.lt.s32.totalorder %v1864, %v1665
        %v1866 = vsel %vm1865, %v1864, %v1665
        %vm1867 = vcmp.lt.s32.totalorder %v1866, %v1673
        %v1868 = vsel %vm1867, %v1866, %v1673
        %vm1869 = vcmp.lt.s32.totalorder %v1868, %v1681
        %v1870 = vsel %vm1869, %v1868, %v1681
        %v1871 = vrot.slane %v1870, 4
        %vm1872 = vcmp.lt.s32.totalorder %v1870, %v1871
        %v1873 = vsel %vm1872, %v1870, %v1871
        %v1874 = vrot.slane %v1873, 2
        %vm1875 = vcmp.lt.s32.totalorder %v1873, %v1874
        %v1876 = vsel %vm1875, %v1873, %v1874
        %v1877 = vrot.slane %v1876, 1
        %vm1878 = vcmp.lt.s32.totalorder %v1876, %v1877
        %v1879 = vsel %vm1878, %v1876, %v1877
        %vm1880 = vcmp.lt.s32.totalorder %v1562, %v1570
        %v1881 = vsel %vm1880, %v1562, %v1570
        %vm1882 = vcmp.lt.s32.totalorder %v1881, %v1578
        %v1883 = vsel %vm1882, %v1881, %v1578
        %vm1884 = vcmp.lt.s32.totalorder %v1883, %v1586
        %v1885 = vsel %vm1884, %v1883, %v1586
        %vm1886 = vcmp.lt.s32.totalorder %v1885, %v1594
        %v1887 = vsel %vm1886, %v1885, %v1594
        %vm1888 = vcmp.lt.s32.totalorder %v1887, %v1602
        %v1889 = vsel %vm1888, %v1887, %v1602
        %vm1890 = vcmp.lt.s32.totalorder %v1889, %v1610
        %v1891 = vsel %vm1890, %v1889, %v1610
        %vm1892 = vcmp.lt.s32.totalorder %v1891, %v1618
        %v1893 = vsel %vm1892, %v1891, %v1618
        %vm1894 = vcmp.lt.s32.totalorder %v1893, %v1626
        %v1895 = vsel %vm1894, %v1893, %v1626
        %vm1896 = vcmp.lt.s32.totalorder %v1895, %v1634
        %v1897 = vsel %vm1896, %v1895, %v1634
        %vm1898 = vcmp.lt.s32.totalorder %v1897, %v1642
        %v1899 = vsel %vm1898, %v1897, %v1642
        %vm1900 = vcmp.lt.s32.totalorder %v1899, %v1650
        %v1901 = vsel %vm1900, %v1899, %v1650
        %vm1902 = vcmp.lt.s32.totalorder %v1901, %v1658
        %v1903 = vsel %vm1902, %v1901, %v1658
        %vm1904 = vcmp.lt.s32.totalorder %v1903, %v1666
        %v1905 = vsel %vm1904, %v1903, %v1666
        %vm1906 = vcmp.lt.s32.totalorder %v1905, %v1674
        %v1907 = vsel %vm1906, %v1905, %v1674
        %vm1908 = vcmp.lt.s32.totalorder %v1907, %v1682
        %v1909 = vsel %vm1908, %v1907, %v1682
        %v1910 = vrot.slane %v1909, 4
        %vm1911 = vcmp.lt.s32.totalorder %v1909, %v1910
        %v1912 = vsel %vm1911, %v1909, %v1910
        %v1913 = vrot.slane %v1912, 2
        %vm1914 = vcmp.lt.s32.totalorder %v1912, %v1913
        %v1915 = vsel %vm1914, %v1912, %v1913
        %v1916 = vrot.slane %v1915, 1
        %vm1917 = vcmp.lt.s32.totalorder %v1915, %v1916
        %v1918 = vsel %vm1917, %v1915, %v1916
        %vm1919 = vcmp.lt.s32.totalorder %v1563, %v1571
        %v1920 = vsel %vm1919, %v1563, %v1571
        %vm1921 = vcmp.lt.s32.totalorder %v1920, %v1579
        %v1922 = vsel %vm1921, %v1920, %v1579
        %vm1923 = vcmp.lt.s32.totalorder %v1922, %v1587
        %v1924 = vsel %vm1923, %v1922, %v1587
        %vm1925 = vcmp.lt.s32.totalorder %v1924, %v1595
        %v1926 = vsel %vm1925, %v1924, %v1595
        %vm1927 = vcmp.lt.s32.totalorder %v1926, %v1603
        %v1928 = vsel %vm1927, %v1926, %v1603
        %vm1929 = vcmp.lt.s32.totalorder %v1928, %v1611
        %v1930 = vsel %vm1929, %v1928, %v1611
        %vm1931 = vcmp.lt.s32.totalorder %v1930, %v1619
        %v1932 = vsel %vm1931, %v1930, %v1619
        %vm1933 = vcmp.lt.s32.totalorder %v1932, %v1627
        %v1934 = vsel %vm1933, %v1932, %v1627
        %vm1935 = vcmp.lt.s32.totalorder %v1934, %v1635
        %v1936 = vsel %vm1935, %v1934, %v1635
        %vm1937 = vcmp.lt.s32.totalorder %v1936, %v1643
        %v1938 = vsel %vm1937, %v1936, %v1643
        %vm1939 = vcmp.lt.s32.totalorder %v1938, %v1651
        %v1940 = vsel %vm1939, %v1938, %v1651
        %vm1941 = vcmp.lt.s32.totalorder %v1940, %v1659
        %v1942 = vsel %vm1941, %v1940, %v1659
        %vm1943 = vcmp.lt.s32.totalorder %v1942, %v1667
        %v1944 = vsel %vm1943, %v1942, %v1667
        %vm1945 = vcmp.lt.s32.totalorder %v1944, %v1675
        %v1946 = vsel %vm1945, %v1944, %v1675
        %vm1947 = vcmp.lt.s32.totalorder %v1946, %v1683
        %v1948 = vsel %vm1947, %v1946, %v1683
        %v1949 = vrot.slane %v1948, 4
        %vm1950 = vcmp.lt.s32.totalorder %v1948, %v1949
        %v1951 = vsel %vm1950, %v1948, %v1949
        %v1952 = vrot.slane %v1951, 2
        %vm1953 = vcmp.lt.s32.totalorder %v1951, %v1952
        %v1954 = vsel %vm1953, %v1951, %v1952
        %v1955 = vrot.slane %v1954, 1
        %vm1956 = vcmp.lt.s32.totalorder %v1954, %v1955
        %v1957 = vsel %vm1956, %v1954, %v1955
        %vm1958 = vcmp.lt.s32.totalorder %v1564, %v1572
        %v1959 = vsel %vm1958, %v1564, %v1572
        %vm1960 = vcmp.lt.s32.totalorder %v1959, %v1580
        %v1961 = vsel %vm1960, %v1959, %v1580
        %vm1962 = vcmp.lt.s32.totalorder %v1961, %v1588
        %v1963 = vsel %vm1962, %v1961, %v1588
        %vm1964 = vcmp.lt.s32.totalorder %v1963, %v1596
        %v1965 = vsel %vm1964, %v1963, %v1596
        %vm1966 = vcmp.lt.s32.totalorder %v1965, %v1604
        %v1967 = vsel %vm1966, %v1965, %v1604
        %vm1968 = vcmp.lt.s32.totalorder %v1967, %v1612
        %v1969 = vsel %vm1968, %v1967, %v1612
        %vm1970 = vcmp.lt.s32.totalorder %v1969, %v1620
        %v1971 = vsel %vm1970, %v1969, %v1620
        %vm1972 = vcmp.lt.s32.totalorder %v1971, %v1628
        %v1973 = vsel %vm1972, %v1971, %v1628
        %vm1974 = vcmp.lt.s32.totalorder %v1973, %v1636
        %v1975 = vsel %vm1974, %v1973, %v1636
        %vm1976 = vcmp.lt.s32.totalorder %v1975, %v1644
        %v1977 = vsel %vm1976, %v1975, %v1644
        %vm1978 = vcmp.lt.s32.totalorder %v1977, %v1652
        %v1979 = vsel %vm1978, %v1977, %v1652
        %vm1980 = vcmp.lt.s32.totalorder %v1979, %v1660
        %v1981 = vsel %vm1980, %v1979, %v1660
        %vm1982 = vcmp.lt.s32.totalorder %v1981, %v1668
        %v1983 = vsel %vm1982, %v1981, %v1668
        %vm1984 = vcmp.lt.s32.totalorder %v1983, %v1676
        %v1985 = vsel %vm1984, %v1983, %v1676
        %vm1986 = vcmp.lt.s32.totalorder %v1985, %v1684
        %v1987 = vsel %vm1986, %v1985, %v1684
        %v1988 = vrot.slane %v1987, 4
        %vm1989 = vcmp.lt.s32.totalorder %v1987, %v1988
        %v1990 = vsel %vm1989, %v1987, %v1988
        %v1991 = vrot.slane %v1990, 2
        %vm1992 = vcmp.lt.s32.totalorder %v1990, %v1991
        %v1993 = vsel %vm1992, %v1990, %v1991
        %v1994 = vrot.slane %v1993, 1
        %vm1995 = vcmp.lt.s32.totalorder %v1993, %v1994
        %v1996 = vsel %vm1995, %v1993, %v1994
        %vm1997 = vcmp.eq.s32.totalorder %v1413, %v1723
        %vm1998 = vcmp.eq.s32.totalorder %v1413, %v1762
        %vm1999 = vcmp.eq.s32.totalorder %v1413, %v1801
        %vm2000 = vcmp.eq.s32.totalorder %v1413, %v1840
        %vm2001 = vcmp.eq.s32.totalorder %v1413, %v1879
        %vm2002 = vcmp.eq.s32.totalorder %v1413, %v1918
        %vm2003 = vcmp.eq.s32.totalorder %v1413, %v1957
        %vm2004 = vcmp.eq.s32.totalorder %v1413, %v1996
        %vm2005 = vcmp.eq.s32.totalorder %v1414, %v1723
        %vm2006 = vcmp.eq.s32.totalorder %v1414, %v1762
        %vm2007 = vcmp.eq.s32.totalorder %v1414, %v1801
        %vm2008 = vcmp.eq.s32.totalorder %v1414, %v1840
        %vm2009 = vcmp.eq.s32.totalorder %v1414, %v1879
        %vm2010 = vcmp.eq.s32.totalorder %v1414, %v1918
        %vm2011 = vcmp.eq.s32.totalorder %v1414, %v1957
        %vm2012 = vcmp.eq.s32.totalorder %v1414, %v1996
        %vm2013 = vcmp.eq.s32.totalorder %v1415, %v1723
        %vm2014 = vcmp.eq.s32.totalorder %v1415, %v1762
        %vm2015 = vcmp.eq.s32.totalorder %v1415, %v1801
        %vm2016 = vcmp.eq.s32.totalorder %v1415, %v1840
        %vm2017 = vcmp.eq.s32.totalorder %v1415, %v1879
        %vm2018 = vcmp.eq.s32.totalorder %v1415, %v1918
        %vm2019 = vcmp.eq.s32.totalorder %v1415, %v1957
        %vm2020 = vcmp.eq.s32.totalorder %v1415, %v1996
        %vm2021 = vcmp.eq.s32.totalorder %v1416, %v1723
        %vm2022 = vcmp.eq.s32.totalorder %v1416, %v1762
        %vm2023 = vcmp.eq.s32.totalorder %v1416, %v1801
        %vm2024 = vcmp.eq.s32.totalorder %v1416, %v1840
        %vm2025 = vcmp.eq.s32.totalorder %v1416, %v1879
        %vm2026 = vcmp.eq.s32.totalorder %v1416, %v1918
        %vm2027 = vcmp.eq.s32.totalorder %v1416, %v1957
        %vm2028 = vcmp.eq.s32.totalorder %v1416, %v1996
        %vm2029 = vcmp.eq.s32.totalorder %v1417, %v1723
        %vm2030 = vcmp.eq.s32.totalorder %v1417, %v1762
        %vm2031 = vcmp.eq.s32.totalorder %v1417, %v1801
        %vm2032 = vcmp.eq.s32.totalorder %v1417, %v1840
        %vm2033 = vcmp.eq.s32.totalorder %v1417, %v1879
        %vm2034 = vcmp.eq.s32.totalorder %v1417, %v1918
        %vm2035 = vcmp.eq.s32.totalorder %v1417, %v1957
        %vm2036 = vcmp.eq.s32.totalorder %v1417, %v1996
        %vm2037 = vcmp.eq.s32.totalorder %v1418, %v1723
        %vm2038 = vcmp.eq.s32.totalorder %v1418, %v1762
        %vm2039 = vcmp.eq.s32.totalorder %v1418, %v1801
        %vm2040 = vcmp.eq.s32.totalorder %v1418, %v1840
        %vm2041 = vcmp.eq.s32.totalorder %v1418, %v1879
        %vm2042 = vcmp.eq.s32.totalorder %v1418, %v1918
        %vm2043 = vcmp.eq.s32.totalorder %v1418, %v1957
        %vm2044 = vcmp.eq.s32.totalorder %v1418, %v1996
        %vm2045 = vcmp.eq.s32.totalorder %v1419, %v1723
        %vm2046 = vcmp.eq.s32.totalorder %v1419, %v1762
        %vm2047 = vcmp.eq.s32.totalorder %v1419, %v1801
        %vm2048 = vcmp.eq.s32.totalorder %v1419, %v1840
        %vm2049 = vcmp.eq.s32.totalorder %v1419, %v1879
        %vm2050 = vcmp.eq.s32.totalorder %v1419, %v1918
        %vm2051 = vcmp.eq.s32.totalorder %v1419, %v1957
        %vm2052 = vcmp.eq.s32.totalorder %v1419, %v1996
        %vm2053 = vcmp.eq.s32.totalorder %v1420, %v1723
        %vm2054 = vcmp.eq.s32.totalorder %v1420, %v1762
        %vm2055 = vcmp.eq.s32.totalorder %v1420, %v1801
        %vm2056 = vcmp.eq.s32.totalorder %v1420, %v1840
        %vm2057 = vcmp.eq.s32.totalorder %v1420, %v1879
        %vm2058 = vcmp.eq.s32.totalorder %v1420, %v1918
        %vm2059 = vcmp.eq.s32.totalorder %v1420, %v1957
        %vm2060 = vcmp.eq.s32.totalorder %v1420, %v1996
        %vm2061 = vcmp.eq.s32.totalorder %v1421, %v1723
        %vm2062 = vcmp.eq.s32.totalorder %v1421, %v1762
        %vm2063 = vcmp.eq.s32.totalorder %v1421, %v1801
        %vm2064 = vcmp.eq.s32.totalorder %v1421, %v1840
        %vm2065 = vcmp.eq.s32.totalorder %v1421, %v1879
        %vm2066 = vcmp.eq.s32.totalorder %v1421, %v1918
        %vm2067 = vcmp.eq.s32.totalorder %v1421, %v1957
        %vm2068 = vcmp.eq.s32.totalorder %v1421, %v1996
        %vm2069 = vcmp.eq.s32.totalorder %v1422, %v1723
        %vm2070 = vcmp.eq.s32.totalorder %v1422, %v1762
        %vm2071 = vcmp.eq.s32.totalorder %v1422, %v1801
        %vm2072 = vcmp.eq.s32.totalorder %v1422, %v1840
        %vm2073 = vcmp.eq.s32.totalorder %v1422, %v1879
        %vm2074 = vcmp.eq.s32.totalorder %v1422, %v1918
        %vm2075 = vcmp.eq.s32.totalorder %v1422, %v1957
        %vm2076 = vcmp.eq.s32.totalorder %v1422, %v1996
        %vm2077 = vcmp.eq.s32.totalorder %v1423, %v1723
        %vm2078 = vcmp.eq.s32.totalorder %v1423, %v1762
        %vm2079 = vcmp.eq.s32.totalorder %v1423, %v1801
        %vm2080 = vcmp.eq.s32.totalorder %v1423, %v1840
        %vm2081 = vcmp.eq.s32.totalorder %v1423, %v1879
        %vm2082 = vcmp.eq.s32.totalorder %v1423, %v1918
        %vm2083 = vcmp.eq.s32.totalorder %v1423, %v1957
        %vm2084 = vcmp.eq.s32.totalorder %v1423, %v1996
        %vm2085 = vcmp.eq.s32.totalorder %v1424, %v1723
        %vm2086 = vcmp.eq.s32.totalorder %v1424, %v1762
        %vm2087 = vcmp.eq.s32.totalorder %v1424, %v1801
        %vm2088 = vcmp.eq.s32.totalorder %v1424, %v1840
        %vm2089 = vcmp.eq.s32.totalorder %v1424, %v1879
        %vm2090 = vcmp.eq.s32.totalorder %v1424, %v1918
        %vm2091 = vcmp.eq.s32.totalorder %v1424, %v1957
        %vm2092 = vcmp.eq.s32.totalorder %v1424, %v1996
        %vm2093 = vcmp.eq.s32.totalorder %v1425, %v1723
        %vm2094 = vcmp.eq.s32.totalorder %v1425, %v1762
        %vm2095 = vcmp.eq.s32.totalorder %v1425, %v1801
        %vm2096 = vcmp.eq.s32.totalorder %v1425, %v1840
        %vm2097 = vcmp.eq.s32.totalorder %v1425, %v1879
        %vm2098 = vcmp.eq.s32.totalorder %v1425, %v1918
        %vm2099 = vcmp.eq.s32.totalorder %v1425, %v1957
        %vm2100 = vcmp.eq.s32.totalorder %v1425, %v1996
        %vm2101 = vcmp.eq.s32.totalorder %v1426, %v1723
        %vm2102 = vcmp.eq.s32.totalorder %v1426, %v1762
        %vm2103 = vcmp.eq.s32.totalorder %v1426, %v1801
        %vm2104 = vcmp.eq.s32.totalorder %v1426, %v1840
        %vm2105 = vcmp.eq.s32.totalorder %v1426, %v1879
        %vm2106 = vcmp.eq.s32.totalorder %v1426, %v1918
        %vm2107 = vcmp.eq.s32.totalorder %v1426, %v1957
        %vm2108 = vcmp.eq.s32.totalorder %v1426, %v1996
        %vm2109 = vcmp.eq.s32.totalorder %v1427, %v1723
        %vm2110 = vcmp.eq.s32.totalorder %v1427, %v1762
        %vm2111 = vcmp.eq.s32.totalorder %v1427, %v1801
        %vm2112 = vcmp.eq.s32.totalorder %v1427, %v1840
        %vm2113 = vcmp.eq.s32.totalorder %v1427, %v1879
        %vm2114 = vcmp.eq.s32.totalorder %v1427, %v1918
        %vm2115 = vcmp.eq.s32.totalorder %v1427, %v1957
        %vm2116 = vcmp.eq.s32.totalorder %v1427, %v1996
        %vm2117 = vcmp.eq.s32.totalorder %v1428, %v1723
        %vm2118 = vcmp.eq.s32.totalorder %v1428, %v1762
        %vm2119 = vcmp.eq.s32.totalorder %v1428, %v1801
        %vm2120 = vcmp.eq.s32.totalorder %v1428, %v1840
        %vm2121 = vcmp.eq.s32.totalorder %v1428, %v1879
        %vm2122 = vcmp.eq.s32.totalorder %v1428, %v1918
        %vm2123 = vcmp.eq.s32.totalorder %v1428, %v1957
        %vm2124 = vcmp.eq.s32.totalorder %v1428, %v1996
        %v2125 = vsel %vm1997, 1, 0
        %v2126 = vsel %vm1998, 1, 0
        %v2127 = vsel %vm1999, 1, 0
        %v2128 = vsel %vm2000, 1, 0
        %v2129 = vsel %vm2001, 1, 0
        %v2130 = vsel %vm2002, 1, 0
        %v2131 = vsel %vm2003, 1, 0
        %v2132 = vsel %vm2004, 1, 0
        %v2133 = vsel %vm2005, 1, 0
        %v2134 = vsel %vm2006, 1, 0
        %v2135 = vsel %vm2007, 1, 0
        %v2136 = vsel %vm2008, 1, 0
        %v2137 = vsel %vm2009, 1, 0
        %v2138 = vsel %vm2010, 1, 0
        %v2139 = vsel %vm2011, 1, 0
        %v2140 = vsel %vm2012, 1, 0
        %v2141 = vsel %vm2013, 1, 0
        %v2142 = vsel %vm2014, 1, 0
        %v2143 = vsel %vm2015, 1, 0
        %v2144 = vsel %vm2016, 1, 0
        %v2145 = vsel %vm2017, 1, 0
        %v2146 = vsel %vm2018, 1, 0
        %v2147 = vsel %vm2019, 1, 0
        %v2148 = vsel %vm2020, 1, 0
        %v2149 = vsel %vm2021, 1, 0
        %v2150 = vsel %vm2022, 1, 0
        %v2151 = vsel %vm2023, 1, 0
        %v2152 = vsel %vm2024, 1, 0
        %v2153 = vsel %vm2025, 1, 0
        %v2154 = vsel %vm2026, 1, 0
        %v2155 = vsel %vm2027, 1, 0
        %v2156 = vsel %vm2028, 1, 0
        %v2157 = vsel %vm2029, 1, 0
        %v2158 = vsel %vm2030, 1, 0
        %v2159 = vsel %vm2031, 1, 0
        %v2160 = vsel %vm2032, 1, 0
        %v2161 = vsel %vm2033, 1, 0
        %v2162 = vsel %vm2034, 1, 0
        %v2163 = vsel %vm2035, 1, 0
        %v2164 = vsel %vm2036, 1, 0
        %v2165 = vsel %vm2037, 1, 0
        %v2166 = vsel %vm2038, 1, 0
        %v2167 = vsel %vm2039, 1, 0
        %v2168 = vsel %vm2040, 1, 0
        %v2169 = vsel %vm2041, 1, 0
        %v2170 = vsel %vm2042, 1, 0
        %v2171 = vsel %vm2043, 1, 0
        %v2172 = vsel %vm2044, 1, 0
        %v2173 = vsel %vm2045, 1, 0
        %v2174 = vsel %vm2046, 1, 0
        %v2175 = vsel %vm2047, 1, 0
        %v2176 = vsel %vm2048, 1, 0
        %v2177 = vsel %vm2049, 1, 0
        %v2178 = vsel %vm2050, 1, 0
        %v2179 = vsel %vm2051, 1, 0
        %v2180 = vsel %vm2052, 1, 0
        %v2181 = vsel %vm2053, 1, 0
        %v2182 = vsel %vm2054, 1, 0
        %v2183 = vsel %vm2055, 1, 0
        %v2184 = vsel %vm2056, 1, 0
        %v2185 = vsel %vm2057, 1, 0
        %v2186 = vsel %vm2058, 1, 0
        %v2187 = vsel %vm2059, 1, 0
        %v2188 = vsel %vm2060, 1, 0
        %v2189 = vsel %vm2061, 1, 0
        %v2190 = vsel %vm2062, 1, 0
        %v2191 = vsel %vm2063, 1, 0
        %v2192 = vsel %vm2064, 1, 0
        %v2193 = vsel %vm2065, 1, 0
        %v2194 = vsel %vm2066, 1, 0
        %v2195 = vsel %vm2067, 1, 0
        %v2196 = vsel %vm2068, 1, 0
        %v2197 = vsel %vm2069, 1, 0
        %v2198 = vsel %vm2070, 1, 0
        %v2199 = vsel %vm2071, 1, 0
        %v2200 = vsel %vm2072, 1, 0
        %v2201 = vsel %vm2073, 1, 0
        %v2202 = vsel %vm2074, 1, 0
        %v2203 = vsel %vm2075, 1, 0
        %v2204 = vsel %vm2076, 1, 0
        %v2205 = vsel %vm2077, 1, 0
        %v2206 = vsel %vm2078, 1, 0
        %v2207 = vsel %vm2079, 1, 0
        %v2208 = vsel %vm2080, 1, 0
        %v2209 = vsel %vm2081, 1, 0
        %v2210 = vsel %vm2082, 1, 0
        %v2211 = vsel %vm2083, 1, 0
        %v2212 = vsel %vm2084, 1, 0
        %v2213 = vsel %vm2085, 1, 0
        %v2214 = vsel %vm2086, 1, 0
        %v2215 = vsel %vm2087, 1, 0
        %v2216 = vsel %vm2088, 1, 0
        %v2217 = vsel %vm2089, 1, 0
        %v2218 = vsel %vm2090, 1, 0
        %v2219 = vsel %vm2091, 1, 0
        %v2220 = vsel %vm2092, 1, 0
        %v2221 = vsel %vm2093, 1, 0
        %v2222 = vsel %vm2094, 1, 0
        %v2223 = vsel %vm2095, 1, 0
        %v2224 = vsel %vm2096, 1, 0
        %v2225 = vsel %vm2097, 1, 0
        %v2226 = vsel %vm2098, 1, 0
        %v2227 = vsel %vm2099, 1, 0
        %v2228 = vsel %vm2100, 1, 0
        %v2229 = vsel %vm2101, 1, 0
        %v2230 = vsel %vm2102, 1, 0
        %v2231 = vsel %vm2103, 1, 0
        %v2232 = vsel %vm2104, 1, 0
        %v2233 = vsel %vm2105, 1, 0
        %v2234 = vsel %vm2106, 1, 0
        %v2235 = vsel %vm2107, 1, 0
        %v2236 = vsel %vm2108, 1, 0
        %v2237 = vsel %vm2109, 1, 0
        %v2238 = vsel %vm2110, 1, 0
        %v2239 = vsel %vm2111, 1, 0
        %v2240 = vsel %vm2112, 1, 0
        %v2241 = vsel %vm2113, 1, 0
        %v2242 = vsel %vm2114, 1, 0
        %v2243 = vsel %vm2115, 1, 0
        %v2244 = vsel %vm2116, 1, 0
        %v2245 = vsel %vm2117, 1, 0
        %v2246 = vsel %vm2118, 1, 0
        %v2247 = vsel %vm2119, 1, 0
        %v2248 = vsel %vm2120, 1, 0
        %v2249 = vsel %vm2121, 1, 0
        %v2250 = vsel %vm2122, 1, 0
        %v2251 = vsel %vm2123, 1, 0
        %v2252 = vsel %vm2124, 1, 0
        %v2253 = vcvt.s32.f32 %v2125
        %v2254 = vcvt.s32.f32 %v2126
        %v2255 = vcvt.s32.f32 %v2127
        %v2256 = vcvt.s32.f32 %v2128
        %v2257 = vcvt.s32.f32 %v2129
        %v2258 = vcvt.s32.f32 %v2130
        %v2259 = vcvt.s32.f32 %v2131
        %v2260 = vcvt.s32.f32 %v2132
        %v2261 = vcvt.s32.f32 %v2133
        %v2262 = vcvt.s32.f32 %v2134
        %v2263 = vcvt.s32.f32 %v2135
        %v2264 = vcvt.s32.f32 %v2136
        %v2265 = vcvt.s32.f32 %v2137
        %v2266 = vcvt.s32.f32 %v2138
        %v2267 = vcvt.s32.f32 %v2139
        %v2268 = vcvt.s32.f32 %v2140
        %v2269 = vcvt.s32.f32 %v2141
        %v2270 = vcvt.s32.f32 %v2142
        %v2271 = vcvt.s32.f32 %v2143
        %v2272 = vcvt.s32.f32 %v2144
        %v2273 = vcvt.s32.f32 %v2145
        %v2274 = vcvt.s32.f32 %v2146
        %v2275 = vcvt.s32.f32 %v2147
        %v2276 = vcvt.s32.f32 %v2148
        %v2277 = vcvt.s32.f32 %v2149
        %v2278 = vcvt.s32.f32 %v2150
        %v2279 = vcvt.s32.f32 %v2151
        %v2280 = vcvt.s32.f32 %v2152
        %v2281 = vcvt.s32.f32 %v2153
        %v2282 = vcvt.s32.f32 %v2154
        %v2283 = vcvt.s32.f32 %v2155
        %v2284 = vcvt.s32.f32 %v2156
        %v2285 = vcvt.s32.f32 %v2157
        %v2286 = vcvt.s32.f32 %v2158
        %v2287 = vcvt.s32.f32 %v2159
        %v2288 = vcvt.s32.f32 %v2160
        %v2289 = vcvt.s32.f32 %v2161
        %v2290 = vcvt.s32.f32 %v2162
        %v2291 = vcvt.s32.f32 %v2163
        %v2292 = vcvt.s32.f32 %v2164
        %v2293 = vcvt.s32.f32 %v2165
        %v2294 = vcvt.s32.f32 %v2166
        %v2295 = vcvt.s32.f32 %v2167
        %v2296 = vcvt.s32.f32 %v2168
        %v2297 = vcvt.s32.f32 %v2169
        %v2298 = vcvt.s32.f32 %v2170
        %v2299 = vcvt.s32.f32 %v2171
        %v2300 = vcvt.s32.f32 %v2172
        %v2301 = vcvt.s32.f32 %v2173
        %v2302 = vcvt.s32.f32 %v2174
        %v2303 = vcvt.s32.f32 %v2175
        %v2304 = vcvt.s32.f32 %v2176
        %v2305 = vcvt.s32.f32 %v2177
        %v2306 = vcvt.s32.f32 %v2178
        %v2307 = vcvt.s32.f32 %v2179
        %v2308 = vcvt.s32.f32 %v2180
        %v2309 = vcvt.s32.f32 %v2181
        %v2310 = vcvt.s32.f32 %v2182
        %v2311 = vcvt.s32.f32 %v2183
        %v2312 = vcvt.s32.f32 %v2184
        %v2313 = vcvt.s32.f32 %v2185
        %v2314 = vcvt.s32.f32 %v2186
        %v2315 = vcvt.s32.f32 %v2187
        %v2316 = vcvt.s32.f32 %v2188
        %v2317 = vcvt.s32.f32 %v2189
        %v2318 = vcvt.s32.f32 %v2190
        %v2319 = vcvt.s32.f32 %v2191
        %v2320 = vcvt.s32.f32 %v2192
        %v2321 = vcvt.s32.f32 %v2193
        %v2322 = vcvt.s32.f32 %v2194
        %v2323 = vcvt.s32.f32 %v2195
        %v2324 = vcvt.s32.f32 %v2196
        %v2325 = vcvt.s32.f32 %v2197
        %v2326 = vcvt.s32.f32 %v2198
        %v2327 = vcvt.s32.f32 %v2199
        %v2328 = vcvt.s32.f32 %v2200
        %v2329 = vcvt.s32.f32 %v2201
        %v2330 = vcvt.s32.f32 %v2202
        %v2331 = vcvt.s32.f32 %v2203
        %v2332 = vcvt.s32.f32 %v2204
        %v2333 = vcvt.s32.f32 %v2205
        %v2334 = vcvt.s32.f32 %v2206
        %v2335 = vcvt.s32.f32 %v2207
        %v2336 = vcvt.s32.f32 %v2208
        %v2337 = vcvt.s32.f32 %v2209
        %v2338 = vcvt.s32.f32 %v2210
        %v2339 = vcvt.s32.f32 %v2211
        %v2340 = vcvt.s32.f32 %v2212
        %v2341 = vcvt.s32.f32 %v2213
        %v2342 = vcvt.s32.f32 %v2214
        %v2343 = vcvt.s32.f32 %v2215
        %v2344 = vcvt.s32.f32 %v2216
        %v2345 = vcvt.s32.f32 %v2217
        %v2346 = vcvt.s32.f32 %v2218
        %v2347 = vcvt.s32.f32 %v2219
        %v2348 = vcvt.s32.f32 %v2220
        %v2349 = vcvt.s32.f32 %v2221
        %v2350 = vcvt.s32.f32 %v2222
        %v2351 = vcvt.s32.f32 %v2223
        %v2352 = vcvt.s32.f32 %v2224
        %v2353 = vcvt.s32.f32 %v2225
        %v2354 = vcvt.s32.f32 %v2226
        %v2355 = vcvt.s32.f32 %v2227
        %v2356 = vcvt.s32.f32 %v2228
        %v2357 = vcvt.s32.f32 %v2229
        %v2358 = vcvt.s32.f32 %v2230
        %v2359 = vcvt.s32.f32 %v2231
        %v2360 = vcvt.s32.f32 %v2232
        %v2361 = vcvt.s32.f32 %v2233
        %v2362 = vcvt.s32.f32 %v2234
        %v2363 = vcvt.s32.f32 %v2235
        %v2364 = vcvt.s32.f32 %v2236
        %v2365 = vcvt.s32.f32 %v2237
        %v2366 = vcvt.s32.f32 %v2238
        %v2367 = vcvt.s32.f32 %v2239
        %v2368 = vcvt.s32.f32 %v2240
        %v2369 = vcvt.s32.f32 %v2241
        %v2370 = vcvt.s32.f32 %v2242
        %v2371 = vcvt.s32.f32 %v2243
        %v2372 = vcvt.s32.f32 %v2244
        %v2373 = vcvt.s32.f32 %v2245
        %v2374 = vcvt.s32.f32 %v2246
        %v2375 = vcvt.s32.f32 %v2247
        %v2376 = vcvt.s32.f32 %v2248
        %v2377 = vcvt.s32.f32 %v2249
        %v2378 = vcvt.s32.f32 %v2250
        %v2379 = vcvt.s32.f32 %v2251
        %v2380 = vcvt.s32.f32 %v2252
        %v2381 = vld [vmem:[%s2] sm:$0xff]
        %v2382 = vld [vmem:[%s2 + $0x8] sm:$0xff]
        %v2383 = vld [vmem:[%s2 + $0x10] sm:$0xff]
        %v2384 = vld [vmem:[%s2 + $0x18] sm:$0xff]
        %v2385 = vld [vmem:[%s2 + $0x20] sm:$0xff]
        %v2386 = vld [vmem:[%s2 + $0x28] sm:$0xff]
        %v2387 = vld [vmem:[%s2 + $0x30] sm:$0xff]
        %v2388 = vld [vmem:[%s2 + $0x38] sm:$0xff]
        %2389 = vmatprep.subr.mxu0 %v2374
        %2390 = vmatpush1.msra.mxu0 %v2373
        %2391 = vmatprep.subr.mxu0 %v2366
        %2392 = vmatpush1.msra.mxu0 %v2365
        %2393 = vmatprep.subr.mxu0 %v2358
        %2394 = vmatpush1.msra.mxu0 %v2357
        %2395 = vmatprep.subr.mxu0 %v2350
        %2396 = vmatpush1.msra.mxu0 %v2349
        %2397 = vmatprep.subr.mxu0 %v2342
        %2398 = vmatpush1.msra.mxu0 %v2341
        %2399 = vmatprep.subr.mxu0 %v2334
        %2400 = vmatpush1.msra.mxu0 %v2333
        %2401 = vmatprep.subr.mxu0 %v2326
        %2402 = vmatpush1.msra.mxu0 %v2325
        %2403 = vmatprep.subr.mxu0 %v2318
        %2404 = vmatpush1.msra.mxu0 %v2317
        %2405 = vmatprep.subr.mxu0 %v2310
        %2406 = vmatpush1.msra.mxu0 %v2309
        %2407 = vmatprep.subr.mxu0 %v2302
        %2408 = vmatpush1.msra.mxu0 %v2301
        %2409 = vmatprep.subr.mxu0 %v2294
        %2410 = vmatpush1.msra.mxu0 %v2293
        %2411 = vmatprep.subr.mxu0 %v2286
        %2412 = vmatpush1.msra.mxu0 %v2285
        %2413 = vmatprep.subr.mxu0 %v2278
        %2414 = vmatpush1.msra.mxu0 %v2277
        %2415 = vmatprep.subr.mxu0 %v2270
        %2416 = vmatpush1.msra.mxu0 %v2269
        %2417 = vmatprep.subr.mxu0 %v2262
        %2418 = vmatpush1.msra.mxu0 %v2261
        %2419 = vmatprep.subr.mxu0 %v2254
        %2420 = vmatpush1.msra.mxu0 %v2253
        %2421 = vmatprep.subr.mxu0 0.0
        %2422 = vmatpush2.msra.mxu0 0.0
        %2423 = vmatprep.subr.mxu0 0.0
        %2424 = vmatpush2.msra.mxu0 0.0
        %2425 = vmatprep.subr.mxu0 0.0
        %2426 = vmatpush2.msra.mxu0 0.0
        %2427 = vmatprep.subr.mxu0 0.0
        %2428 = vmatpush2.msra.mxu0 0.0
        %2429 = vmatprep.subr.mxu0 0.0
        %2430 = vmatpush2.msra.mxu0 0.0
        %2431 = vmatprep.subr.mxu0 0.0
        %2432 = vmatpush2.msra.mxu0 0.0
        %2433 = vmatprep.subr.mxu0 0.0
        %2434 = vmatpush2.msra.mxu0 0.0
        %2435 = vmatprep.subr.mxu0 0.0
        %2436 = vmatpush2.msra.mxu0 0.0
        %2437 = vmatprep.subr.mxu0 0.0
        %2438 = vmatpush2.msra.mxu0 0.0
        %2439 = vmatprep.subr.mxu0 0.0
        %2440 = vmatpush2.msra.mxu0 0.0
        %2441 = vmatprep.subr.mxu0 0.0
        %2442 = vmatpush2.msra.mxu0 0.0
        %2443 = vmatprep.subr.mxu0 0.0
        %2444 = vmatpush2.msra.mxu0 0.0
        %2445 = vmatprep.subr.mxu0 0.0
        %2446 = vmatpush2.msra.mxu0 0.0
        %2447 = vmatprep.subr.mxu0 0.0
        %2448 = vmatpush2.msra.mxu0 0.0
        %2449 = vmatprep.subr.mxu0 0.0
        %2450 = vmatpush2.msra.mxu0 0.0
        %2451 = vmatprep.subr.mxu0 0.0
        %2452 = vmatpush2.msra.mxu0 0.0
        %2453 = vmatprep.mubr.f32.mxu0 0.0
        %2454 = vmatmul.mubr.f32.gmra.mxu0 %v2381
        %v2455 = vpop.f32.mrf.mxu0
        %v2456 = vadd.f32 0.0, %v2455
        %v2457 = vpop.f32.mrf.mxu0
        %v2458 = vadd.f32 0.0, %v2457
        %2459 = vmatprep.mubr.f32.mxu0 0.0
        %2460 = vmatmul.mubr.f32.gmra.mxu0 %v2382
        %v2461 = vpop.f32.mrf.mxu0
        %v2462 = vadd.f32 0.0, %v2461
        %v2463 = vpop.f32.mrf.mxu0
        %v2464 = vadd.f32 0.0, %v2463
        %2465 = vmatprep.mubr.f32.mxu0 0.0
        %2466 = vmatmul.mubr.f32.gmra.mxu0 %v2383
        %v2467 = vpop.f32.mrf.mxu0
        %v2468 = vadd.f32 0.0, %v2467
        %v2469 = vpop.f32.mrf.mxu0
        %v2470 = vadd.f32 0.0, %v2469
        %2471 = vmatprep.mubr.f32.mxu0 0.0
        %2472 = vmatmul.mubr.f32.gmra.mxu0 %v2384
        %v2473 = vpop.f32.mrf.mxu0
        %v2474 = vadd.f32 0.0, %v2473
        %v2475 = vpop.f32.mrf.mxu0
        %v2476 = vadd.f32 0.0, %v2475
        %2477 = vmatprep.mubr.f32.mxu0 0.0
        %2478 = vmatmul.mubr.f32.gmra.mxu0 %v2385
        %v2479 = vpop.f32.mrf.mxu0
        %v2480 = vadd.f32 0.0, %v2479
        %v2481 = vpop.f32.mrf.mxu0
        %v2482 = vadd.f32 0.0, %v2481
        %2483 = vmatprep.mubr.f32.mxu0 0.0
        %2484 = vmatmul.mubr.f32.gmra.mxu0 %v2386
        %v2485 = vpop.f32.mrf.mxu0
        %v2486 = vadd.f32 0.0, %v2485
        %v2487 = vpop.f32.mrf.mxu0
        %v2488 = vadd.f32 0.0, %v2487
        %2489 = vmatprep.mubr.f32.mxu0 0.0
        %2490 = vmatmul.mubr.f32.gmra.mxu0 %v2387
        %v2491 = vpop.f32.mrf.mxu0
        %v2492 = vadd.f32 0.0, %v2491
        %v2493 = vpop.f32.mrf.mxu0
        %v2494 = vadd.f32 0.0, %v2493
        %2495 = vmatprep.mubr.f32.mxu0 0.0
        %2496 = vmatmul.mubr.f32.gmra.mxu0 %v2388
        %v2497 = vpop.f32.mrf.mxu0
        %v2498 = vadd.f32 0.0, %v2497
        %v2499 = vpop.f32.mrf.mxu0
        %v2500 = vadd.f32 0.0, %v2499
        %2501 = vdwg.mxu0
        %2502 = vmatprep.subr.mxu0 %v2376
        %2503 = vmatpush1.msra.mxu0 %v2375
        %2504 = vmatprep.subr.mxu0 %v2368
        %2505 = vmatpush1.msra.mxu0 %v2367
        %2506 = vmatprep.subr.mxu0 %v2360
        %2507 = vmatpush1.msra.mxu0 %v2359
        %2508 = vmatprep.subr.mxu0 %v2352
        %2509 = vmatpush1.msra.mxu0 %v2351
        %2510 = vmatprep.subr.mxu0 %v2344
        %2511 = vmatpush1.msra.mxu0 %v2343
        %2512 = vmatprep.subr.mxu0 %v2336
        %2513 = vmatpush1.msra.mxu0 %v2335
        %2514 = vmatprep.subr.mxu0 %v2328
        %2515 = vmatpush1.msra.mxu0 %v2327
        %2516 = vmatprep.subr.mxu0 %v2320
        %2517 = vmatpush1.msra.mxu0 %v2319
        %2518 = vmatprep.subr.mxu0 %v2312
        %2519 = vmatpush1.msra.mxu0 %v2311
        %2520 = vmatprep.subr.mxu0 %v2304
        %2521 = vmatpush1.msra.mxu0 %v2303
        %2522 = vmatprep.subr.mxu0 %v2296
        %2523 = vmatpush1.msra.mxu0 %v2295
        %2524 = vmatprep.subr.mxu0 %v2288
        %2525 = vmatpush1.msra.mxu0 %v2287
        %2526 = vmatprep.subr.mxu0 %v2280
        %2527 = vmatpush1.msra.mxu0 %v2279
        %2528 = vmatprep.subr.mxu0 %v2272
        %2529 = vmatpush1.msra.mxu0 %v2271
        %2530 = vmatprep.subr.mxu0 %v2264
        %2531 = vmatpush1.msra.mxu0 %v2263
        %2532 = vmatprep.subr.mxu0 %v2256
        %2533 = vmatpush1.msra.mxu0 %v2255
        %2534 = vmatprep.subr.mxu0 0.0
        %2535 = vmatpush2.msra.mxu0 0.0
        %2536 = vmatprep.subr.mxu0 0.0
        %2537 = vmatpush2.msra.mxu0 0.0
        %2538 = vmatprep.subr.mxu0 0.0
        %2539 = vmatpush2.msra.mxu0 0.0
        %2540 = vmatprep.subr.mxu0 0.0
        %2541 = vmatpush2.msra.mxu0 0.0
        %2542 = vmatprep.subr.mxu0 0.0
        %2543 = vmatpush2.msra.mxu0 0.0
        %2544 = vmatprep.subr.mxu0 0.0
        %2545 = vmatpush2.msra.mxu0 0.0
        %2546 = vmatprep.subr.mxu0 0.0
        %2547 = vmatpush2.msra.mxu0 0.0
        %2548 = vmatprep.subr.mxu0 0.0
        %2549 = vmatpush2.msra.mxu0 0.0
        %2550 = vmatprep.subr.mxu0 0.0
        %2551 = vmatpush2.msra.mxu0 0.0
        %2552 = vmatprep.subr.mxu0 0.0
        %2553 = vmatpush2.msra.mxu0 0.0
        %2554 = vmatprep.subr.mxu0 0.0
        %2555 = vmatpush2.msra.mxu0 0.0
        %2556 = vmatprep.subr.mxu0 0.0
        %2557 = vmatpush2.msra.mxu0 0.0
        %2558 = vmatprep.subr.mxu0 0.0
        %2559 = vmatpush2.msra.mxu0 0.0
        %2560 = vmatprep.subr.mxu0 0.0
        %2561 = vmatpush2.msra.mxu0 0.0
        %2562 = vmatprep.subr.mxu0 0.0
        %2563 = vmatpush2.msra.mxu0 0.0
        %2564 = vmatprep.subr.mxu0 0.0
        %2565 = vmatpush2.msra.mxu0 0.0
        %2566 = vmatprep.mubr.f32.mxu0 0.0
        %2567 = vmatmul.mubr.f32.gmra.mxu0 %v2381
        %v2568 = vpop.f32.mrf.mxu0
        %v2569 = vadd.f32 0.0, %v2568
        %v2570 = vpop.f32.mrf.mxu0
        %v2571 = vadd.f32 0.0, %v2570
        %2572 = vmatprep.mubr.f32.mxu0 0.0
        %2573 = vmatmul.mubr.f32.gmra.mxu0 %v2382
        %v2574 = vpop.f32.mrf.mxu0
        %v2575 = vadd.f32 0.0, %v2574
        %v2576 = vpop.f32.mrf.mxu0
        %v2577 = vadd.f32 0.0, %v2576
        %2578 = vmatprep.mubr.f32.mxu0 0.0
        %2579 = vmatmul.mubr.f32.gmra.mxu0 %v2383
        %v2580 = vpop.f32.mrf.mxu0
        %v2581 = vadd.f32 0.0, %v2580
        %v2582 = vpop.f32.mrf.mxu0
        %v2583 = vadd.f32 0.0, %v2582
        %2584 = vmatprep.mubr.f32.mxu0 0.0
        %2585 = vmatmul.mubr.f32.gmra.mxu0 %v2384
        %v2586 = vpop.f32.mrf.mxu0
        %v2587 = vadd.f32 0.0, %v2586
        %v2588 = vpop.f32.mrf.mxu0
        %v2589 = vadd.f32 0.0, %v2588
        %2590 = vmatprep.mubr.f32.mxu0 0.0
        %2591 = vmatmul.mubr.f32.gmra.mxu0 %v2385
        %v2592 = vpop.f32.mrf.mxu0
        %v2593 = vadd.f32 0.0, %v2592
        %v2594 = vpop.f32.mrf.mxu0
        %v2595 = vadd.f32 0.0, %v2594
        %2596 = vmatprep.mubr.f32.mxu0 0.0
        %2597 = vmatmul.mubr.f32.gmra.mxu0 %v2386
        %v2598 = vpop.f32.mrf.mxu0
        %v2599 = vadd.f32 0.0, %v2598
        %v2600 = vpop.f32.mrf.mxu0
        %v2601 = vadd.f32 0.0, %v2600
        %2602 = vmatprep.mubr.f32.mxu0 0.0
        %2603 = vmatmul.mubr.f32.gmra.mxu0 %v2387
        %v2604 = vpop.f32.mrf.mxu0
        %v2605 = vadd.f32 0.0, %v2604
        %v2606 = vpop.f32.mrf.mxu0
        %v2607 = vadd.f32 0.0, %v2606
        %2608 = vmatprep.mubr.f32.mxu0 0.0
        %2609 = vmatmul.mubr.f32.gmra.mxu0 %v2388
        %v2610 = vpop.f32.mrf.mxu0
        %v2611 = vadd.f32 0.0, %v2610
        %v2612 = vpop.f32.mrf.mxu0
        %v2613 = vadd.f32 0.0, %v2612
        %2614 = vdwg.mxu0
        %2615 = vmatprep.subr.mxu0 %v2378
        %2616 = vmatpush1.msra.mxu0 %v2377
        %2617 = vmatprep.subr.mxu0 %v2370
        %2618 = vmatpush1.msra.mxu0 %v2369
        %2619 = vmatprep.subr.mxu0 %v2362
        %2620 = vmatpush1.msra.mxu0 %v2361
        %2621 = vmatprep.subr.mxu0 %v2354
        %2622 = vmatpush1.msra.mxu0 %v2353
        %2623 = vmatprep.subr.mxu0 %v2346
        %2624 = vmatpush1.msra.mxu0 %v2345
        %2625 = vmatprep.subr.mxu0 %v2338
        %2626 = vmatpush1.msra.mxu0 %v2337
        %2627 = vmatprep.subr.mxu0 %v2330
        %2628 = vmatpush1.msra.mxu0 %v2329
        %2629 = vmatprep.subr.mxu0 %v2322
        %2630 = vmatpush1.msra.mxu0 %v2321
        %2631 = vmatprep.subr.mxu0 %v2314
        %2632 = vmatpush1.msra.mxu0 %v2313
        %2633 = vmatprep.subr.mxu0 %v2306
        %2634 = vmatpush1.msra.mxu0 %v2305
        %2635 = vmatprep.subr.mxu0 %v2298
        %2636 = vmatpush1.msra.mxu0 %v2297
        %2637 = vmatprep.subr.mxu0 %v2290
        %2638 = vmatpush1.msra.mxu0 %v2289
        %2639 = vmatprep.subr.mxu0 %v2282
        %2640 = vmatpush1.msra.mxu0 %v2281
        %2641 = vmatprep.subr.mxu0 %v2274
        %2642 = vmatpush1.msra.mxu0 %v2273
        %2643 = vmatprep.subr.mxu0 %v2266
        %2644 = vmatpush1.msra.mxu0 %v2265
        %2645 = vmatprep.subr.mxu0 %v2258
        %2646 = vmatpush1.msra.mxu0 %v2257
        %2647 = vmatprep.subr.mxu0 0.0
        %2648 = vmatpush2.msra.mxu0 0.0
        %2649 = vmatprep.subr.mxu0 0.0
        %2650 = vmatpush2.msra.mxu0 0.0
        %2651 = vmatprep.subr.mxu0 0.0
        %2652 = vmatpush2.msra.mxu0 0.0
        %2653 = vmatprep.subr.mxu0 0.0
        %2654 = vmatpush2.msra.mxu0 0.0
        %2655 = vmatprep.subr.mxu0 0.0
        %2656 = vmatpush2.msra.mxu0 0.0
        %2657 = vmatprep.subr.mxu0 0.0
        %2658 = vmatpush2.msra.mxu0 0.0
        %2659 = vmatprep.subr.mxu0 0.0
        %2660 = vmatpush2.msra.mxu0 0.0
        %2661 = vmatprep.subr.mxu0 0.0
        %2662 = vmatpush2.msra.mxu0 0.0
        %2663 = vmatprep.subr.mxu0 0.0
        %2664 = vmatpush2.msra.mxu0 0.0
        %2665 = vmatprep.subr.mxu0 0.0
        %2666 = vmatpush2.msra.mxu0 0.0
        %2667 = vmatprep.subr.mxu0 0.0
        %2668 = vmatpush2.msra.mxu0 0.0
        %2669 = vmatprep.subr.mxu0 0.0
        %2670 = vmatpush2.msra.mxu0 0.0
        %2671 = vmatprep.subr.mxu0 0.0
        %2672 = vmatpush2.msra.mxu0 0.0
        %2673 = vmatprep.subr.mxu0 0.0
        %2674 = vmatpush2.msra.mxu0 0.0
        %2675 = vmatprep.subr.mxu0 0.0
        %2676 = vmatpush2.msra.mxu0 0.0
        %2677 = vmatprep.subr.mxu0 0.0
        %2678 = vmatpush2.msra.mxu0 0.0
        %2679 = vmatprep.mubr.f32.mxu0 0.0
        %2680 = vmatmul.mubr.f32.gmra.mxu0 %v2381
        %v2681 = vpop.f32.mrf.mxu0
        %v2682 = vadd.f32 0.0, %v2681
        %v2683 = vpop.f32.mrf.mxu0
        %v2684 = vadd.f32 0.0, %v2683
        %2685 = vmatprep.mubr.f32.mxu0 0.0
        %2686 = vmatmul.mubr.f32.gmra.mxu0 %v2382
        %v2687 = vpop.f32.mrf.mxu0
        %v2688 = vadd.f32 0.0, %v2687
        %v2689 = vpop.f32.mrf.mxu0
        %v2690 = vadd.f32 0.0, %v2689
        %2691 = vmatprep.mubr.f32.mxu0 0.0
        %2692 = vmatmul.mubr.f32.gmra.mxu0 %v2383
        %v2693 = vpop.f32.mrf.mxu0
        %v2694 = vadd.f32 0.0, %v2693
        %v2695 = vpop.f32.mrf.mxu0
        %v2696 = vadd.f32 0.0, %v2695
        %2697 = vmatprep.mubr.f32.mxu0 0.0
        %2698 = vmatmul.mubr.f32.gmra.mxu0 %v2384
        %v2699 = vpop.f32.mrf.mxu0
        %v2700 = vadd.f32 0.0, %v2699
        %v2701 = vpop.f32.mrf.mxu0
        %v2702 = vadd.f32 0.0, %v2701
        %2703 = vmatprep.mubr.f32.mxu0 0.0
        %2704 = vmatmul.mubr.f32.gmra.mxu0 %v2385
        %v2705 = vpop.f32.mrf.mxu0
        %v2706 = vadd.f32 0.0, %v2705
        %v2707 = vpop.f32.mrf.mxu0
        %v2708 = vadd.f32 0.0, %v2707
        %2709 = vmatprep.mubr.f32.mxu0 0.0
        %2710 = vmatmul.mubr.f32.gmra.mxu0 %v2386
        %v2711 = vpop.f32.mrf.mxu0
        %v2712 = vadd.f32 0.0, %v2711
        %v2713 = vpop.f32.mrf.mxu0
        %v2714 = vadd.f32 0.0, %v2713
        %2715 = vmatprep.mubr.f32.mxu0 0.0
        %2716 = vmatmul.mubr.f32.gmra.mxu0 %v2387
        %v2717 = vpop.f32.mrf.mxu0
        %v2718 = vadd.f32 0.0, %v2717
        %v2719 = vpop.f32.mrf.mxu0
        %v2720 = vadd.f32 0.0, %v2719
        %2721 = vmatprep.mubr.f32.mxu0 0.0
        %2722 = vmatmul.mubr.f32.gmra.mxu0 %v2388
        %v2723 = vpop.f32.mrf.mxu0
        %v2724 = vadd.f32 0.0, %v2723
        %v2725 = vpop.f32.mrf.mxu0
        %v2726 = vadd.f32 0.0, %v2725
        %2727 = vdwg.mxu0
        %2728 = vmatprep.subr.mxu0 %v2380
        %2729 = vmatpush1.msra.mxu0 %v2379
        %2730 = vmatprep.subr.mxu0 %v2372
        %2731 = vmatpush1.msra.mxu0 %v2371
        %2732 = vmatprep.subr.mxu0 %v2364
        %2733 = vmatpush1.msra.mxu0 %v2363
        %2734 = vmatprep.subr.mxu0 %v2356
        %2735 = vmatpush1.msra.mxu0 %v2355
        %2736 = vmatprep.subr.mxu0 %v2348
        %2737 = vmatpush1.msra.mxu0 %v2347
        %2738 = vmatprep.subr.mxu0 %v2340
        %2739 = vmatpush1.msra.mxu0 %v2339
        %2740 = vmatprep.subr.mxu0 %v2332
        %2741 = vmatpush1.msra.mxu0 %v2331
        %2742 = vmatprep.subr.mxu0 %v2324
        %2743 = vmatpush1.msra.mxu0 %v2323
        %2744 = vmatprep.subr.mxu0 %v2316
        %2745 = vmatpush1.msra.mxu0 %v2315
        %2746 = vmatprep.subr.mxu0 %v2308
        %2747 = vmatpush1.msra.mxu0 %v2307
        %2748 = vmatprep.subr.mxu0 %v2300
        %2749 = vmatpush1.msra.mxu0 %v2299
        %2750 = vmatprep.subr.mxu0 %v2292
        %2751 = vmatpush1.msra.mxu0 %v2291
        %2752 = vmatprep.subr.mxu0 %v2284
        %2753 = vmatpush1.msra.mxu0 %v2283
        %2754 = vmatprep.subr.mxu0 %v2276
        %2755 = vmatpush1.msra.mxu0 %v2275
        %2756 = vmatprep.subr.mxu0 %v2268
        %2757 = vmatpush1.msra.mxu0 %v2267
        %2758 = vmatprep.subr.mxu0 %v2260
        %2759 = vmatpush1.msra.mxu0 %v2259
        %2760 = vmatprep.subr.mxu0 0.0
        %2761 = vmatpush2.msra.mxu0 0.0
        %2762 = vmatprep.subr.mxu0 0.0
        %2763 = vmatpush2.msra.mxu0 0.0
        %2764 = vmatprep.subr.mxu0 0.0
        %2765 = vmatpush2.msra.mxu0 0.0
        %2766 = vmatprep.subr.mxu0 0.0
        %2767 = vmatpush2.msra.mxu0 0.0
        %2768 = vmatprep.subr.mxu0 0.0
        %2769 = vmatpush2.msra.mxu0 0.0
        %2770 = vmatprep.subr.mxu0 0.0
        %2771 = vmatpush2.msra.mxu0 0.0
        %2772 = vmatprep.subr.mxu0 0.0
        %2773 = vmatpush2.msra.mxu0 0.0
        %2774 = vmatprep.subr.mxu0 0.0
        %2775 = vmatpush2.msra.mxu0 0.0
        %2776 = vmatprep.subr.mxu0 0.0
        %2777 = vmatpush2.msra.mxu0 0.0
        %2778 = vmatprep.subr.mxu0 0.0
        %2779 = vmatpush2.msra.mxu0 0.0
        %2780 = vmatprep.subr.mxu0 0.0
        %2781 = vmatpush2.msra.mxu0 0.0
        %2782 = vmatprep.subr.mxu0 0.0
        %2783 = vmatpush2.msra.mxu0 0.0
        %2784 = vmatprep.subr.mxu0 0.0
        %2785 = vmatpush2.msra.mxu0 0.0
        %2786 = vmatprep.subr.mxu0 0.0
        %2787 = vmatpush2.msra.mxu0 0.0
        %2788 = vmatprep.subr.mxu0 0.0
        %2789 = vmatpush2.msra.mxu0 0.0
        %2790 = vmatprep.subr.mxu0 0.0
        %2791 = vmatpush2.msra.mxu0 0.0
        %2792 = vmatprep.mubr.f32.mxu0 0.0
        %2793 = vmatmul.mubr.f32.gmra.mxu0 %v2381
        %v2794 = vpop.f32.mrf.mxu0
        %v2795 = vadd.f32 0.0, %v2794
        %v2796 = vpop.f32.mrf.mxu0
        %v2797 = vadd.f32 0.0, %v2796
        %2798 = vmatprep.mubr.f32.mxu0 0.0
        %2799 = vmatmul.mubr.f32.gmra.mxu0 %v2382
        %v2800 = vpop.f32.mrf.mxu0
        %v2801 = vadd.f32 0.0, %v2800
        %v2802 = vpop.f32.mrf.mxu0
        %v2803 = vadd.f32 0.0, %v2802
        %2804 = vmatprep.mubr.f32.mxu0 0.0
        %2805 = vmatmul.mubr.f32.gmra.mxu0 %v2383
        %v2806 = vpop.f32.mrf.mxu0
        %v2807 = vadd.f32 0.0, %v2806
        %v2808 = vpop.f32.mrf.mxu0
        %v2809 = vadd.f32 0.0, %v2808
        %2810 = vmatprep.mubr.f32.mxu0 0.0
        %2811 = vmatmul.mubr.f32.gmra.mxu0 %v2384
        %v2812 = vpop.f32.mrf.mxu0
        %v2813 = vadd.f32 0.0, %v2812
        %v2814 = vpop.f32.mrf.mxu0
        %v2815 = vadd.f32 0.0, %v2814
        %2816 = vmatprep.mubr.f32.mxu0 0.0
        %2817 = vmatmul.mubr.f32.gmra.mxu0 %v2385
        %v2818 = vpop.f32.mrf.mxu0
        %v2819 = vadd.f32 0.0, %v2818
        %v2820 = vpop.f32.mrf.mxu0
        %v2821 = vadd.f32 0.0, %v2820
        %2822 = vmatprep.mubr.f32.mxu0 0.0
        %2823 = vmatmul.mubr.f32.gmra.mxu0 %v2386
        %v2824 = vpop.f32.mrf.mxu0
        %v2825 = vadd.f32 0.0, %v2824
        %v2826 = vpop.f32.mrf.mxu0
        %v2827 = vadd.f32 0.0, %v2826
        %2828 = vmatprep.mubr.f32.mxu0 0.0
        %2829 = vmatmul.mubr.f32.gmra.mxu0 %v2387
        %v2830 = vpop.f32.mrf.mxu0
        %v2831 = vadd.f32 0.0, %v2830
        %v2832 = vpop.f32.mrf.mxu0
        %v2833 = vadd.f32 0.0, %v2832
        %2834 = vmatprep.mubr.f32.mxu0 0.0
        %2835 = vmatmul.mubr.f32.gmra.mxu0 %v2388
        %v2836 = vpop.f32.mrf.mxu0
        %v2837 = vadd.f32 0.0, %v2836
        %v2838 = vpop.f32.mrf.mxu0
        %v2839 = vadd.f32 0.0, %v2838
        %2840 = vdwg.mxu0
        %2841 = vst [vmem:[%s333] sm:$0xff] %v2456
        %2842 = vst [vmem:[%s333 + $0x8] sm:$0xff] %v2458
        %2843 = vst [vmem:[%s333 + $0x10] sm:$0xff] %v2569
        %2844 = vst [vmem:[%s333 + $0x18] sm:$0xff] %v2571
        %2845 = vst [vmem:[%s333 + $0x20] sm:$0xff] %v2682
        %2846 = vst [vmem:[%s333 + $0x28] sm:$0xff] %v2684
        %2847 = vst [vmem:[%s333 + $0x30] sm:$0xff] %v2795
        %2848 = vst [vmem:[%s333 + $0x38] sm:$0xff] %v2797
        %2849 = vst [vmem:[%s333 + $0x40] sm:$0xff] %v2462
        %2850 = vst [vmem:[%s333 + $0x48] sm:$0xff] %v2464
        %2851 = vst [vmem:[%s333 + $0x50] sm:$0xff] %v2575
        %2852 = vst [vmem:[%s333 + $0x58] sm:$0xff] %v2577
        %2853 = vst [vmem:[%s333 + $0x60] sm:$0xff] %v2688
        %2854 = vst [vmem:[%s333 + $0x68] sm:$0xff] %v2690
        %2855 = vst [vmem:[%s333 + $0x70] sm:$0xff] %v2801
        %2856 = vst [vmem:[%s333 + $0x78] sm:$0xff] %v2803
        %2857 = vst [vmem:[%s333 + $0x80] sm:$0xff] %v2468
        %2858 = vst [vmem:[%s333 + $0x88] sm:$0xff] %v2470
        %2859 = vst [vmem:[%s333 + $0x90] sm:$0xff] %v2581
        %2860 = vst [vmem:[%s333 + $0x98] sm:$0xff] %v2583
        %2861 = vst [vmem:[%s333 + $0xa0] sm:$0xff] %v2694
        %2862 = vst [vmem:[%s333 + $0xa8] sm:$0xff] %v2696
        %2863 = vst [vmem:[%s333 + $0xb0] sm:$0xff] %v2807
        %2864 = vst [vmem:[%s333 + $0xb8] sm:$0xff] %v2809
        %2865 = vst [vmem:[%s333 + $0xc0] sm:$0xff] %v2474
        %2866 = vst [vmem:[%s333 + $0xc8] sm:$0xff] %v2476
        %2867 = vst [vmem:[%s333 + $0xd0] sm:$0xff] %v2587
        %2868 = vst [vmem:[%s333 + $0xd8] sm:$0xff] %v2589
        %2869 = vst [vmem:[%s333 + $0xe0] sm:$0xff] %v2700
        %2870 = vst [vmem:[%s333 + $0xe8] sm:$0xff] %v2702
        %2871 = vst [vmem:[%s333 + $0xf0] sm:$0xff] %v2813
        %2872 = vst [vmem:[%s333 + $0xf8] sm:$0xff] %v2815
        %2873 = vst [vmem:[%s333 + $0x100] sm:$0xff] %v2480
        %2874 = vst [vmem:[%s333 + $0x108] sm:$0xff] %v2482
        %2875 = vst [vmem:[%s333 + $0x110] sm:$0xff] %v2593
        %2876 = vst [vmem:[%s333 + $0x118] sm:$0xff] %v2595
        %2877 = vst [vmem:[%s333 + $0x120] sm:$0xff] %v2706
        %2878 = vst [vmem:[%s333 + $0x128] sm:$0xff] %v2708
        %2879 = vst [vmem:[%s333 + $0x130] sm:$0xff] %v2819
        %2880 = vst [vmem:[%s333 + $0x138] sm:$0xff] %v2821
        %2881 = vst [vmem:[%s333 + $0x140] sm:$0xff] %v2486
        %2882 = vst [vmem:[%s333 + $0x148] sm:$0xff] %v2488
        %2883 = vst [vmem:[%s333 + $0x150] sm:$0xff] %v2599
        %2884 = vst [vmem:[%s333 + $0x158] sm:$0xff] %v2601
        %2885 = vst [vmem:[%s333 + $0x160] sm:$0xff] %v2712
        %2886 = vst [vmem:[%s333 + $0x168] sm:$0xff] %v2714
        %2887 = vst [vmem:[%s333 + $0x170] sm:$0xff] %v2825
        %2888 = vst [vmem:[%s333 + $0x178] sm:$0xff] %v2827
        %2889 = vst [vmem:[%s333 + $0x180] sm:$0xff] %v2492
        %2890 = vst [vmem:[%s333 + $0x188] sm:$0xff] %v2494
        %2891 = vst [vmem:[%s333 + $0x190] sm:$0xff] %v2605
        %2892 = vst [vmem:[%s333 + $0x198] sm:$0xff] %v2607
        %2893 = vst [vmem:[%s333 + $0x1a0] sm:$0xff] %v2718
        %2894 = vst [vmem:[%s333 + $0x1a8] sm:$0xff] %v2720
        %2895 = vst [vmem:[%s333 + $0x1b0] sm:$0xff] %v2831
        %2896 = vst [vmem:[%s333 + $0x1b8] sm:$0xff] %v2833
        %2897 = vst [vmem:[%s333 + $0x1c0] sm:$0xff] %v2498
        %2898 = vst [vmem:[%s333 + $0x1c8] sm:$0xff] %v2500
        %2899 = vst [vmem:[%s333 + $0x1d0] sm:$0xff] %v2611
        %2900 = vst [vmem:[%s333 + $0x1d8] sm:$0xff] %v2613
        %2901 = vst [vmem:[%s333 + $0x1e0] sm:$0xff] %v2724
        %2902 = vst [vmem:[%s333 + $0x1e8] sm:$0xff] %v2726
        %2903 = vst [vmem:[%s333 + $0x1f0] sm:$0xff] %v2837
        %2904 = vst [vmem:[%s333 + $0x1f8] sm:$0xff] %v2839
        %v2905 = vcombine.low %v1723, %v1762
        %v2906 = vcombine.low %v1801, %v1840
        %v2907 = vcombine.low %v1879, %v1918
        %v2908 = vcombine.low %v1957, %v1996
        %v2910 = vunpack.c.l.s4 1966171168
        %v2911 = vunpack.c.0.s8 %v2910
        %v2912 = vlaneseq
        %v2913 = vshrl.u32 %v2912, 7
        %v2914 = vsub.s32 %v2911, %v2913
        %v2915 = vrot.slane %v2905, %v2914
        %v2917 = vunpack.c.l.s4 1966171168
        %v2918 = vunpack.c.0.s8 %v2917
        %v2919 = vlaneseq
        %v2920 = vshrl.u32 %v2919, 7
        %v2921 = vsub.s32 %v2918, %v2920
        %v2922 = vrot.slane %v2906, %v2921
        %v2924 = vunpack.c.l.s4 1966171168
        %v2925 = vunpack.c.0.s8 %v2924
        %v2926 = vlaneseq
        %v2927 = vshrl.u32 %v2926, 7
        %v2928 = vsub.s32 %v2925, %v2927
        %v2929 = vrot.slane %v2907, %v2928
        %v2931 = vunpack.c.l.s4 1966171168
        %v2932 = vunpack.c.0.s8 %v2931
        %v2933 = vlaneseq
        %v2934 = vshrl.u32 %v2933, 7
        %v2935 = vsub.s32 %v2932, %v2934
        %v2936 = vrot.slane %v2908, %v2935
        %v2937 = vcombine.low %v2915, %v2922
        %v2938 = vcombine.low %v2929, %v2936
        %v2940 = vunpack.c.l.s4 1966171168
        %v2941 = vunpack.c.0.s8 %v2940
        %v2942 = vlaneseq
        %v2943 = vshrl.u32 %v2942, 7
        %v2944 = vsub.s32 %v2941, %v2943
        %v2945 = vrot.slane %v2937, %v2944
        %v2947 = vunpack.c.l.s4 1966171168
        %v2948 = vunpack.c.0.s8 %v2947
        %v2949 = vlaneseq
        %v2950 = vshrl.u32 %v2949, 7
        %v2951 = vsub.s32 %v2948, %v2950
        %v2952 = vrot.slane %v2938, %v2951
        %v2953 = vcombine.low %v2945, %v2952
        %2954 = vst [vmem:[%s340] sm:$0xff] %v2953
        %v2955 = vmul.f32 %v375, %v375
        %v2956 = vmul.f32 %v376, %v376
        %v2957 = vmul.f32 %v377, %v377
        %v2958 = vmul.f32 %v378, %v378
        %v2959 = vmul.f32 %v379, %v379
        %v2960 = vmul.f32 %v380, %v380
        %v2961 = vmul.f32 %v381, %v381
        %v2962 = vmul.f32 %v382, %v382
        %v2963 = vmul.f32 %v383, %v383
        %v2964 = vmul.f32 %v384, %v384
        %v2965 = vmul.f32 %v385, %v385
        %v2966 = vmul.f32 %v386, %v386
        %v2967 = vmul.f32 %v387, %v387
        %v2968 = vmul.f32 %v388, %v388
        %v2969 = vmul.f32 %v389, %v389
        %v2970 = vmul.f32 %v390, %v390
        %v2971 = vmul.f32 %v391, %v391
        %v2972 = vmul.f32 %v392, %v392
        %v2973 = vmul.f32 %v393, %v393
        %v2974 = vmul.f32 %v394, %v394
        %v2975 = vmul.f32 %v395, %v395
        %v2976 = vmul.f32 %v396, %v396
        %v2977 = vmul.f32 %v397, %v397
        %v2978 = vmul.f32 %v398, %v398
        %v2979 = vmul.f32 %v399, %v399
        %v2980 = vmul.f32 %v400, %v400
        %v2981 = vmul.f32 %v401, %v401
        %v2982 = vmul.f32 %v402, %v402
        %v2983 = vmul.f32 %v403, %v403
        %v2984 = vmul.f32 %v404, %v404
        %v2985 = vmul.f32 %v405, %v405
        %v2986 = vmul.f32 %v406, %v406
        %v2987 = vmul.f32 %v407, %v407
        %v2988 = vmul.f32 %v408, %v408
        %v2989 = vmul.f32 %v409, %v409
        %v2990 = vmul.f32 %v410, %v410
        %v2991 = vmul.f32 %v411, %v411
        %v2992 = vmul.f32 %v412, %v412
        %v2993 = vmul.f32 %v413, %v413
        %v2994 = vmul.f32 %v414, %v414
        %v2995 = vmul.f32 %v415, %v415
        %v2996 = vmul.f32 %v416, %v416
        %v2997 = vmul.f32 %v417, %v417
        %v2998 = vmul.f32 %v418, %v418
        %v2999 = vmul.f32 %v419, %v419
        %v3000 = vmul.f32 %v420, %v420
        %v3001 = vmul.f32 %v421, %v421
        %v3002 = vmul.f32 %v422, %v422
        %v3003 = vmul.f32 %v423, %v423
        %v3004 = vmul.f32 %v424, %v424
        %v3005 = vmul.f32 %v425, %v425
        %v3006 = vmul.f32 %v426, %v426
        %v3007 = vmul.f32 %v427, %v427
        %v3008 = vmul.f32 %v428, %v428
        %v3009 = vmul.f32 %v429, %v429
        %v3010 = vmul.f32 %v430, %v430
        %v3011 = vmul.f32 %v431, %v431
        %v3012 = vmul.f32 %v432, %v432
        %v3013 = vmul.f32 %v433, %v433
        %v3014 = vmul.f32 %v434, %v434
        %v3015 = vmul.f32 %v435, %v435
        %v3016 = vmul.f32 %v436, %v436
        %v3017 = vmul.f32 %v437, %v437
        %v3018 = vmul.f32 %v438, %v438
        %v3019 = vadd.f32 %v2955, %v2963
        %v3020 = vadd.f32 %v3019, %v2971
        %v3021 = vadd.f32 %v3020, %v2979
        %v3022 = vadd.f32 %v3021, %v2987
        %v3023 = vadd.f32 %v3022, %v2995
        %v3024 = vadd.f32 %v3023, %v3003
        %v3025 = vadd.f32 %v3024, %v3011
        %v3026 = vrot.slane %v3025, 4
        %v3027 = vadd.f32 %v3025, %v3026
        %v3028 = vrot.slane %v3027, 2
        %v3029 = vadd.f32 %v3027, %v3028
        %v3030 = vrot.slane %v3029, 1
        %v3031 = vadd.f32 %v3029, %v3030
        %v3032 = vadd.f32 %v2956, %v2964
        %v3033 = vadd.f32 %v3032, %v2972
        %v3034 = vadd.f32 %v3033, %v2980
        %v3035 = vadd.f32 %v3034, %v2988
        %v3036 = vadd.f32 %v3035, %v2996
        %v3037 = vadd.f32 %v3036, %v3004
        %v3038 = vadd.f32 %v3037, %v3012
        %v3039 = vrot.slane %v3038, 4
        %v3040 = vadd.f32 %v3038, %v3039
        %v3041 = vrot.slane %v3040, 2
        %v3042 = vadd.f32 %v3040, %v3041
        %v3043 = vrot.slane %v3042, 1
        %v3044 = vadd.f32 %v3042, %v3043
        %v3045 = vadd.f32 %v2957, %v2965
        %v3046 = vadd.f32 %v3045, %v2973
        %v3047 = vadd.f32 %v3046, %v2981
        %v3048 = vadd.f32 %v3047, %v2989
        %v3049 = vadd.f32 %v3048, %v2997
        %v3050 = vadd.f32 %v3049, %v3005
        %v3051 = vadd.f32 %v3050, %v3013
        %v3052 = vrot.slane %v3051, 4
        %v3053 = vadd.f32 %v3051, %v3052
        %v3054 = vrot.slane %v3053, 2
        %v3055 = vadd.f32 %v3053, %v3054
        %v3056 = vrot.slane %v3055, 1
        %v3057 = vadd.f32 %v3055, %v3056
        %v3058 = vadd.f32 %v2958, %v2966
        %v3059 = vadd.f32 %v3058, %v2974
        %v3060 = vadd.f32 %v3059, %v2982
        %v3061 = vadd.f32 %v3060, %v2990
        %v3062 = vadd.f32 %v3061, %v2998
        %v3063 = vadd.f32 %v3062, %v3006
        %v3064 = vadd.f32 %v3063, %v3014
        %v3065 = vrot.slane %v3064, 4
        %v3066 = vadd.f32 %v3064, %v3065
        %v3067 = vrot.slane %v3066, 2
        %v3068 = vadd.f32 %v3066, %v3067
        %v3069 = vrot.slane %v3068, 1
        %v3070 = vadd.f32 %v3068, %v3069
        %v3071 = vadd.f32 %v2959, %v2967
        %v3072 = vadd.f32 %v3071, %v2975
        %v3073 = vadd.f32 %v3072, %v2983
        %v3074 = vadd.f32 %v3073, %v2991
        %v3075 = vadd.f32 %v3074, %v2999
        %v3076 = vadd.f32 %v3075, %v3007
        %v3077 = vadd.f32 %v3076, %v3015
        %v3078 = vrot.slane %v3077, 4
        %v3079 = vadd.f32 %v3077, %v3078
        %v3080 = vrot.slane %v3079, 2
        %v3081 = vadd.f32 %v3079, %v3080
        %v3082 = vrot.slane %v3081, 1
        %v3083 = vadd.f32 %v3081, %v3082
        %v3084 = vadd.f32 %v2960, %v2968
        %v3085 = vadd.f32 %v3084, %v2976
        %v3086 = vadd.f32 %v3085, %v2984
        %v3087 = vadd.f32 %v3086, %v2992
        %v3088 = vadd.f32 %v3087, %v3000
        %v3089 = vadd.f32 %v3088, %v3008
        %v3090 = vadd.f32 %v3089, %v3016
        %v3091 = vrot.slane %v3090, 4
        %v3092 = vadd.f32 %v3090, %v3091
        %v3093 = vrot.slane %v3092, 2
        %v3094 = vadd.f32 %v3092, %v3093
        %v3095 = vrot.slane %v3094, 1
        %v3096 = vadd.f32 %v3094, %v3095
        %v3097 = vadd.f32 %v2961, %v2969
        %v3098 = vadd.f32 %v3097, %v2977
        %v3099 = vadd.f32 %v3098, %v2985
        %v3100 = vadd.f32 %v3099, %v2993
        %v3101 = vadd.f32 %v3100, %v3001
        %v3102 = vadd.f32 %v3101, %v3009
        %v3103 = vadd.f32 %v3102, %v3017
        %v3104 = vrot.slane %v3103, 4
        %v3105 = vadd.f32 %v3103, %v3104
        %v3106 = vrot.slane %v3105, 2
        %v3107 = vadd.f32 %v3105, %v3106
        %v3108 = vrot.slane %v3107, 1
        %v3109 = vadd.f32 %v3107, %v3108
        %v3110 = vadd.f32 %v2962, %v2970
        %v3111 = vadd.f32 %v3110, %v2978
        %v3112 = vadd.f32 %v3111, %v2986
        %v3113 = vadd.f32 %v3112, %v2994
        %v3114 = vadd.f32 %v3113, %v3002
        %v3115 = vadd.f32 %v3114, %v3010
        %v3116 = vadd.f32 %v3115, %v3018
        %v3117 = vrot.slane %v3116, 4
        %v3118 = vadd.f32 %v3116, %v3117
        %v3119 = vrot.slane %v3118, 2
        %v3120 = vadd.f32 %v3118, %v3119
        %v3121 = vrot.slane %v3120, 1
        %v3122 = vadd.f32 %v3120, %v3121
        %v3123 = vsub.f32 %v2456, %v375
        %v3124 = vsub.f32 %v2458, %v376
        %v3125 = vsub.f32 %v2569, %v377
        %v3126 = vsub.f32 %v2571, %v378
        %v3127 = vsub.f32 %v2682, %v379
        %v3128 = vsub.f32 %v2684, %v380
        %v3129 = vsub.f32 %v2795, %v381
        %v3130 = vsub.f32 %v2797, %v382
        %v3131 = vsub.f32 %v2462, %v383
        %v3132 = vsub.f32 %v2464, %v384
        %v3133 = vsub.f32 %v2575, %v385
        %v3134 = vsub.f32 %v2577, %v386
        %v3135 = vsub.f32 %v2688, %v387
        %v3136 = vsub.f32 %v2690, %v388
        %v3137 = vsub.f32 %v2801, %v389
        %v3138 = vsub.f32 %v2803, %v390
        %v3139 = vsub.f32 %v2468, %v391
        %v3140 = vsub.f32 %v2470, %v392
        %v3141 = vsub.f32 %v2581, %v393
        %v3142 = vsub.f32 %v2583, %v394
        %v3143 = vsub.f32 %v2694, %v395
        %v3144 = vsub.f32 %v2696, %v396
        %v3145 = vsub.f32 %v2807, %v397
        %v3146 = vsub.f32 %v2809, %v398
        %v3147 = vsub.f32 %v2474, %v399
        %v3148 = vsub.f32 %v2476, %v400
        %v3149 = vsub.f32 %v2587, %v401
        %v3150 = vsub.f32 %v2589, %v402
        %v3151 = vsub.f32 %v2700, %v403
        %v3152 = vsub.f32 %v2702, %v404
        %v3153 = vsub.f32 %v2813, %v405
        %v3154 = vsub.f32 %v2815, %v406
        %v3155 = vsub.f32 %v2480, %v407
        %v3156 = vsub.f32 %v2482, %v408
        %v3157 = vsub.f32 %v2593, %v409
        %v3158 = vsub.f32 %v2595, %v410
        %v3159 = vsub.f32 %v2706, %v411
        %v3160 = vsub.f32 %v2708, %v412
        %v3161 = vsub.f32 %v2819, %v413
        %v3162 = vsub.f32 %v2821, %v414
        %v3163 = vsub.f32 %v2486, %v415
        %v3164 = vsub.f32 %v2488, %v416
        %v3165 = vsub.f32 %v2599, %v417
        %v3166 = vsub.f32 %v2601, %v418
        %v3167 = vsub.f32 %v2712, %v419
        %v3168 = vsub.f32 %v2714, %v420
        %v3169 = vsub.f32 %v2825, %v421
        %v3170 = vsub.f32 %v2827, %v422
        %v3171 = vsub.f32 %v2492, %v423
        %v3172 = vsub.f32 %v2494, %v424
        %v3173 = vsub.f32 %v2605, %v425
        %v3174 = vsub.f32 %v2607, %v426
        %v3175 = vsub.f32 %v2718, %v427
        %v3176 = vsub.f32 %v2720, %v428
        %v3177 = vsub.f32 %v2831, %v429
        %v3178 = vsub.f32 %v2833, %v430
        %v3179 = vsub.f32 %v2498, %v431
        %v3180 = vsub.f32 %v2500, %v432
        %v3181 = vsub.f32 %v2611, %v433
        %v3182 = vsub.f32 %v2613, %v434
        %v3183 = vsub.f32 %v2724, %v435
        %v3184 = vsub.f32 %v2726, %v436
        %v3185 = vsub.f32 %v2837, %v437
        %v3186 = vsub.f32 %v2839, %v438
        %v3187 = vld [vmem:[#allocation8] sm:$0xff]
        %v3188 = vadd.f32 %v667, %v673
        %v3189 = vadd.f32 %v3188, %v679
        %v3190 = vadd.f32 %v3189, %v685
        %v3191 = vadd.f32 %v3190, %v691
        %v3192 = vadd.f32 %v3191, %v697
        %v3193 = vadd.f32 %v3192, %v703
        %v3194 = vadd.f32 %v3193, %v709
        %v3195 = vadd.f32 %v3194, %v715
        %v3196 = vadd.f32 %v3195, %v721
        %v3197 = vadd.f32 %v3196, %v727
        %v3198 = vadd.f32 %v3197, %v733
        %v3199 = vadd.f32 %v3198, %v739
        %v3200 = vadd.f32 %v3199, %v745
        %v3201 = vadd.f32 %v3200, %v751
        %v3202 = vadd.f32 %v3201, %v757
        %v3203 = vrot.slane %v3202, 4
        %v3204 = vadd.f32 %v3202, %v3203
        %v3205 = vrot.slane %v3204, 2
        %v3206 = vadd.f32 %v3204, %v3205
        %v3207 = vrot.slane %v3206, 1
        %v3208 = vadd.f32 %v3206, %v3207
        %v3209 = vadd.f32 %v669, %v675
        %v3210 = vadd.f32 %v3209, %v681
        %v3211 = vadd.f32 %v3210, %v687
        %v3212 = vadd.f32 %v3211, %v693
        %v3213 = vadd.f32 %v3212, %v699
        %v3214 = vadd.f32 %v3213, %v705
        %v3215 = vadd.f32 %v3214, %v711
        %v3216 = vadd.f32 %v3215, %v717
        %v3217 = vadd.f32 %v3216, %v723
        %v3218 = vadd.f32 %v3217, %v729
        %v3219 = vadd.f32 %v3218, %v735
        %v3220 = vadd.f32 %v3219, %v741
        %v3221 = vadd.f32 %v3220, %v747
        %v3222 = vadd.f32 %v3221, %v753
        %v3223 = vadd.f32 %v3222, %v759
        %v3224 = vrot.slane %v3223, 4
        %v3225 = vadd.f32 %v3223, %v3224
        %v3226 = vrot.slane %v3225, 2
        %v3227 = vadd.f32 %v3225, %v3226
        %v3228 = vrot.slane %v3227, 1
        %v3229 = vadd.f32 %v3227, %v3228
        %v3230 = vadd.f32 %v828, %v834
        %v3231 = vadd.f32 %v3230, %v840
        %v3232 = vadd.f32 %v3231, %v846
        %v3233 = vadd.f32 %v3232, %v852
        %v3234 = vadd.f32 %v3233, %v858
        %v3235 = vadd.f32 %v3234, %v864
        %v3236 = vadd.f32 %v3235, %v870
        %v3237 = vadd.f32 %v3236, %v876
        %v3238 = vadd.f32 %v3237, %v882
        %v3239 = vadd.f32 %v3238, %v888
        %v3240 = vadd.f32 %v3239, %v894
        %v3241 = vadd.f32 %v3240, %v900
        %v3242 = vadd.f32 %v3241, %v906
        %v3243 = vadd.f32 %v3242, %v912
        %v3244 = vadd.f32 %v3243, %v918
        %v3245 = vrot.slane %v3244, 4
        %v3246 = vadd.f32 %v3244, %v3245
        %v3247 = vrot.slane %v3246, 2
        %v3248 = vadd.f32 %v3246, %v3247
        %v3249 = vrot.slane %v3248, 1
        %v3250 = vadd.f32 %v3248, %v3249
        %v3251 = vadd.f32 %v830, %v836
        %v3252 = vadd.f32 %v3251, %v842
        %v3253 = vadd.f32 %v3252, %v848
        %v3254 = vadd.f32 %v3253, %v854
        %v3255 = vadd.f32 %v3254, %v860
        %v3256 = vadd.f32 %v3255, %v866
        %v3257 = vadd.f32 %v3256, %v872
        %v3258 = vadd.f32 %v3257, %v878
        %v3259 = vadd.f32 %v3258, %v884
        %v3260 = vadd.f32 %v3259, %v890
        %v3261 = vadd.f32 %v3260, %v896
        %v3262 = vadd.f32 %v3261, %v902
        %v3263 = vadd.f32 %v3262, %v908
        %v3264 = vadd.f32 %v3263, %v914
        %v3265 = vadd.f32 %v3264, %v920
        %v3266 = vrot.slane %v3265, 4
        %v3267 = vadd.f32 %v3265, %v3266
        %v3268 = vrot.slane %v3267, 2
        %v3269 = vadd.f32 %v3267, %v3268
        %v3270 = vrot.slane %v3269, 1
        %v3271 = vadd.f32 %v3269, %v3270
        %v3272 = vadd.f32 %v989, %v995
        %v3273 = vadd.f32 %v3272, %v1001
        %v3274 = vadd.f32 %v3273, %v1007
        %v3275 = vadd.f32 %v3274, %v1013
        %v3276 = vadd.f32 %v3275, %v1019
        %v3277 = vadd.f32 %v3276, %v1025
        %v3278 = vadd.f32 %v3277, %v1031
        %v3279 = vadd.f32 %v3278, %v1037
        %v3280 = vadd.f32 %v3279, %v1043
        %v3281 = vadd.f32 %v3280, %v1049
        %v3282 = vadd.f32 %v3281, %v1055
        %v3283 = vadd.f32 %v3282, %v1061
        %v3284 = vadd.f32 %v3283, %v1067
        %v3285 = vadd.f32 %v3284, %v1073
        %v3286 = vadd.f32 %v3285, %v1079
        %v3287 = vrot.slane %v3286, 4
        %v3288 = vadd.f32 %v3286, %v3287
        %v3289 = vrot.slane %v3288, 2
        %v3290 = vadd.f32 %v3288, %v3289
        %v3291 = vrot.slane %v3290, 1
        %v3292 = vadd.f32 %v3290, %v3291
        %v3293 = vadd.f32 %v991, %v997
        %v3294 = vadd.f32 %v3293, %v1003
        %v3295 = vadd.f32 %v3294, %v1009
        %v3296 = vadd.f32 %v3295, %v1015
        %v3297 = vadd.f32 %v3296, %v1021
        %v3298 = vadd.f32 %v3297, %v1027
        %v3299 = vadd.f32 %v3298, %v1033
        %v3300 = vadd.f32 %v3299, %v1039
        %v3301 = vadd.f32 %v3300, %v1045
        %v3302 = vadd.f32 %v3301, %v1051
        %v3303 = vadd.f32 %v3302, %v1057
        %v3304 = vadd.f32 %v3303, %v1063
        %v3305 = vadd.f32 %v3304, %v1069
        %v3306 = vadd.f32 %v3305, %v1075
        %v3307 = vadd.f32 %v3306, %v1081
        %v3308 = vrot.slane %v3307, 4
        %v3309 = vadd.f32 %v3307, %v3308
        %v3310 = vrot.slane %v3309, 2
        %v3311 = vadd.f32 %v3309, %v3310
        %v3312 = vrot.slane %v3311, 1
        %v3313 = vadd.f32 %v3311, %v3312
        %v3314 = vadd.f32 %v1150, %v1156
        %v3315 = vadd.f32 %v3314, %v1162
        %v3316 = vadd.f32 %v3315, %v1168
        %v3317 = vadd.f32 %v3316, %v1174
        %v3318 = vadd.f32 %v3317, %v1180
        %v3319 = vadd.f32 %v3318, %v1186
        %v3320 = vadd.f32 %v3319, %v1192
        %v3321 = vadd.f32 %v3320, %v1198
        %v3322 = vadd.f32 %v3321, %v1204
        %v3323 = vadd.f32 %v3322, %v1210
        %v3324 = vadd.f32 %v3323, %v1216
        %v3325 = vadd.f32 %v3324, %v1222
        %v3326 = vadd.f32 %v3325, %v1228
        %v3327 = vadd.f32 %v3326, %v1234
        %v3328 = vadd.f32 %v3327, %v1240
        %v3329 = vrot.slane %v3328, 4
        %v3330 = vadd.f32 %v3328, %v3329
        %v3331 = vrot.slane %v3330, 2
        %v3332 = vadd.f32 %v3330, %v3331
        %v3333 = vrot.slane %v3332, 1
        %v3334 = vadd.f32 %v3332, %v3333
        %v3335 = vadd.f32 %v1152, %v1158
        %v3336 = vadd.f32 %v3335, %v1164
        %v3337 = vadd.f32 %v3336, %v1170
        %v3338 = vadd.f32 %v3337, %v1176
        %v3339 = vadd.f32 %v3338, %v1182
        %v3340 = vadd.f32 %v3339, %v1188
        %v3341 = vadd.f32 %v3340, %v1194
        %v3342 = vadd.f32 %v3341, %v1200
        %v3343 = vadd.f32 %v3342, %v1206
        %v3344 = vadd.f32 %v3343, %v1212
        %v3345 = vadd.f32 %v3344, %v1218
        %v3346 = vadd.f32 %v3345, %v1224
        %v3347 = vadd.f32 %v3346, %v1230
        %v3348 = vadd.f32 %v3347, %v1236
        %v3349 = vadd.f32 %v3348, %v1242
        %v3350 = vrot.slane %v3349, 4
        %v3351 = vadd.f32 %v3349, %v3350
        %v3352 = vrot.slane %v3351, 2
        %v3353 = vadd.f32 %v3351, %v3352
        %v3354 = vrot.slane %v3353, 1
        %v3355 = vadd.f32 %v3353, %v3354
        %v3356 = vmul.f32 %v3031, 128.0
        %v3357 = vmul.f32 %v3044, 128.0
        %v3358 = vmul.f32 %v3057, 128.0
        %v3359 = vmul.f32 %v3070, 128.0
        %v3360 = vmul.f32 %v3083, 128.0
        %v3361 = vmul.f32 %v3096, 128.0
        %v3362 = vmul.f32 %v3109, 128.0
        %v3363 = vmul.f32 %v3122, 128.0
        %v3364 = vadd.f32 %v3208, %v3356
        %v3365 = vadd.f32 %v3229, %v3357
        %v3366 = vadd.f32 %v3250, %v3358
        %v3367 = vadd.f32 %v3271, %v3359
        %v3368 = vadd.f32 %v3292, %v3360
        %v3369 = vadd.f32 %v3313, %v3361
        %v3370 = vadd.f32 %v3334, %v3362
        %v3371 = vadd.f32 %v3355, %v3363
        %v3380 = vcombine.low %v3364, %v3365
        %v3381 = vcombine.low %v3366, %v3367
        %v3382 = vcombine.low %v3368, %v3369
        %v3383 = vcombine.low %v3370, %v3371
        %v3385 = vunpack.c.l.s4 1966171168
        %v3386 = vunpack.c.0.s8 %v3385
        %v3387 = vlaneseq
        %v3388 = vshrl.u32 %v3387, 7
        %v3389 = vsub.s32 %v3386, %v3388
        %v3390 = vrot.slane %v3380, %v3389
        %v3392 = vunpack.c.l.s4 1966171168
        %v3393 = vunpack.c.0.s8 %v3392
        %v3394 = vlaneseq
        %v3395 = vshrl.u32 %v3394, 7
        %v3396 = vsub.s32 %v3393, %v3395
        %v3397 = vrot.slane %v3381, %v3396
        %v3399 = vunpack.c.l.s4 1966171168
        %v3400 = vunpack.c.0.s8 %v3399
        %v3401 = vlaneseq
        %v3402 = vshrl.u32 %v3401, 7
        %v3403 = vsub.s32 %v3400, %v3402
        %v3404 = vrot.slane %v3382, %v3403
        %v3406 = vunpack.c.l.s4 1966171168
        %v3407 = vunpack.c.0.s8 %v3406
        %v3408 = vlaneseq
        %v3409 = vshrl.u32 %v3408, 7
        %v3410 = vsub.s32 %v3407, %v3409
        %v3411 = vrot.slane %v3383, %v3410
        %v3412 = vcombine.low %v3390, %v3397
        %v3413 = vcombine.low %v3404, %v3411
        %v3415 = vunpack.c.l.s4 1966171168
        %v3416 = vunpack.c.0.s8 %v3415
        %v3417 = vlaneseq
        %v3418 = vshrl.u32 %v3417, 7
        %v3419 = vsub.s32 %v3416, %v3418
        %v3420 = vrot.slane %v3412, %v3419
        %v3422 = vunpack.c.l.s4 1966171168
        %v3423 = vunpack.c.0.s8 %v3422
        %v3424 = vlaneseq
        %v3425 = vshrl.u32 %v3424, 7
        %v3426 = vsub.s32 %v3423, %v3425
        %v3427 = vrot.slane %v3413, %v3426
        %v3428 = vcombine.low %v3420, %v3427
        %v3430 = vadd.f32 %v3187, %v3428
        %3431 = vst [vmem:[#allocation8] sm:$0xff] %v3430
        %v3432 = vld [vmem:[#allocation9] sm:$0xff]
        %v3433 = vmul.f32 %v3123, %v3123
        %v3434 = vmul.f32 %v3124, %v3124
        %v3435 = vmul.f32 %v3125, %v3125
        %v3436 = vmul.f32 %v3126, %v3126
        %v3437 = vmul.f32 %v3127, %v3127
        %v3438 = vmul.f32 %v3128, %v3128
        %v3439 = vmul.f32 %v3129, %v3129
        %v3440 = vmul.f32 %v3130, %v3130
        %v3441 = vmul.f32 %v3131, %v3131
        %v3442 = vmul.f32 %v3132, %v3132
        %v3443 = vmul.f32 %v3133, %v3133
        %v3444 = vmul.f32 %v3134, %v3134
        %v3445 = vmul.f32 %v3135, %v3135
        %v3446 = vmul.f32 %v3136, %v3136
        %v3447 = vmul.f32 %v3137, %v3137
        %v3448 = vmul.f32 %v3138, %v3138
        %v3449 = vmul.f32 %v3139, %v3139
        %v3450 = vmul.f32 %v3140, %v3140
        %v3451 = vmul.f32 %v3141, %v3141
        %v3452 = vmul.f32 %v3142, %v3142
        %v3453 = vmul.f32 %v3143, %v3143
        %v3454 = vmul.f32 %v3144, %v3144
        %v3455 = vmul.f32 %v3145, %v3145
        %v3456 = vmul.f32 %v3146, %v3146
        %v3457 = vmul.f32 %v3147, %v3147
        %v3458 = vmul.f32 %v3148, %v3148
        %v3459 = vmul.f32 %v3149, %v3149
        %v3460 = vmul.f32 %v3150, %v3150
        %v3461 = vmul.f32 %v3151, %v3151
        %v3462 = vmul.f32 %v3152, %v3152
        %v3463 = vmul.f32 %v3153, %v3153
        %v3464 = vmul.f32 %v3154, %v3154
        %v3465 = vmul.f32 %v3155, %v3155
        %v3466 = vmul.f32 %v3156, %v3156
        %v3467 = vmul.f32 %v3157, %v3157
        %v3468 = vmul.f32 %v3158, %v3158
        %v3469 = vmul.f32 %v3159, %v3159
        %v3470 = vmul.f32 %v3160, %v3160
        %v3471 = vmul.f32 %v3161, %v3161
        %v3472 = vmul.f32 %v3162, %v3162
        %v3473 = vmul.f32 %v3163, %v3163
        %v3474 = vmul.f32 %v3164, %v3164
        %v3475 = vmul.f32 %v3165, %v3165
        %v3476 = vmul.f32 %v3166, %v3166
        %v3477 = vmul.f32 %v3167, %v3167
        %v3478 = vmul.f32 %v3168, %v3168
        %v3479 = vmul.f32 %v3169, %v3169
        %v3480 = vmul.f32 %v3170, %v3170
        %v3481 = vmul.f32 %v3171, %v3171
        %v3482 = vmul.f32 %v3172, %v3172
        %v3483 = vmul.f32 %v3173, %v3173
        %v3484 = vmul.f32 %v3174, %v3174
        %v3485 = vmul.f32 %v3175, %v3175
        %v3486 = vmul.f32 %v3176, %v3176
        %v3487 = vmul.f32 %v3177, %v3177
        %v3488 = vmul.f32 %v3178, %v3178
        %v3489 = vmul.f32 %v3179, %v3179
        %v3490 = vmul.f32 %v3180, %v3180
        %v3491 = vmul.f32 %v3181, %v3181
        %v3492 = vmul.f32 %v3182, %v3182
        %v3493 = vmul.f32 %v3183, %v3183
        %v3494 = vmul.f32 %v3184, %v3184
        %v3495 = vmul.f32 %v3185, %v3185
        %v3496 = vmul.f32 %v3186, %v3186
        %v3497 = vadd.f32 %v3433, %v3441
        %v3498 = vadd.f32 %v3497, %v3449
        %v3499 = vadd.f32 %v3498, %v3457
        %v3500 = vadd.f32 %v3499, %v3465
        %v3501 = vadd.f32 %v3500, %v3473
        %v3502 = vadd.f32 %v3501, %v3481
        %v3503 = vadd.f32 %v3502, %v3489
        %v3504 = vrot.slane %v3503, 4
        %v3505 = vadd.f32 %v3503, %v3504
        %v3506 = vrot.slane %v3505, 2
        %v3507 = vadd.f32 %v3505, %v3506
        %v3508 = vrot.slane %v3507, 1
        %v3509 = vadd.f32 %v3507, %v3508
        %v3510 = vadd.f32 %v3434, %v3442
        %v3511 = vadd.f32 %v3510, %v3450
        %v3512 = vadd.f32 %v3511, %v3458
        %v3513 = vadd.f32 %v3512, %v3466
        %v3514 = vadd.f32 %v3513, %v3474
        %v3515 = vadd.f32 %v3514, %v3482
        %v3516 = vadd.f32 %v3515, %v3490
        %v3517 = vrot.slane %v3516, 4
        %v3518 = vadd.f32 %v3516, %v3517
        %v3519 = vrot.slane %v3518, 2
        %v3520 = vadd.f32 %v3518, %v3519
        %v3521 = vrot.slane %v3520, 1
        %v3522 = vadd.f32 %v3520, %v3521
        %v3523 = vadd.f32 %v3435, %v3443
        %v3524 = vadd.f32 %v3523, %v3451
        %v3525 = vadd.f32 %v3524, %v3459
        %v3526 = vadd.f32 %v3525, %v3467
        %v3527 = vadd.f32 %v3526, %v3475
        %v3528 = vadd.f32 %v3527, %v3483
        %v3529 = vadd.f32 %v3528, %v3491
        %v3530 = vrot.slane %v3529, 4
        %v3531 = vadd.f32 %v3529, %v3530
        %v3532 = vrot.slane %v3531, 2
        %v3533 = vadd.f32 %v3531, %v3532
        %v3534 = vrot.slane %v3533, 1
        %v3535 = vadd.f32 %v3533, %v3534
        %v3536 = vadd.f32 %v3436, %v3444
        %v3537 = vadd.f32 %v3536, %v3452
        %v3538 = vadd.f32 %v3537, %v3460
        %v3539 = vadd.f32 %v3538, %v3468
        %v3540 = vadd.f32 %v3539, %v3476
        %v3541 = vadd.f32 %v3540, %v3484
        %v3542 = vadd.f32 %v3541, %v3492
        %v3543 = vrot.slane %v3542, 4
        %v3544 = vadd.f32 %v3542, %v3543
        %v3545 = vrot.slane %v3544, 2
        %v3546 = vadd.f32 %v3544, %v3545
        %v3547 = vrot.slane %v3546, 1
        %v3548 = vadd.f32 %v3546, %v3547
        %v3549 = vadd.f32 %v3437, %v3445
        %v3550 = vadd.f32 %v3549, %v3453
        %v3551 = vadd.f32 %v3550, %v3461
        %v3552 = vadd.f32 %v3551, %v3469
        %v3553 = vadd.f32 %v3552, %v3477
        %v3554 = vadd.f32 %v3553, %v3485
        %v3555 = vadd.f32 %v3554, %v3493
        %v3556 = vrot.slane %v3555, 4
        %v3557 = vadd.f32 %v3555, %v3556
        %v3558 = vrot.slane %v3557, 2
        %v3559 = vadd.f32 %v3557, %v3558
        %v3560 = vrot.slane %v3559, 1
        %v3561 = vadd.f32 %v3559, %v3560
        %v3562 = vadd.f32 %v3438, %v3446
        %v3563 = vadd.f32 %v3562, %v3454
        %v3564 = vadd.f32 %v3563, %v3462
        %v3565 = vadd.f32 %v3564, %v3470
        %v3566 = vadd.f32 %v3565, %v3478
        %v3567 = vadd.f32 %v3566, %v3486
        %v3568 = vadd.f32 %v3567, %v3494
        %v3569 = vrot.slane %v3568, 4
        %v3570 = vadd.f32 %v3568, %v3569
        %v3571 = vrot.slane %v3570, 2
        %v3572 = vadd.f32 %v3570, %v3571
        %v3573 = vrot.slane %v3572, 1
        %v3574 = vadd.f32 %v3572, %v3573
        %v3575 = vadd.f32 %v3439, %v3447
        %v3576 = vadd.f32 %v3575, %v3455
        %v3577 = vadd.f32 %v3576, %v3463
        %v3578 = vadd.f32 %v3577, %v3471
        %v3579 = vadd.f32 %v3578, %v3479
        %v3580 = vadd.f32 %v3579, %v3487
        %v3581 = vadd.f32 %v3580, %v3495
        %v3582 = vrot.slane %v3581, 4
        %v3583 = vadd.f32 %v3581, %v3582
        %v3584 = vrot.slane %v3583, 2
        %v3585 = vadd.f32 %v3583, %v3584
        %v3586 = vrot.slane %v3585, 1
        %v3587 = vadd.f32 %v3585, %v3586
        %v3588 = vadd.f32 %v3440, %v3448
        %v3589 = vadd.f32 %v3588, %v3456
        %v3590 = vadd.f32 %v3589, %v3464
        %v3591 = vadd.f32 %v3590, %v3472
        %v3592 = vadd.f32 %v3591, %v3480
        %v3593 = vadd.f32 %v3592, %v3488
        %v3594 = vadd.f32 %v3593, %v3496
        %v3595 = vrot.slane %v3594, 4
        %v3596 = vadd.f32 %v3594, %v3595
        %v3597 = vrot.slane %v3596, 2
        %v3598 = vadd.f32 %v3596, %v3597
        %v3599 = vrot.slane %v3598, 1
        %v3600 = vadd.f32 %v3598, %v3599
        %v3609 = vcombine.low %v3509, %v3522
        %v3610 = vcombine.low %v3535, %v3548
        %v3611 = vcombine.low %v3561, %v3574
        %v3612 = vcombine.low %v3587, %v3600
        %v3614 = vunpack.c.l.s4 1966171168
        %v3615 = vunpack.c.0.s8 %v3614
        %v3616 = vlaneseq
        %v3617 = vshrl.u32 %v3616, 7
        %v3618 = vsub.s32 %v3615, %v3617
        %v3619 = vrot.slane %v3609, %v3618
        %v3621 = vunpack.c.l.s4 1966171168
        %v3622 = vunpack.c.0.s8 %v3621
        %v3623 = vlaneseq
        %v3624 = vshrl.u32 %v3623, 7
        %v3625 = vsub.s32 %v3622, %v3624
        %v3626 = vrot.slane %v3610, %v3625
        %v3628 = vunpack.c.l.s4 1966171168
        %v3629 = vunpack.c.0.s8 %v3628
        %v3630 = vlaneseq
        %v3631 = vshrl.u32 %v3630, 7
        %v3632 = vsub.s32 %v3629, %v3631
        %v3633 = vrot.slane %v3611, %v3632
        %v3635 = vunpack.c.l.s4 1966171168
        %v3636 = vunpack.c.0.s8 %v3635
        %v3637 = vlaneseq
        %v3638 = vshrl.u32 %v3637, 7
        %v3639 = vsub.s32 %v3636, %v3638
        %v3640 = vrot.slane %v3612, %v3639
        %v3641 = vcombine.low %v3619, %v3626
        %v3642 = vcombine.low %v3633, %v3640
        %v3644 = vunpack.c.l.s4 1966171168
        %v3645 = vunpack.c.0.s8 %v3644
        %v3646 = vlaneseq
        %v3647 = vshrl.u32 %v3646, 7
        %v3648 = vsub.s32 %v3645, %v3647
        %v3649 = vrot.slane %v3641, %v3648
        %v3651 = vunpack.c.l.s4 1966171168
        %v3652 = vunpack.c.0.s8 %v3651
        %v3653 = vlaneseq
        %v3654 = vshrl.u32 %v3653, 7
        %v3655 = vsub.s32 %v3652, %v3654
        %v3656 = vrot.slane %v3642, %v3655
        %v3657 = vcombine.low %v3649, %v3656
        %v3659 = vadd.f32 %v3432, %v3657
        %3660 = vst [vmem:[#allocation9] sm:$0xff] %v3659
        %v3661 = vld [vmem:[%s8] sm:$0xff]
        %v3662 = vld [vmem:[%s8 + $0x8] sm:$0xff]
        %v3663 = vld [vmem:[%s8 + $0x10] sm:$0xff]
        %v3664 = vld [vmem:[%s8 + $0x18] sm:$0xff]
        %v3665 = vld [vmem:[%s8 + $0x20] sm:$0xff]
        %v3666 = vld [vmem:[%s8 + $0x28] sm:$0xff]
        %v3667 = vld [vmem:[%s8 + $0x30] sm:$0xff]
        %v3668 = vld [vmem:[%s8 + $0x38] sm:$0xff]
        %v3669 = vld [vmem:[%s8 + $0x40] sm:$0xff]
        %v3670 = vld [vmem:[%s8 + $0x48] sm:$0xff]
        %v3671 = vld [vmem:[%s8 + $0x50] sm:$0xff]
        %v3672 = vld [vmem:[%s8 + $0x58] sm:$0xff]
        %v3673 = vld [vmem:[%s8 + $0x60] sm:$0xff]
        %v3674 = vld [vmem:[%s8 + $0x68] sm:$0xff]
        %v3675 = vld [vmem:[%s8 + $0x70] sm:$0xff]
        %v3676 = vld [vmem:[%s8 + $0x78] sm:$0xff]
        %v3677 = vadd.f32 %v2253, %v2254
        %v3678 = vadd.f32 %v3677, %v2255
        %v3679 = vadd.f32 %v3678, %v2256
        %v3680 = vadd.f32 %v3679, %v2257
        %v3681 = vadd.f32 %v3680, %v2258
        %v3682 = vadd.f32 %v3681, %v2259
        %v3683 = vadd.f32 %v3682, %v2260
        %3684 = vadd.xlane.f32.xlu0 %v3683
        %v3685 = vpop.xlane.xlu0 %3684
        %v3686 = vadd.f32 %v2261, %v2262
        %v3687 = vadd.f32 %v3686, %v2263
        %v3688 = vadd.f32 %v3687, %v2264
        %v3689 = vadd.f32 %v3688, %v2265
        %v3690 = vadd.f32 %v3689, %v2266
        %v3691 = vadd.f32 %v3690, %v2267
        %v3692 = vadd.f32 %v3691, %v2268
        %3693 = vadd.xlane.f32.xlu0 %v3692
        %v3694 = vpop.xlane.xlu0 %3693
        %v3695 = vadd.f32 %v2269, %v2270
        %v3696 = vadd.f32 %v3695, %v2271
        %v3697 = vadd.f32 %v3696, %v2272
        %v3698 = vadd.f32 %v3697, %v2273
        %v3699 = vadd.f32 %v3698, %v2274
        %v3700 = vadd.f32 %v3699, %v2275
        %v3701 = vadd.f32 %v3700, %v2276
        %3702 = vadd.xlane.f32.xlu0 %v3701
        %v3703 = vpop.xlane.xlu0 %3702
        %v3704 = vadd.f32 %v2277, %v2278
        %v3705 = vadd.f32 %v3704, %v2279
        %v3706 = vadd.f32 %v3705, %v2280
        %v3707 = vadd.f32 %v3706, %v2281
        %v3708 = vadd.f32 %v3707, %v2282
        %v3709 = vadd.f32 %v3708, %v2283
        %v3710 = vadd.f32 %v3709, %v2284
        %3711 = vadd.xlane.f32.xlu0 %v3710
        %v3712 = vpop.xlane.xlu0 %3711
        %v3713 = vadd.f32 %v2285, %v2286
        %v3714 = vadd.f32 %v3713, %v2287
        %v3715 = vadd.f32 %v3714, %v2288
        %v3716 = vadd.f32 %v3715, %v2289
        %v3717 = vadd.f32 %v3716, %v2290
        %v3718 = vadd.f32 %v3717, %v2291
        %v3719 = vadd.f32 %v3718, %v2292
        %3720 = vadd.xlane.f32.xlu0 %v3719
        %v3721 = vpop.xlane.xlu0 %3720
        %v3722 = vadd.f32 %v2293, %v2294
        %v3723 = vadd.f32 %v3722, %v2295
        %v3724 = vadd.f32 %v3723, %v2296
        %v3725 = vadd.f32 %v3724, %v2297
        %v3726 = vadd.f32 %v3725, %v2298
        %v3727 = vadd.f32 %v3726, %v2299
        %v3728 = vadd.f32 %v3727, %v2300
        %3729 = vadd.xlane.f32.xlu0 %v3728
        %v3730 = vpop.xlane.xlu0 %3729
        %v3731 = vadd.f32 %v2301, %v2302
        %v3732 = vadd.f32 %v3731, %v2303
        %v3733 = vadd.f32 %v3732, %v2304
        %v3734 = vadd.f32 %v3733, %v2305
        %v3735 = vadd.f32 %v3734, %v2306
        %v3736 = vadd.f32 %v3735, %v2307
        %v3737 = vadd.f32 %v3736, %v2308
        %3738 = vadd.xlane.f32.xlu0 %v3737
        %v3739 = vpop.xlane.xlu0 %3738
        %v3740 = vadd.f32 %v2309, %v2310
        %v3741 = vadd.f32 %v3740, %v2311
        %v3742 = vadd.f32 %v3741, %v2312
        %v3743 = vadd.f32 %v3742, %v2313
        %v3744 = vadd.f32 %v3743, %v2314
        %v3745 = vadd.f32 %v3744, %v2315
        %v3746 = vadd.f32 %v3745, %v2316
        %3747 = vadd.xlane.f32.xlu0 %v3746
        %v3748 = vpop.xlane.xlu0 %3747
        %v3749 = vadd.f32 %v2317, %v2318
        %v3750 = vadd.f32 %v3749, %v2319
        %v3751 = vadd.f32 %v3750, %v2320
        %v3752 = vadd.f32 %v3751, %v2321
        %v3753 = vadd.f32 %v3752, %v2322
        %v3754 = vadd.f32 %v3753, %v2323
        %v3755 = vadd.f32 %v3754, %v2324
        %3756 = vadd.xlane.f32.xlu0 %v3755
        %v3757 = vpop.xlane.xlu0 %3756
        %v3758 = vadd.f32 %v2325, %v2326
        %v3759 = vadd.f32 %v3758, %v2327
        %v3760 = vadd.f32 %v3759, %v2328
        %v3761 = vadd.f32 %v3760, %v2329
        %v3762 = vadd.f32 %v3761, %v2330
        %v3763 = vadd.f32 %v3762, %v2331
        %v3764 = vadd.f32 %v3763, %v2332
        %3765 = vadd.xlane.f32.xlu0 %v3764
        %v3766 = vpop.xlane.xlu0 %3765
        %v3767 = vadd.f32 %v2333, %v2334
        %v3768 = vadd.f32 %v3767, %v2335
        %v3769 = vadd.f32 %v3768, %v2336
        %v3770 = vadd.f32 %v3769, %v2337
        %v3771 = vadd.f32 %v3770, %v2338
        %v3772 = vadd.f32 %v3771, %v2339
        %v3773 = vadd.f32 %v3772, %v2340
        %3774 = vadd.xlane.f32.xlu0 %v3773
        %v3775 = vpop.xlane.xlu0 %3774
        %v3776 = vadd.f32 %v2341, %v2342
        %v3777 = vadd.f32 %v3776, %v2343
        %v3778 = vadd.f32 %v3777, %v2344
        %v3779 = vadd.f32 %v3778, %v2345
        %v3780 = vadd.f32 %v3779, %v2346
        %v3781 = vadd.f32 %v3780, %v2347
        %v3782 = vadd.f32 %v3781, %v2348
        %3783 = vadd.xlane.f32.xlu0 %v3782
        %v3784 = vpop.xlane.xlu0 %3783
        %v3785 = vadd.f32 %v2349, %v2350
        %v3786 = vadd.f32 %v3785, %v2351
        %v3787 = vadd.f32 %v3786, %v2352
        %v3788 = vadd.f32 %v3787, %v2353
        %v3789 = vadd.f32 %v3788, %v2354
        %v3790 = vadd.f32 %v3789, %v2355
        %v3791 = vadd.f32 %v3790, %v2356
        %3792 = vadd.xlane.f32.xlu0 %v3791
        %v3793 = vpop.xlane.xlu0 %3792
        %v3794 = vadd.f32 %v2357, %v2358
        %v3795 = vadd.f32 %v3794, %v2359
        %v3796 = vadd.f32 %v3795, %v2360
        %v3797 = vadd.f32 %v3796, %v2361
        %v3798 = vadd.f32 %v3797, %v2362
        %v3799 = vadd.f32 %v3798, %v2363
        %v3800 = vadd.f32 %v3799, %v2364
        %3801 = vadd.xlane.f32.xlu0 %v3800
        %v3802 = vpop.xlane.xlu0 %3801
        %v3803 = vadd.f32 %v2365, %v2366
        %v3804 = vadd.f32 %v3803, %v2367
        %v3805 = vadd.f32 %v3804, %v2368
        %v3806 = vadd.f32 %v3805, %v2369
        %v3807 = vadd.f32 %v3806, %v2370
        %v3808 = vadd.f32 %v3807, %v2371
        %v3809 = vadd.f32 %v3808, %v2372
        %3810 = vadd.xlane.f32.xlu0 %v3809
        %v3811 = vpop.xlane.xlu0 %3810
        %v3812 = vadd.f32 %v2373, %v2374
        %v3813 = vadd.f32 %v3812, %v2375
        %v3814 = vadd.f32 %v3813, %v2376
        %v3815 = vadd.f32 %v3814, %v2377
        %v3816 = vadd.f32 %v3815, %v2378
        %v3817 = vadd.f32 %v3816, %v2379
        %v3818 = vadd.f32 %v3817, %v2380
        %3819 = vadd.xlane.f32.xlu0 %v3818
        %v3820 = vpop.xlane.xlu0 %3819
        %v3821 = vadd.f32 %v3661, %v3685
        %v3822 = vadd.f32 %v3662, %v3694
        %v3823 = vadd.f32 %v3663, %v3703
        %v3824 = vadd.f32 %v3664, %v3712
        %v3825 = vadd.f32 %v3665, %v3721
        %v3826 = vadd.f32 %v3666, %v3730
        %v3827 = vadd.f32 %v3667, %v3739
        %v3828 = vadd.f32 %v3668, %v3748
        %v3829 = vadd.f32 %v3669, %v3757
        %v3830 = vadd.f32 %v3670, %v3766
        %v3831 = vadd.f32 %v3671, %v3775
        %v3832 = vadd.f32 %v3672, %v3784
        %v3833 = vadd.f32 %v3673, %v3793
        %v3834 = vadd.f32 %v3674, %v3802
        %v3835 = vadd.f32 %v3675, %v3811
        %v3836 = vadd.f32 %v3676, %v3820
        %vm3837 = vcmask 7168
        %3838 = vst.msk [vmem:[%s8] sm:$0xff] %vm3837, %v3821
        %3839 = vst.msk [vmem:[%s8 + $0x8] sm:$0xff] %vm3837, %v3822
        %3840 = vst.msk [vmem:[%s8 + $0x10] sm:$0xff] %vm3837, %v3823
        %3841 = vst.msk [vmem:[%s8 + $0x18] sm:$0xff] %vm3837, %v3824
        %3842 = vst.msk [vmem:[%s8 + $0x20] sm:$0xff] %vm3837, %v3825
        %3843 = vst.msk [vmem:[%s8 + $0x28] sm:$0xff] %vm3837, %v3826
        %3844 = vst.msk [vmem:[%s8 + $0x30] sm:$0xff] %vm3837, %v3827
        %3845 = vst.msk [vmem:[%s8 + $0x38] sm:$0xff] %vm3837, %v3828
        %3846 = vst.msk [vmem:[%s8 + $0x40] sm:$0xff] %vm3837, %v3829
        %3847 = vst.msk [vmem:[%s8 + $0x48] sm:$0xff] %vm3837, %v3830
        %3848 = vst.msk [vmem:[%s8 + $0x50] sm:$0xff] %vm3837, %v3831
        %3849 = vst.msk [vmem:[%s8 + $0x58] sm:$0xff] %vm3837, %v3832
        %3850 = vst.msk [vmem:[%s8 + $0x60] sm:$0xff] %vm3837, %v3833
        %3851 = vst.msk [vmem:[%s8 + $0x68] sm:$0xff] %vm3837, %v3834
        %3852 = vst.msk [vmem:[%s8 + $0x70] sm:$0xff] %vm3837, %v3835
        %3853 = vst.msk [vmem:[%s8 + $0x78] sm:$0xff] %vm3837, %v3836
        %s3854 = sand.u32 %s143, 1
        %s3855 = scalar_lea.sflag [#allocation4], %s3854
        %s3856 = sand.u32 %s143, 1
        %s3857 = smul.addr %s3856, 512
        %s3858 = scalar_lea.vmem [#allocation5], %s3857
        %s3859 = sand.u32 %s30, 1
        %s3860 = scalar_lea.sflag [#allocation7], %s3859
        %s3861 = sand.u32 %s171, 1
        %s3862 = smul.addr %s3861, 8
        %s3863 = scalar_lea.vmem [#allocation6], %s3862
        // Predicated region
        $region45: #{tpu_custom_call.1} parent=35 // pred_check
          %p3864 = pneg %p153
        $region46: #{tpu_custom_call.1} parent=35 // pred_check_branch
          %3866 = sbr.rel (%p3864) target = $region48
        $region47: #{tpu_custom_call.1} parent=35 // pred_region
          %s3867 = smul.u32 8, %s35
          %s3869 = ssub.s32 8192, 8192
          %3870 = vsyncadd %s3855, %s3869
          %s3871 = smul.addr %s34, 64
          %s3872 = sadd.s32 %s3867, %s3871
          %s3873 = smul.addr %s3872, 128
          %s3874 = scalar_lea.hbm %s4, %s3873
          %s3875 = sshll.u32 %s3858, 4
          %s3876 = int_to_ptr.vmem [resolvable:$true] %s3875
          %3881 = dma.vmem_to_hbm [thread:$0]  %s3876, 8192, %s3874, %s3855, 1024, 1024, 64
        $region48: #{tpu_custom_call.1} parent=35 // pred_fallthru
          _
        // Predicated region
        $region49: #{tpu_custom_call.1} parent=35 // pred_check
          %p3882 = pneg %p181
        $region50: #{tpu_custom_call.1} parent=35 // pred_check_branch
          %3884 = sbr.rel (%p3882) target = $region52
        $region51: #{tpu_custom_call.1} parent=35 // pred_region
          %s3885 = smul.u32 8, %s35
          %s3887 = ssub.s32 128, 128
          %3888 = vsyncadd %s3860, %s3887
          %s3889 = smul.addr %s34, 8
          %s3890 = sadd.s32 %s3885, %s3889
          %s3891 = smul.addr %s3890, 16
          %s3892 = scalar_lea.hbm %s5, %s3891
          %s3894 = sshll.u32 %s3863, 4
          %s3895 = int_to_ptr.vmem [resolvable:$true] %s3894
          %3897 = dma.vmem_to_hbm [thread:$0]  %s3895, 128, %s3892, %s3860
        $region52: #{tpu_custom_call.1} parent=35 // pred_fallthru
          _
        // Predicated region
        $region53: #{tpu_custom_call.1} parent=35 // pred_check
          %p3898 = pneg %p202
        $region54: #{tpu_custom_call.1} parent=35 // pred_check_branch
          %3900 = sbr.rel (%p3898) target = $region56
        $region55: #{tpu_custom_call.1} parent=35 // pred_region
          %s3902 = ssub.s32 128, 128
          %3903 = vsyncadd [#allocation7], %s3902
          %s3905 = sshll.u32 [#allocation8], 4
          %s3906 = int_to_ptr.vmem [resolvable:$true] %s3905
          %3908 = dma.vmem_to_hbm [thread:$0]  %s3906, 128, %s6, [#allocation7]
        $region56: #{tpu_custom_call.1} parent=35 // pred_fallthru
          _
        // Predicated region
        $region57: #{tpu_custom_call.1} parent=35 // pred_check
          %p3909 = pneg %p223
        $region58: #{tpu_custom_call.1} parent=35 // pred_check_branch
          %3911 = sbr.rel (%p3909) target = $region60
        $region59: #{tpu_custom_call.1} parent=35 // pred_region
          %s3913 = ssub.s32 128, 128
          %3914 = vsyncadd [#allocation10], %s3913
          %s3916 = sshll.u32 [#allocation9], 4
          %s3917 = int_to_ptr.vmem [resolvable:$true] %s3916
          %3919 = dma.vmem_to_hbm [thread:$0]  %s3917, 128, %s7, [#allocation10]
        $region60: #{tpu_custom_call.1} parent=35 // pred_fallthru
          _
        // Predicated region
        $region61: #{tpu_custom_call.1} parent=35 // pred_check
          %p3920 = pneg %p244
        $region62: #{tpu_custom_call.1} parent=35 // pred_check_branch
          %3922 = sbr.rel (%p3920) target = $region64
        $region63: #{tpu_custom_call.1} parent=35 // pred_region
          _
        $region64: #{tpu_custom_call.1} parent=35 // pred_fallthru
          _
        // Predicated region
        $region65: #{tpu_custom_call.1} parent=35 // pred_check
          %p3923 = pneg %p202
        $region66: #{tpu_custom_call.1} parent=35 // pred_check_branch
          %3925 = sbr.rel (%p3923) target = $region68
        $region67: #{tpu_custom_call.1} parent=35 // pred_region
          %3926 = dma.done [#allocation7], 128
        $region68: #{tpu_custom_call.1} parent=35 // pred_fallthru
          _
        // Predicated region
        $region69: #{tpu_custom_call.1} parent=35 // pred_check
          %p3927 = pneg %p223
        $region70: #{tpu_custom_call.1} parent=35 // pred_check_branch
          %3929 = sbr.rel (%p3927) target = $region72
        $region71: #{tpu_custom_call.1} parent=35 // pred_region
          %3930 = dma.done [#allocation10], 128
        $region72: #{tpu_custom_call.1} parent=35 // pred_fallthru
          _
        // Predicated region
        $region73: #{tpu_custom_call.1} parent=35 // pred_check
          %p3931 = pneg %p244
        $region74: #{tpu_custom_call.1} parent=35 // pred_check_branch
          %3933 = sbr.rel (%p3931) target = $region76
        $region75: #{tpu_custom_call.1} parent=35 // pred_region
          _
        $region76: #{tpu_custom_call.1} parent=35 // pred_fallthru
          _
      $region36: #{tpu_custom_call.1} parent=5 // pred_fallthru
        _
      %p3934 = scmp.le.s32.totalorder 2, %s25
      // Predicated region
      $region77: #{tpu_custom_call.1} parent=5 // pred_check
        %p3935 = pneg %p3934
      $region78: #{tpu_custom_call.1} parent=5 // pred_check_branch
        %3937 = sbr.rel (%p3935) target = $region80
      $region79: #{tpu_custom_call.1} parent=5 // pred_region
        %s3938 = ssub.s32 %s25, 2
        // Predicated region
        $region81: #{tpu_custom_call.1} parent=79 // pred_check
          %p3939 = pneg %p159
        $region82: #{tpu_custom_call.1} parent=79 // pred_check_branch
          %3941 = sbr.rel (%p3939) target = $region84
        $region83: #{tpu_custom_call.1} parent=79 // pred_region
          %s3942 = sand.u32 %s144, 1
          %s3943 = scalar_lea.sflag [#allocation4], %s3942
          %s3944 = sand.u32 %s144, 1
          %s3945 = smul.addr %s3944, 512
          %s3946 = scalar_lea.vmem [#allocation5], %s3945
          %3947 = dma.done %s3943, 8192
        $region84: #{tpu_custom_call.1} parent=79 // pred_fallthru
          _
        // Predicated region
        $region85: #{tpu_custom_call.1} parent=79 // pred_check
          %p3948 = pneg %p187
        $region86: #{tpu_custom_call.1} parent=79 // pred_check_branch
          %3950 = sbr.rel (%p3948) target = $region88
        $region87: #{tpu_custom_call.1} parent=79 // pred_region
          %s3951 = sand.u32 %s31, 1
          %s3952 = scalar_lea.sflag [#allocation7], %s3951
          %s3953 = sand.u32 %s172, 1
          %s3954 = smul.addr %s3953, 8
          %s3955 = scalar_lea.vmem [#allocation6], %s3954
          %3956 = dma.done %s3952, 128
        $region88: #{tpu_custom_call.1} parent=79 // pred_fallthru
          _
      $region80: #{tpu_custom_call.1} parent=5 // pred_fallthru
        _
    $region6: #{tpu_custom_call.1} parent=1 // loop_footer
      %s29 = sadd.s32 1, %s25
    $region7: #{tpu_custom_call.1} parent=1 // loop_footer_branch
      %24 = sbr.rel target = $region3
    $region8: #{tpu_custom_call.1} parent=1 // loop_exit
      _
    %3957 = vsyncpa [#allocation3], 1
    %s3958 = scalar_lea.sflag [#allocation3], 1
    %3959 = vsyncpa %s3958, 1
    %3960 = vsyncpa [#allocation4], 1
    %s3961 = scalar_lea.sflag [#allocation4], 1
    %3962 = vsyncpa %s3961, 1
    %3963 = vsyncpa [#allocation7], 1
    %s3964 = scalar_lea.sflag [#allocation7], 1
    %3965 = vsyncpa %s3964, 1
    %3966 = vsyncpa [#allocation10], 1

</llo_original>
